<compile_context>
chip_gen: v6e
topology: v6e:2x2x1
jax: 0.10.0
libtpu: 0.0.40
codegen_flags: <defaults>
</compile_context>

<pallas_src>
import jax
import jax.numpy as jnp
from jax.experimental import pallas as pl
from jax.experimental.pallas import tpu as pltpu


def _default_num_slices():
    """2 'parallel' output slices only on dual-TensorCore chips (v7x), else 1."""
    try:
        kind = jax.devices()[0].device_kind.lower()
    except Exception:
        return 1
    return 2 if ("v7" in kind or "7x" in kind or "tpu7" in kind) else 1


def cross_entropy_loss(y_pred, y_true, weight=0.9, tile_n=8192, num_slices=None):
    """Cross-entropy loss matching the PyTorch module's forward.

    y_pred: (N, C) logits (any float dtype, upcast to f32 in-kernel),
    y_true: (N,) integer class ids.
    """
    N, C = y_pred.shape
    if num_slices is None:
        num_slices = _default_num_slices()

    # Block row count: a multiple of 8, or the full N when it fits in one block.
    tile_n = max(8, (int(tile_n) // 8) * 8)
    bn = N if N <= tile_n else tile_n
    num_tiles = pl.cdiv(N, bn)

    # Use >1 slice only when each TensorCore still gets >=2 tiles (so its DMAs are
    # double-buffered) and the tiles split evenly; otherwise fall back to 1 slice.
    if num_slices > 1 and (num_tiles < 2 * num_slices or num_tiles % num_slices):
        num_slices = 1
    tiles_per_slice = num_tiles // num_slices

    # Targets as an (N, 1) int32 column; padded-tail values are garbage but only
    # ever used in an equality compare on rows that the row<N mask zeroes out.
    tgt = y_true.astype(jnp.int32).reshape(N, 1)

    def kernel(z_ref, t_ref, out_ref):
        s = pl.program_id(0)          # parallel slice (v7x's 2nd TensorCore)
        k = pl.program_id(1)          # tile within slice (reduction axis)

        @pl.when(k == 0)
        def _():
            out_ref[...] = jnp.zeros_like(out_ref)

        zb = z_ref[...].astype(jnp.float32)                 # (bn, C)
        tb = t_ref[...]                                     # (bn, 1) int32

        # log-sum-exp over the class (lane) axis.
        m = jnp.max(zb, axis=1, keepdims=True)              # (bn, 1)
        e = jnp.exp(zb - m)
        lse = jnp.log(jnp.sum(e, axis=1, keepdims=True)) + m

        # logit of the target class via a one-hot lane mask (no gather needed).
        cls = jax.lax.broadcasted_iota(jnp.int32, zb.shape, 1)
        picked = jnp.sum(jnp.where(cls == tb, zb, 0.0), axis=1, keepdims=True)

        # Mask rows past N (ragged last tile): the block may contain undefined
        # data there (incl. NaN), but per-row values are zeroed before reducing.
        tile_idx = s * tiles_per_slice + k
        row = tile_idx * bn + jax.lax.broadcasted_iota(jnp.int32, (bn, 1), 0)
        nll = jnp.where(row < N, lse - picked, 0.0)         # (bn, 1)

        # One scalar partial per slice, accumulated across the tile axis.
        out_ref[...] += jnp.sum(nll, axis=0, keepdims=True)

    # Worst-case VMEM: both inputs double-buffered, lane axis padded to 128 in-VMEM.
    lane_pad = ((max(C, 1) + 127) // 128) * 128
    vmem_need = 2 * bn * lane_pad * y_pred.dtype.itemsize + 2 * bn * 128 * 4
    vmem_limit = int(min(64 << 20, max(32 << 20, vmem_need + (4 << 20))))

    partials = pl.pallas_call(
        kernel,
        out_shape=jax.ShapeDtypeStruct((num_slices, 1), jnp.float32),
        grid_spec=pltpu.PrefetchScalarGridSpec(
            num_scalar_prefetch=0,
            grid=(num_slices, tiles_per_slice),
            in_specs=[
                pl.BlockSpec((bn, C), lambda s, k: (s * tiles_per_slice + k, 0)),
                pl.BlockSpec((bn, 1), lambda s, k: (s * tiles_per_slice + k, 0)),
            ],
            out_specs=pl.BlockSpec((1, 1), lambda s, k: (s, 0)),
        ),
        compiler_params=pltpu.CompilerParams(
            dimension_semantics=("parallel", "arbitrary"),
            vmem_limit_bytes=vmem_limit),
        cost_estimate=pl.CostEstimate(
            flops=int(5 * N * C),
            transcendentals=int(N * C + N),
            bytes_accessed=int(N * C * y_pred.dtype.itemsize + N * 4 + num_slices * 4)),
    )(y_pred, tgt)

    total_nll = jnp.sum(partials)
    # Weighted 'mean' reduction with a uniform (0-d) weight: w cancels, kept explicit.
    w = jnp.float32(weight)
    return (w * total_nll) / (w * jnp.float32(N))


def cross_entropy_ref(y_pred, y_true, weight=0.9):
    """Pure-JAX reference mirroring F.cross_entropy with a uniform class weight."""
    logits = y_pred.astype(jnp.float32)
    lse = jax.scipy.special.logsumexp(logits, axis=-1)
    picked = jnp.take_along_axis(
        logits, y_true.astype(jnp.int32)[:, None], axis=-1)[:, 0]
    nll = lse - picked
    w = jnp.float32(weight)
    return jnp.sum(w * nll) / jnp.sum(w * jnp.ones_like(nll))


if __name__ == "__main__":
    # (N, C) logits + (N,) integer targets, as F.cross_entropy implies.
    N, C = 1000, 10
    key = jax.random.PRNGKey(0)
    k1, k2 = jax.random.split(key)
    y_pred = jax.random.normal(k1, (N, C), dtype=jnp.float32)
    y_true = jax.random.randint(k2, (N,), 0, C, dtype=jnp.int32)

    ref = jax.block_until_ready(cross_entropy_ref(y_pred, y_true))

    # Default config: N fits in a single full (N, C) block.
    loss_big = jax.block_until_ready(cross_entropy_loss(y_pred, y_true))
    # Small-tile config: exercises the multi-tile grid and the masked partial tail.
    loss_tiled = jax.block_until_ready(cross_entropy_loss(y_pred, y_true, tile_n=256))

    assert jnp.allclose(loss_big, ref, atol=1e-5, rtol=1e-5), (loss_big, ref)
    assert jnp.allclose(loss_tiled, ref, atol=1e-5, rtol=1e-5), (loss_tiled, ref)
    print("KERNEL_OK")
</pallas_src>

<mosaic_0001>
module attributes {stable_mosaic.version = 11 : i64} {
  func.func @kernel(%arg0: i32, %arg1: i32, %arg2: memref<1000x10xf32, #tpu.memory_space<vmem>>, %arg3: memref<1000x1xi32, #tpu.memory_space<vmem>>, %arg4: memref<1x1xf32, #tpu.memory_space<vmem>>) attributes {dimension_semantics = [#tpu.dimension_semantics<parallel>, #tpu.dimension_semantics<arbitrary>], iteration_bounds = array<i64: 1, 1>, scalar_prefetch = 0 : i64, scratch_operands = 0 : i64, tpu.core_type = #tpu.core_type<tc>, window_params = [{transform_indices = @transform_0, window_bounds = array<i64: 1000, 10>}, {transform_indices = @transform_1, window_bounds = array<i64: 1000, 1>}, {transform_indices = @transform_2, window_bounds = array<i64: 1, 1>}]} {
    %c0_i32 = arith.constant 0 : i32
    %0 = arith.cmpi eq, %arg1, %c0_i32 : i32
    %1 = arith.extui %0 : i1 to i32
    %c0_i32_0 = arith.constant 0 : i32
    %2 = arith.cmpi ne, %1, %c0_i32_0 : i32
    scf.if %2 {
      %cst_14 = arith.constant 0.000000e+00 : f32
      %37 = vector.broadcast %cst_14 : f32 to vector<1x1xf32>
      %c0_15 = arith.constant 0 : index
      %c0_16 = arith.constant 0 : index
      %38 = vector.load %arg4[%c0_15, %c0_16] : memref<1x1xf32, #tpu.memory_space<vmem>>, vector<1x1xf32>
      tpu.vector_store %arg4[%c0_15, %c0_16], %37 {strides = array<i32>} : memref<1x1xf32, #tpu.memory_space<vmem>>, vector<1x1xf32>,
    } else {
    }
    %c0 = arith.constant 0 : index
    %c0_1 = arith.constant 0 : index
    %3 = vector.load %arg2[%c0, %c0_1] : memref<1000x10xf32, #tpu.memory_space<vmem>>, vector<1000x10xf32>
    %c0_2 = arith.constant 0 : index
    %c0_3 = arith.constant 0 : index
    %4 = vector.load %arg3[%c0_2, %c0_3] : memref<1000x1xi32, #tpu.memory_space<vmem>>, vector<1000x1xi32>
    %cst = arith.constant dense<0xFF800000> : vector<1000xf32>
    %5 = vector.multi_reduction <maximumf>, %3, %cst [1] : vector<1000x10xf32> to vector<1000xf32>
    %6 = vector.shape_cast %5 : vector<1000xf32> to vector<1000x1xf32>
    %7 = vector.broadcast %6 : vector<1000x1xf32> to vector<1000x10xf32>
    %8 = arith.subf %3, %7 : vector<1000x10xf32>
    %9 = math.exp %8 : vector<1000x10xf32>
    %cst_4 = arith.constant dense<0.000000e+00> : vector<1000xf32>
    %10 = vector.multi_reduction <add>, %9, %cst_4 [1] : vector<1000x10xf32> to vector<1000xf32>
    %11 = vector.shape_cast %10 : vector<1000xf32> to vector<1000x1xf32>
    %12 = math.log %11 : vector<1000x1xf32>
    %13 = arith.addf %12, %6 : vector<1000x1xf32>
    %14 = tpu.iota {dimensions = array<i32: 1>} : vector<1000x10xi32>
    %15 = vector.broadcast %4 : vector<1000x1xi32> to vector<1000x10xi32>
    %16 = arith.cmpi eq, %14, %15 : vector<1000x10xi32>
    %cst_5 = arith.constant 0.000000e+00 : f32
    %17 = vector.broadcast %cst_5 : f32 to vector<1000x10xf32>
    %18 = arith.select %16, %3, %17 : vector<1000x10xi1>, vector<1000x10xf32>
    %cst_6 = arith.constant dense<0.000000e+00> : vector<1000xf32>
    %19 = vector.multi_reduction <add>, %18, %cst_6 [1] : vector<1000x10xf32> to vector<1000xf32>
    %20 = vector.shape_cast %19 : vector<1000xf32> to vector<1000x1xf32>
    %c1_i32 = arith.constant 1 : i32
    %21 = arith.muli %arg0, %c1_i32 : i32
    %22 = arith.addi %21, %arg1 : i32
    %c1000_i32 = arith.constant 1000 : i32
    %23 = arith.muli %22, %c1000_i32 : i32
    %24 = tpu.iota {dimensions = array<i32: 0>} : vector<1000x1xi32>
    %25 = vector.broadcast %23 : i32 to vector<1000x1xi32>
    %26 = arith.addi %25, %24 : vector<1000x1xi32>
    %c1000_i32_7 = arith.constant 1000 : i32
    %27 = vector.broadcast %c1000_i32_7 : i32 to vector<1000x1xi32>
    %28 = arith.cmpi slt, %26, %27 : vector<1000x1xi32>
    %29 = arith.subf %13, %20 : vector<1000x1xf32>
    %cst_8 = arith.constant 0.000000e+00 : f32
    %30 = vector.broadcast %cst_8 : f32 to vector<1000x1xf32>
    %31 = arith.select %28, %29, %30 : vector<1000x1xi1>, vector<1000x1xf32>
    %c0_9 = arith.constant 0 : index
    %c0_10 = arith.constant 0 : index
    %32 = vector.load %arg4[%c0_9, %c0_10] : memref<1x1xf32, #tpu.memory_space<vmem>>, vector<1x1xf32>
    %cst_11 = arith.constant dense<0.000000e+00> : vector<1xf32>
    %33 = vector.multi_reduction <add>, %31, %cst_11 [0] : vector<1000x1xf32> to vector<1xf32>
    %34 = vector.shape_cast %33 : vector<1xf32> to vector<1x1xf32>
    %35 = arith.addf %32, %34 : vector<1x1xf32>
    %c0_12 = arith.constant 0 : index
    %c0_13 = arith.constant 0 : index
    %36 = vector.load %arg4[%c0_12, %c0_13] : memref<1x1xf32, #tpu.memory_space<vmem>>, vector<1x1xf32>
    tpu.vector_store %arg4[%c0_12, %c0_13], %35 {strides = array<i32>} : memref<1x1xf32, #tpu.memory_space<vmem>>, vector<1x1xf32>,
    return
  }
  func.func @transform_0(%arg0: i32, %arg1: i32) -> (i32, i32) {
    %c1_i32 = arith.constant 1 : i32
    %0 = arith.muli %arg0, %c1_i32 : i32
    %1 = arith.addi %0, %arg1 : i32
    %c0_i32 = arith.constant 0 : i32
    %c0_i32_0 = arith.constant 0 : i32
    return %1, %c0_i32 : i32, i32
  }
  func.func @transform_1(%arg0: i32, %arg1: i32) -> (i32, i32) {
    %c1_i32 = arith.constant 1 : i32
    %0 = arith.muli %arg0, %c1_i32 : i32
    %1 = arith.addi %0, %arg1 : i32
    %c0_i32 = arith.constant 0 : i32
    %c0_i32_0 = arith.constant 0 : i32
    return %1, %c0_i32 : i32, i32
  }
  func.func @transform_2(%arg0: i32, %arg1: i32) -> (i32, i32) {
    %c0_i32 = arith.constant 0 : i32
    %c0_i32_0 = arith.constant 0 : i32
    return %arg0, %c0_i32 : i32, i32
  }
}

</mosaic_0001>

<llo_original>
// kernel: tpu_custom_call.1
$region0: #{tpu_custom_call.1}
  #allocation0 [shape = 'u32[]', space=smem, size = 0x4, offset = 0x4, fixed_abs, tag = 'smem constant byte address 0x4 - core index']
  #allocation1 [shape = 'u32[144,128]{1,0:T(1,128)}', space=vmem, size = 0x12000, scoped, tag = 'internal scratch']
  %s0 = inlined_call_operand.vmem [shape: f32[1000,10], index: 0, kind: input, shape index: {}]
  %s1 = inlined_call_operand.vmem [shape: s32[1000,1], index: 1, kind: input, shape index: {}]
  %s2 = inlined_call_operand.hbm [shape: f32[1,1], index: 2, kind: output, shape index: {}]
  %s3 = sld [smem:[#allocation0]]
  $region22: #{tpu_custom_call.1} parent=0
    _
  %s5 = ssub.s32 1, %s3
  %s6 = scalar_select 0, %s5, %s3
  $region1: #{tpu_custom_call.1} parent=0
    #allocation2 [shape = 'u8[512]{0}', space=vmem, size = 0x400, scoped, tag = 'output window, operand 0, single buffered']
    #allocation3 [shape = 's32[1]{0}', space=sflag, size = 0x4, scoped, tag = 'scoped memory for tpu_custom_call.1']
    %7 = vsyncpa [#allocation3], 0
    // Predicated region
    $region2: #{tpu_custom_call.1} parent=1 // pred_check
      _
    $region3: #{tpu_custom_call.1} parent=1 // pred_check_branch
      %9 = sbr.rel (0) target = $region5
    $region4: #{tpu_custom_call.1} parent=1 // pred_region
      %s10 = sadd.s32 0, 0
      %s11 = smul.u32 125, %s10
      %p12 = scmp.lt.s32.totalorder %s11, 124
      %s13 = scalar_select %p12, %s11, 124
      %s14 = smul.addr %s13, 8
      %s15 = scalar_lea.vmem %s0, %s14
      %s16 = sadd.s32 0, 0
      %s17 = smul.u32 125, %s16
    $region5: #{tpu_custom_call.1} parent=1 // pred_fallthru
      _
    // Predicated region
    $region6: #{tpu_custom_call.1} parent=1 // pred_check
      _
    $region7: #{tpu_custom_call.1} parent=1 // pred_check_branch
      %19 = sbr.rel (0) target = $region9
    $region8: #{tpu_custom_call.1} parent=1 // pred_region
      %s20 = sadd.s32 0, 0
      %s21 = smul.u32 125, %s20
      %p22 = scmp.lt.s32.totalorder %s21, 124
      %s23 = scalar_select %p22, %s21, 124
      %s24 = smul.addr %s23, 8
      %s25 = scalar_lea.vmem %s1, %s24
      %s26 = sadd.s32 0, 0
      %s27 = smul.u32 125, %s26
    $region9: #{tpu_custom_call.1} parent=1 // pred_fallthru
      _
    %s28 = sadd.s32 0, 0
    %s29 = smul.u32 125, %s28
    %p30 = scmp.lt.s32.totalorder %s29, 124
    %s31 = scalar_select %p30, %s29, 124
    %s32 = smul.addr %s31, 8
    %s33 = scalar_lea.vmem %s0, %s32
    %s34 = sadd.s32 0, 0
    %s35 = smul.u32 125, %s34
    %p36 = scmp.lt.s32.totalorder %s35, 124
    %s37 = scalar_select %p36, %s35, 124
    %s38 = smul.addr %s37, 8
    %s39 = scalar_lea.vmem %s1, %s38
    %s40 = sadd.s32 0, 0
    %s41 = smul.u32 125, %s40
    %p42 = scmp.lt.s32.totalorder %s41, 124
    %s43 = scalar_select %p42, %s41, 124
    %s44 = smul.addr %s43, 8
    %s45 = scalar_lea.vmem %s0, %s44
    %s46 = sadd.s32 0, 0
    %s47 = smul.u32 125, %s46
    %s48 = sadd.s32 0, 0
    %s49 = smul.u32 125, %s48
    %p50 = scmp.lt.s32.totalorder %s49, 124
    %s51 = scalar_select %p50, %s49, 124
    %s52 = smul.addr %s51, 8
    %s53 = scalar_lea.vmem %s1, %s52
    %s54 = sadd.s32 0, 0
    %s55 = smul.u32 125, %s54
    %p56 = scmp.eq.s32.totalorder 0, 0
    // Predicated region
    $region10: #{tpu_custom_call.1} parent=1 // pred_check
      %p57 = pneg %p56
    $region11: #{tpu_custom_call.1} parent=1 // pred_check_branch
      %59 = sbr.rel (%p57) target = $region13
    $region12: #{tpu_custom_call.1} parent=1 // pred_region
      %vm60 = vcmask 0
      %61 = vst.msk [vmem:[#allocation2] sm:$0x1] %vm60, 0.0
    $region13: #{tpu_custom_call.1} parent=1 // pred_fallthru
      _
    %v62 = vld [vmem:[%s45] sm:$0xff]
    %v63 = vld [vmem:[%s45 + $0x8] sm:$0xff]
    %v64 = vld [vmem:[%s45 + $0x10] sm:$0xff]
    %v65 = vld [vmem:[%s45 + $0x18] sm:$0xff]
    %v66 = vld [vmem:[%s45 + $0x20] sm:$0xff]
    %v67 = vld [vmem:[%s45 + $0x28] sm:$0xff]
    %v68 = vld [vmem:[%s45 + $0x30] sm:$0xff]
    %v69 = vld [vmem:[%s45 + $0x38] sm:$0xff]
    %v70 = vld [vmem:[%s45 + $0x40] sm:$0xff]
    %v71 = vld [vmem:[%s45 + $0x48] sm:$0xff]
    %v72 = vld [vmem:[%s45 + $0x50] sm:$0xff]
    %v73 = vld [vmem:[%s45 + $0x58] sm:$0xff]
    %v74 = vld [vmem:[%s45 + $0x60] sm:$0xff]
    %v75 = vld [vmem:[%s45 + $0x68] sm:$0xff]
    %v76 = vld [vmem:[%s45 + $0x70] sm:$0xff]
    %v77 = vld [vmem:[%s45 + $0x78] sm:$0xff]
    %v78 = vld [vmem:[%s45 + $0x80] sm:$0xff]
    %v79 = vld [vmem:[%s45 + $0x88] sm:$0xff]
    %v80 = vld [vmem:[%s45 + $0x90] sm:$0xff]
    %v81 = vld [vmem:[%s45 + $0x98] sm:$0xff]
    %v82 = vld [vmem:[%s45 + $0xa0] sm:$0xff]
    %v83 = vld [vmem:[%s45 + $0xa8] sm:$0xff]
    %v84 = vld [vmem:[%s45 + $0xb0] sm:$0xff]
    %v85 = vld [vmem:[%s45 + $0xb8] sm:$0xff]
    %v86 = vld [vmem:[%s45 + $0xc0] sm:$0xff]
    %v87 = vld [vmem:[%s45 + $0xc8] sm:$0xff]
    %v88 = vld [vmem:[%s45 + $0xd0] sm:$0xff]
    %v89 = vld [vmem:[%s45 + $0xd8] sm:$0xff]
    %v90 = vld [vmem:[%s45 + $0xe0] sm:$0xff]
    %v91 = vld [vmem:[%s45 + $0xe8] sm:$0xff]
    %v92 = vld [vmem:[%s45 + $0xf0] sm:$0xff]
    %v93 = vld [vmem:[%s45 + $0xf8] sm:$0xff]
    %v94 = vld [vmem:[%s45 + $0x100] sm:$0xff]
    %v95 = vld [vmem:[%s45 + $0x108] sm:$0xff]
    %v96 = vld [vmem:[%s45 + $0x110] sm:$0xff]
    %v97 = vld [vmem:[%s45 + $0x118] sm:$0xff]
    %v98 = vld [vmem:[%s45 + $0x120] sm:$0xff]
    %v99 = vld [vmem:[%s45 + $0x128] sm:$0xff]
    %v100 = vld [vmem:[%s45 + $0x130] sm:$0xff]
    %v101 = vld [vmem:[%s45 + $0x138] sm:$0xff]
    %v102 = vld [vmem:[%s45 + $0x140] sm:$0xff]
    %v103 = vld [vmem:[%s45 + $0x148] sm:$0xff]
    %v104 = vld [vmem:[%s45 + $0x150] sm:$0xff]
    %v105 = vld [vmem:[%s45 + $0x158] sm:$0xff]
    %v106 = vld [vmem:[%s45 + $0x160] sm:$0xff]
    %v107 = vld [vmem:[%s45 + $0x168] sm:$0xff]
    %v108 = vld [vmem:[%s45 + $0x170] sm:$0xff]
    %v109 = vld [vmem:[%s45 + $0x178] sm:$0xff]
    %v110 = vld [vmem:[%s45 + $0x180] sm:$0xff]
    %v111 = vld [vmem:[%s45 + $0x188] sm:$0xff]
    %v112 = vld [vmem:[%s45 + $0x190] sm:$0xff]
    %v113 = vld [vmem:[%s45 + $0x198] sm:$0xff]
    %v114 = vld [vmem:[%s45 + $0x1a0] sm:$0xff]
    %v115 = vld [vmem:[%s45 + $0x1a8] sm:$0xff]
    %v116 = vld [vmem:[%s45 + $0x1b0] sm:$0xff]
    %v117 = vld [vmem:[%s45 + $0x1b8] sm:$0xff]
    %v118 = vld [vmem:[%s45 + $0x1c0] sm:$0xff]
    %v119 = vld [vmem:[%s45 + $0x1c8] sm:$0xff]
    %v120 = vld [vmem:[%s45 + $0x1d0] sm:$0xff]
    %v121 = vld [vmem:[%s45 + $0x1d8] sm:$0xff]
    %v122 = vld [vmem:[%s45 + $0x1e0] sm:$0xff]
    %v123 = vld [vmem:[%s45 + $0x1e8] sm:$0xff]
    %v124 = vld [vmem:[%s45 + $0x1f0] sm:$0xff]
    %v125 = vld [vmem:[%s45 + $0x1f8] sm:$0xff]
    %v126 = vld [vmem:[%s45 + $0x200] sm:$0xff]
    %v127 = vld [vmem:[%s45 + $0x208] sm:$0xff]
    %v128 = vld [vmem:[%s45 + $0x210] sm:$0xff]
    %v129 = vld [vmem:[%s45 + $0x218] sm:$0xff]
    %v130 = vld [vmem:[%s45 + $0x220] sm:$0xff]
    %v131 = vld [vmem:[%s45 + $0x228] sm:$0xff]
    %v132 = vld [vmem:[%s45 + $0x230] sm:$0xff]
    %v133 = vld [vmem:[%s45 + $0x238] sm:$0xff]
    %v134 = vld [vmem:[%s45 + $0x240] sm:$0xff]
    %v135 = vld [vmem:[%s45 + $0x248] sm:$0xff]
    %v136 = vld [vmem:[%s45 + $0x250] sm:$0xff]
    %v137 = vld [vmem:[%s45 + $0x258] sm:$0xff]
    %v138 = vld [vmem:[%s45 + $0x260] sm:$0xff]
    %v139 = vld [vmem:[%s45 + $0x268] sm:$0xff]
    %v140 = vld [vmem:[%s45 + $0x270] sm:$0xff]
    %v141 = vld [vmem:[%s45 + $0x278] sm:$0xff]
    %v142 = vld [vmem:[%s45 + $0x280] sm:$0xff]
    %v143 = vld [vmem:[%s45 + $0x288] sm:$0xff]
    %v144 = vld [vmem:[%s45 + $0x290] sm:$0xff]
    %v145 = vld [vmem:[%s45 + $0x298] sm:$0xff]
    %v146 = vld [vmem:[%s45 + $0x2a0] sm:$0xff]
    %v147 = vld [vmem:[%s45 + $0x2a8] sm:$0xff]
    %v148 = vld [vmem:[%s45 + $0x2b0] sm:$0xff]
    %v149 = vld [vmem:[%s45 + $0x2b8] sm:$0xff]
    %v150 = vld [vmem:[%s45 + $0x2c0] sm:$0xff]
    %v151 = vld [vmem:[%s45 + $0x2c8] sm:$0xff]
    %v152 = vld [vmem:[%s45 + $0x2d0] sm:$0xff]
    %v153 = vld [vmem:[%s45 + $0x2d8] sm:$0xff]
    %v154 = vld [vmem:[%s45 + $0x2e0] sm:$0xff]
    %v155 = vld [vmem:[%s45 + $0x2e8] sm:$0xff]
    %v156 = vld [vmem:[%s45 + $0x2f0] sm:$0xff]
    %v157 = vld [vmem:[%s45 + $0x2f8] sm:$0xff]
    %v158 = vld [vmem:[%s45 + $0x300] sm:$0xff]
    %v159 = vld [vmem:[%s45 + $0x308] sm:$0xff]
    %v160 = vld [vmem:[%s45 + $0x310] sm:$0xff]
    %v161 = vld [vmem:[%s45 + $0x318] sm:$0xff]
    %v162 = vld [vmem:[%s45 + $0x320] sm:$0xff]
    %v163 = vld [vmem:[%s45 + $0x328] sm:$0xff]
    %v164 = vld [vmem:[%s45 + $0x330] sm:$0xff]
    %v165 = vld [vmem:[%s45 + $0x338] sm:$0xff]
    %v166 = vld [vmem:[%s45 + $0x340] sm:$0xff]
    %v167 = vld [vmem:[%s45 + $0x348] sm:$0xff]
    %v168 = vld [vmem:[%s45 + $0x350] sm:$0xff]
    %v169 = vld [vmem:[%s45 + $0x358] sm:$0xff]
    %v170 = vld [vmem:[%s45 + $0x360] sm:$0xff]
    %v171 = vld [vmem:[%s45 + $0x368] sm:$0xff]
    %v172 = vld [vmem:[%s45 + $0x370] sm:$0xff]
    %v173 = vld [vmem:[%s45 + $0x378] sm:$0xff]
    %v174 = vld [vmem:[%s45 + $0x380] sm:$0xff]
    %v175 = vld [vmem:[%s45 + $0x388] sm:$0xff]
    %v176 = vld [vmem:[%s45 + $0x390] sm:$0xff]
    %v177 = vld [vmem:[%s45 + $0x398] sm:$0xff]
    %v178 = vld [vmem:[%s45 + $0x3a0] sm:$0xff]
    %v179 = vld [vmem:[%s45 + $0x3a8] sm:$0xff]
    %v180 = vld [vmem:[%s45 + $0x3b0] sm:$0xff]
    %v181 = vld [vmem:[%s45 + $0x3b8] sm:$0xff]
    %v182 = vld [vmem:[%s45 + $0x3c0] sm:$0xff]
    %v183 = vld [vmem:[%s45 + $0x3c8] sm:$0xff]
    %v184 = vld [vmem:[%s45 + $0x3d0] sm:$0xff]
    %v185 = vld [vmem:[%s45 + $0x3d8] sm:$0xff]
    %v186 = vld [vmem:[%s45 + $0x3e0] sm:$0xff]
    %v187 = vld [vmem:[%s53] sm:$0xff]
    %v188 = vld [vmem:[%s53 + $0x8] sm:$0xff]
    %v189 = vld [vmem:[%s53 + $0x10] sm:$0xff]
    %v190 = vld [vmem:[%s53 + $0x18] sm:$0xff]
    %v191 = vld [vmem:[%s53 + $0x20] sm:$0xff]
    %v192 = vld [vmem:[%s53 + $0x28] sm:$0xff]
    %v193 = vld [vmem:[%s53 + $0x30] sm:$0xff]
    %v194 = vld [vmem:[%s53 + $0x38] sm:$0xff]
    %v195 = vld [vmem:[%s53 + $0x40] sm:$0xff]
    %v196 = vld [vmem:[%s53 + $0x48] sm:$0xff]
    %v197 = vld [vmem:[%s53 + $0x50] sm:$0xff]
    %v198 = vld [vmem:[%s53 + $0x58] sm:$0xff]
    %v199 = vld [vmem:[%s53 + $0x60] sm:$0xff]
    %v200 = vld [vmem:[%s53 + $0x68] sm:$0xff]
    %v201 = vld [vmem:[%s53 + $0x70] sm:$0xff]
    %v202 = vld [vmem:[%s53 + $0x78] sm:$0xff]
    %v203 = vld [vmem:[%s53 + $0x80] sm:$0xff]
    %v204 = vld [vmem:[%s53 + $0x88] sm:$0xff]
    %v205 = vld [vmem:[%s53 + $0x90] sm:$0xff]
    %v206 = vld [vmem:[%s53 + $0x98] sm:$0xff]
    %v207 = vld [vmem:[%s53 + $0xa0] sm:$0xff]
    %v208 = vld [vmem:[%s53 + $0xa8] sm:$0xff]
    %v209 = vld [vmem:[%s53 + $0xb0] sm:$0xff]
    %v210 = vld [vmem:[%s53 + $0xb8] sm:$0xff]
    %v211 = vld [vmem:[%s53 + $0xc0] sm:$0xff]
    %v212 = vld [vmem:[%s53 + $0xc8] sm:$0xff]
    %v213 = vld [vmem:[%s53 + $0xd0] sm:$0xff]
    %v214 = vld [vmem:[%s53 + $0xd8] sm:$0xff]
    %v215 = vld [vmem:[%s53 + $0xe0] sm:$0xff]
    %v216 = vld [vmem:[%s53 + $0xe8] sm:$0xff]
    %v217 = vld [vmem:[%s53 + $0xf0] sm:$0xff]
    %v218 = vld [vmem:[%s53 + $0xf8] sm:$0xff]
    %v219 = vld [vmem:[%s53 + $0x100] sm:$0xff]
    %v220 = vld [vmem:[%s53 + $0x108] sm:$0xff]
    %v221 = vld [vmem:[%s53 + $0x110] sm:$0xff]
    %v222 = vld [vmem:[%s53 + $0x118] sm:$0xff]
    %v223 = vld [vmem:[%s53 + $0x120] sm:$0xff]
    %v224 = vld [vmem:[%s53 + $0x128] sm:$0xff]
    %v225 = vld [vmem:[%s53 + $0x130] sm:$0xff]
    %v226 = vld [vmem:[%s53 + $0x138] sm:$0xff]
    %v227 = vld [vmem:[%s53 + $0x140] sm:$0xff]
    %v228 = vld [vmem:[%s53 + $0x148] sm:$0xff]
    %v229 = vld [vmem:[%s53 + $0x150] sm:$0xff]
    %v230 = vld [vmem:[%s53 + $0x158] sm:$0xff]
    %v231 = vld [vmem:[%s53 + $0x160] sm:$0xff]
    %v232 = vld [vmem:[%s53 + $0x168] sm:$0xff]
    %v233 = vld [vmem:[%s53 + $0x170] sm:$0xff]
    %v234 = vld [vmem:[%s53 + $0x178] sm:$0xff]
    %v235 = vld [vmem:[%s53 + $0x180] sm:$0xff]
    %v236 = vld [vmem:[%s53 + $0x188] sm:$0xff]
    %v237 = vld [vmem:[%s53 + $0x190] sm:$0xff]
    %v238 = vld [vmem:[%s53 + $0x198] sm:$0xff]
    %v239 = vld [vmem:[%s53 + $0x1a0] sm:$0xff]
    %v240 = vld [vmem:[%s53 + $0x1a8] sm:$0xff]
    %v241 = vld [vmem:[%s53 + $0x1b0] sm:$0xff]
    %v242 = vld [vmem:[%s53 + $0x1b8] sm:$0xff]
    %v243 = vld [vmem:[%s53 + $0x1c0] sm:$0xff]
    %v244 = vld [vmem:[%s53 + $0x1c8] sm:$0xff]
    %v245 = vld [vmem:[%s53 + $0x1d0] sm:$0xff]
    %v246 = vld [vmem:[%s53 + $0x1d8] sm:$0xff]
    %v247 = vld [vmem:[%s53 + $0x1e0] sm:$0xff]
    %v248 = vld [vmem:[%s53 + $0x1e8] sm:$0xff]
    %v249 = vld [vmem:[%s53 + $0x1f0] sm:$0xff]
    %v250 = vld [vmem:[%s53 + $0x1f8] sm:$0xff]
    %v251 = vld [vmem:[%s53 + $0x200] sm:$0xff]
    %v252 = vld [vmem:[%s53 + $0x208] sm:$0xff]
    %v253 = vld [vmem:[%s53 + $0x210] sm:$0xff]
    %v254 = vld [vmem:[%s53 + $0x218] sm:$0xff]
    %v255 = vld [vmem:[%s53 + $0x220] sm:$0xff]
    %v256 = vld [vmem:[%s53 + $0x228] sm:$0xff]
    %v257 = vld [vmem:[%s53 + $0x230] sm:$0xff]
    %v258 = vld [vmem:[%s53 + $0x238] sm:$0xff]
    %v259 = vld [vmem:[%s53 + $0x240] sm:$0xff]
    %v260 = vld [vmem:[%s53 + $0x248] sm:$0xff]
    %v261 = vld [vmem:[%s53 + $0x250] sm:$0xff]
    %v262 = vld [vmem:[%s53 + $0x258] sm:$0xff]
    %v263 = vld [vmem:[%s53 + $0x260] sm:$0xff]
    %v264 = vld [vmem:[%s53 + $0x268] sm:$0xff]
    %v265 = vld [vmem:[%s53 + $0x270] sm:$0xff]
    %v266 = vld [vmem:[%s53 + $0x278] sm:$0xff]
    %v267 = vld [vmem:[%s53 + $0x280] sm:$0xff]
    %v268 = vld [vmem:[%s53 + $0x288] sm:$0xff]
    %v269 = vld [vmem:[%s53 + $0x290] sm:$0xff]
    %v270 = vld [vmem:[%s53 + $0x298] sm:$0xff]
    %v271 = vld [vmem:[%s53 + $0x2a0] sm:$0xff]
    %v272 = vld [vmem:[%s53 + $0x2a8] sm:$0xff]
    %v273 = vld [vmem:[%s53 + $0x2b0] sm:$0xff]
    %v274 = vld [vmem:[%s53 + $0x2b8] sm:$0xff]
    %v275 = vld [vmem:[%s53 + $0x2c0] sm:$0xff]
    %v276 = vld [vmem:[%s53 + $0x2c8] sm:$0xff]
    %v277 = vld [vmem:[%s53 + $0x2d0] sm:$0xff]
    %v278 = vld [vmem:[%s53 + $0x2d8] sm:$0xff]
    %v279 = vld [vmem:[%s53 + $0x2e0] sm:$0xff]
    %v280 = vld [vmem:[%s53 + $0x2e8] sm:$0xff]
    %v281 = vld [vmem:[%s53 + $0x2f0] sm:$0xff]
    %v282 = vld [vmem:[%s53 + $0x2f8] sm:$0xff]
    %v283 = vld [vmem:[%s53 + $0x300] sm:$0xff]
    %v284 = vld [vmem:[%s53 + $0x308] sm:$0xff]
    %v285 = vld [vmem:[%s53 + $0x310] sm:$0xff]
    %v286 = vld [vmem:[%s53 + $0x318] sm:$0xff]
    %v287 = vld [vmem:[%s53 + $0x320] sm:$0xff]
    %v288 = vld [vmem:[%s53 + $0x328] sm:$0xff]
    %v289 = vld [vmem:[%s53 + $0x330] sm:$0xff]
    %v290 = vld [vmem:[%s53 + $0x338] sm:$0xff]
    %v291 = vld [vmem:[%s53 + $0x340] sm:$0xff]
    %v292 = vld [vmem:[%s53 + $0x348] sm:$0xff]
    %v293 = vld [vmem:[%s53 + $0x350] sm:$0xff]
    %v294 = vld [vmem:[%s53 + $0x358] sm:$0xff]
    %v295 = vld [vmem:[%s53 + $0x360] sm:$0xff]
    %v296 = vld [vmem:[%s53 + $0x368] sm:$0xff]
    %v297 = vld [vmem:[%s53 + $0x370] sm:$0xff]
    %v298 = vld [vmem:[%s53 + $0x378] sm:$0xff]
    %v299 = vld [vmem:[%s53 + $0x380] sm:$0xff]
    %v300 = vld [vmem:[%s53 + $0x388] sm:$0xff]
    %v301 = vld [vmem:[%s53 + $0x390] sm:$0xff]
    %v302 = vld [vmem:[%s53 + $0x398] sm:$0xff]
    %v303 = vld [vmem:[%s53 + $0x3a0] sm:$0xff]
    %v304 = vld [vmem:[%s53 + $0x3a8] sm:$0xff]
    %v305 = vld [vmem:[%s53 + $0x3b0] sm:$0xff]
    %v306 = vld [vmem:[%s53 + $0x3b8] sm:$0xff]
    %v307 = vld [vmem:[%s53 + $0x3c0] sm:$0xff]
    %v308 = vld [vmem:[%s53 + $0x3c8] sm:$0xff]
    %v309 = vld [vmem:[%s53 + $0x3d0] sm:$0xff]
    %v310 = vld [vmem:[%s53 + $0x3d8] sm:$0xff]
    %v311 = vld [vmem:[%s53 + $0x3e0] sm:$0xff]
    %vm312 = vcmask 80896
    %v313 = vsel %vm312, %v62, -inf
    %314 = vmax.xlane.f32.xlu0 %v313
    %v315 = vpop.xlane.xlu0 %314
    %v316 = vsel %vm312, %v63, -inf
    %317 = vmax.xlane.f32.xlu0 %v316
    %v318 = vpop.xlane.xlu0 %317
    %v319 = vsel %vm312, %v64, -inf
    %320 = vmax.xlane.f32.xlu0 %v319
    %v321 = vpop.xlane.xlu0 %320
    %v322 = vsel %vm312, %v65, -inf
    %323 = vmax.xlane.f32.xlu0 %v322
    %v324 = vpop.xlane.xlu0 %323
    %v325 = vsel %vm312, %v66, -inf
    %326 = vmax.xlane.f32.xlu0 %v325
    %v327 = vpop.xlane.xlu0 %326
    %v328 = vsel %vm312, %v67, -inf
    %329 = vmax.xlane.f32.xlu0 %v328
    %v330 = vpop.xlane.xlu0 %329
    %v331 = vsel %vm312, %v68, -inf
    %332 = vmax.xlane.f32.xlu0 %v331
    %v333 = vpop.xlane.xlu0 %332
    %v334 = vsel %vm312, %v69, -inf
    %335 = vmax.xlane.f32.xlu0 %v334
    %v336 = vpop.xlane.xlu0 %335
    %v337 = vsel %vm312, %v70, -inf
    %338 = vmax.xlane.f32.xlu0 %v337
    %v339 = vpop.xlane.xlu0 %338
    %v340 = vsel %vm312, %v71, -inf
    %341 = vmax.xlane.f32.xlu0 %v340
    %v342 = vpop.xlane.xlu0 %341
    %v343 = vsel %vm312, %v72, -inf
    %344 = vmax.xlane.f32.xlu0 %v343
    %v345 = vpop.xlane.xlu0 %344
    %v346 = vsel %vm312, %v73, -inf
    %347 = vmax.xlane.f32.xlu0 %v346
    %v348 = vpop.xlane.xlu0 %347
    %v349 = vsel %vm312, %v74, -inf
    %350 = vmax.xlane.f32.xlu0 %v349
    %v351 = vpop.xlane.xlu0 %350
    %v352 = vsel %vm312, %v75, -inf
    %353 = vmax.xlane.f32.xlu0 %v352
    %v354 = vpop.xlane.xlu0 %353
    %v355 = vsel %vm312, %v76, -inf
    %356 = vmax.xlane.f32.xlu0 %v355
    %v357 = vpop.xlane.xlu0 %356
    %v358 = vsel %vm312, %v77, -inf
    %359 = vmax.xlane.f32.xlu0 %v358
    %v360 = vpop.xlane.xlu0 %359
    %v361 = vsel %vm312, %v78, -inf
    %362 = vmax.xlane.f32.xlu0 %v361
    %v363 = vpop.xlane.xlu0 %362
    %v364 = vsel %vm312, %v79, -inf
    %365 = vmax.xlane.f32.xlu0 %v364
    %v366 = vpop.xlane.xlu0 %365
    %v367 = vsel %vm312, %v80, -inf
    %368 = vmax.xlane.f32.xlu0 %v367
    %v369 = vpop.xlane.xlu0 %368
    %v370 = vsel %vm312, %v81, -inf
    %371 = vmax.xlane.f32.xlu0 %v370
    %v372 = vpop.xlane.xlu0 %371
    %v373 = vsel %vm312, %v82, -inf
    %374 = vmax.xlane.f32.xlu0 %v373
    %v375 = vpop.xlane.xlu0 %374
    %v376 = vsel %vm312, %v83, -inf
    %377 = vmax.xlane.f32.xlu0 %v376
    %v378 = vpop.xlane.xlu0 %377
    %v379 = vsel %vm312, %v84, -inf
    %380 = vmax.xlane.f32.xlu0 %v379
    %v381 = vpop.xlane.xlu0 %380
    %v382 = vsel %vm312, %v85, -inf
    %383 = vmax.xlane.f32.xlu0 %v382
    %v384 = vpop.xlane.xlu0 %383
    %v385 = vsel %vm312, %v86, -inf
    %386 = vmax.xlane.f32.xlu0 %v385
    %v387 = vpop.xlane.xlu0 %386
    %v388 = vsel %vm312, %v87, -inf
    %389 = vmax.xlane.f32.xlu0 %v388
    %v390 = vpop.xlane.xlu0 %389
    %v391 = vsel %vm312, %v88, -inf
    %392 = vmax.xlane.f32.xlu0 %v391
    %v393 = vpop.xlane.xlu0 %392
    %v394 = vsel %vm312, %v89, -inf
    %395 = vmax.xlane.f32.xlu0 %v394
    %v396 = vpop.xlane.xlu0 %395
    %v397 = vsel %vm312, %v90, -inf
    %398 = vmax.xlane.f32.xlu0 %v397
    %v399 = vpop.xlane.xlu0 %398
    %v400 = vsel %vm312, %v91, -inf
    %401 = vmax.xlane.f32.xlu0 %v400
    %v402 = vpop.xlane.xlu0 %401
    %v403 = vsel %vm312, %v92, -inf
    %404 = vmax.xlane.f32.xlu0 %v403
    %v405 = vpop.xlane.xlu0 %404
    %v406 = vsel %vm312, %v93, -inf
    %407 = vmax.xlane.f32.xlu0 %v406
    %v408 = vpop.xlane.xlu0 %407
    %v409 = vsel %vm312, %v94, -inf
    %410 = vmax.xlane.f32.xlu0 %v409
    %v411 = vpop.xlane.xlu0 %410
    %v412 = vsel %vm312, %v95, -inf
    %413 = vmax.xlane.f32.xlu0 %v412
    %v414 = vpop.xlane.xlu0 %413
    %v415 = vsel %vm312, %v96, -inf
    %416 = vmax.xlane.f32.xlu0 %v415
    %v417 = vpop.xlane.xlu0 %416
    %v418 = vsel %vm312, %v97, -inf
    %419 = vmax.xlane.f32.xlu0 %v418
    %v420 = vpop.xlane.xlu0 %419
    %v421 = vsel %vm312, %v98, -inf
    %422 = vmax.xlane.f32.xlu0 %v421
    %v423 = vpop.xlane.xlu0 %422
    %v424 = vsel %vm312, %v99, -inf
    %425 = vmax.xlane.f32.xlu0 %v424
    %v426 = vpop.xlane.xlu0 %425
    %v427 = vsel %vm312, %v100, -inf
    %428 = vmax.xlane.f32.xlu0 %v427
    %v429 = vpop.xlane.xlu0 %428
    %v430 = vsel %vm312, %v101, -inf
    %431 = vmax.xlane.f32.xlu0 %v430
    %v432 = vpop.xlane.xlu0 %431
    %v433 = vsel %vm312, %v102, -inf
    %434 = vmax.xlane.f32.xlu0 %v433
    %v435 = vpop.xlane.xlu0 %434
    %v436 = vsel %vm312, %v103, -inf
    %437 = vmax.xlane.f32.xlu0 %v436
    %v438 = vpop.xlane.xlu0 %437
    %v439 = vsel %vm312, %v104, -inf
    %440 = vmax.xlane.f32.xlu0 %v439
    %v441 = vpop.xlane.xlu0 %440
    %v442 = vsel %vm312, %v105, -inf
    %443 = vmax.xlane.f32.xlu0 %v442
    %v444 = vpop.xlane.xlu0 %443
    %v445 = vsel %vm312, %v106, -inf
    %446 = vmax.xlane.f32.xlu0 %v445
    %v447 = vpop.xlane.xlu0 %446
    %v448 = vsel %vm312, %v107, -inf
    %449 = vmax.xlane.f32.xlu0 %v448
    %v450 = vpop.xlane.xlu0 %449
    %v451 = vsel %vm312, %v108, -inf
    %452 = vmax.xlane.f32.xlu0 %v451
    %v453 = vpop.xlane.xlu0 %452
    %v454 = vsel %vm312, %v109, -inf
    %455 = vmax.xlane.f32.xlu0 %v454
    %v456 = vpop.xlane.xlu0 %455
    %v457 = vsel %vm312, %v110, -inf
    %458 = vmax.xlane.f32.xlu0 %v457
    %v459 = vpop.xlane.xlu0 %458
    %v460 = vsel %vm312, %v111, -inf
    %461 = vmax.xlane.f32.xlu0 %v460
    %v462 = vpop.xlane.xlu0 %461
    %v463 = vsel %vm312, %v112, -inf
    %464 = vmax.xlane.f32.xlu0 %v463
    %v465 = vpop.xlane.xlu0 %464
    %v466 = vsel %vm312, %v113, -inf
    %467 = vmax.xlane.f32.xlu0 %v466
    %v468 = vpop.xlane.xlu0 %467
    %v469 = vsel %vm312, %v114, -inf
    %470 = vmax.xlane.f32.xlu0 %v469
    %v471 = vpop.xlane.xlu0 %470
    %v472 = vsel %vm312, %v115, -inf
    %473 = vmax.xlane.f32.xlu0 %v472
    %v474 = vpop.xlane.xlu0 %473
    %v475 = vsel %vm312, %v116, -inf
    %476 = vmax.xlane.f32.xlu0 %v475
    %v477 = vpop.xlane.xlu0 %476
    %v478 = vsel %vm312, %v117, -inf
    %479 = vmax.xlane.f32.xlu0 %v478
    %v480 = vpop.xlane.xlu0 %479
    %v481 = vsel %vm312, %v118, -inf
    %482 = vmax.xlane.f32.xlu0 %v481
    %v483 = vpop.xlane.xlu0 %482
    %v484 = vsel %vm312, %v119, -inf
    %485 = vmax.xlane.f32.xlu0 %v484
    %v486 = vpop.xlane.xlu0 %485
    %v487 = vsel %vm312, %v120, -inf
    %488 = vmax.xlane.f32.xlu0 %v487
    %v489 = vpop.xlane.xlu0 %488
    %v490 = vsel %vm312, %v121, -inf
    %491 = vmax.xlane.f32.xlu0 %v490
    %v492 = vpop.xlane.xlu0 %491
    %v493 = vsel %vm312, %v122, -inf
    %494 = vmax.xlane.f32.xlu0 %v493
    %v495 = vpop.xlane.xlu0 %494
    %v496 = vsel %vm312, %v123, -inf
    %497 = vmax.xlane.f32.xlu0 %v496
    %v498 = vpop.xlane.xlu0 %497
    %v499 = vsel %vm312, %v124, -inf
    %500 = vmax.xlane.f32.xlu0 %v499
    %v501 = vpop.xlane.xlu0 %500
    %v502 = vsel %vm312, %v125, -inf
    %503 = vmax.xlane.f32.xlu0 %v502
    %v504 = vpop.xlane.xlu0 %503
    %v505 = vsel %vm312, %v126, -inf
    %506 = vmax.xlane.f32.xlu0 %v505
    %v507 = vpop.xlane.xlu0 %506
    %v508 = vsel %vm312, %v127, -inf
    %509 = vmax.xlane.f32.xlu0 %v508
    %v510 = vpop.xlane.xlu0 %509
    %v511 = vsel %vm312, %v128, -inf
    %512 = vmax.xlane.f32.xlu0 %v511
    %v513 = vpop.xlane.xlu0 %512
    %v514 = vsel %vm312, %v129, -inf
    %515 = vmax.xlane.f32.xlu0 %v514
    %v516 = vpop.xlane.xlu0 %515
    %v517 = vsel %vm312, %v130, -inf
    %518 = vmax.xlane.f32.xlu0 %v517
    %v519 = vpop.xlane.xlu0 %518
    %v520 = vsel %vm312, %v131, -inf
    %521 = vmax.xlane.f32.xlu0 %v520
    %v522 = vpop.xlane.xlu0 %521
    %v523 = vsel %vm312, %v132, -inf
    %524 = vmax.xlane.f32.xlu0 %v523
    %v525 = vpop.xlane.xlu0 %524
    %v526 = vsel %vm312, %v133, -inf
    %527 = vmax.xlane.f32.xlu0 %v526
    %v528 = vpop.xlane.xlu0 %527
    %v529 = vsel %vm312, %v134, -inf
    %530 = vmax.xlane.f32.xlu0 %v529
    %v531 = vpop.xlane.xlu0 %530
    %v532 = vsel %vm312, %v135, -inf
    %533 = vmax.xlane.f32.xlu0 %v532
    %v534 = vpop.xlane.xlu0 %533
    %v535 = vsel %vm312, %v136, -inf
    %536 = vmax.xlane.f32.xlu0 %v535
    %v537 = vpop.xlane.xlu0 %536
    %v538 = vsel %vm312, %v137, -inf
    %539 = vmax.xlane.f32.xlu0 %v538
    %v540 = vpop.xlane.xlu0 %539
    %v541 = vsel %vm312, %v138, -inf
    %542 = vmax.xlane.f32.xlu0 %v541
    %v543 = vpop.xlane.xlu0 %542
    %v544 = vsel %vm312, %v139, -inf
    %545 = vmax.xlane.f32.xlu0 %v544
    %v546 = vpop.xlane.xlu0 %545
    %v547 = vsel %vm312, %v140, -inf
    %548 = vmax.xlane.f32.xlu0 %v547
    %v549 = vpop.xlane.xlu0 %548
    %v550 = vsel %vm312, %v141, -inf
    %551 = vmax.xlane.f32.xlu0 %v550
    %v552 = vpop.xlane.xlu0 %551
    %v553 = vsel %vm312, %v142, -inf
    %554 = vmax.xlane.f32.xlu0 %v553
    %v555 = vpop.xlane.xlu0 %554
    %v556 = vsel %vm312, %v143, -inf
    %557 = vmax.xlane.f32.xlu0 %v556
    %v558 = vpop.xlane.xlu0 %557
    %v559 = vsel %vm312, %v144, -inf
    %560 = vmax.xlane.f32.xlu0 %v559
    %v561 = vpop.xlane.xlu0 %560
    %v562 = vsel %vm312, %v145, -inf
    %563 = vmax.xlane.f32.xlu0 %v562
    %v564 = vpop.xlane.xlu0 %563
    %v565 = vsel %vm312, %v146, -inf
    %566 = vmax.xlane.f32.xlu0 %v565
    %v567 = vpop.xlane.xlu0 %566
    %v568 = vsel %vm312, %v147, -inf
    %569 = vmax.xlane.f32.xlu0 %v568
    %v570 = vpop.xlane.xlu0 %569
    %v571 = vsel %vm312, %v148, -inf
    %572 = vmax.xlane.f32.xlu0 %v571
    %v573 = vpop.xlane.xlu0 %572
    %v574 = vsel %vm312, %v149, -inf
    %575 = vmax.xlane.f32.xlu0 %v574
    %v576 = vpop.xlane.xlu0 %575
    %v577 = vsel %vm312, %v150, -inf
    %578 = vmax.xlane.f32.xlu0 %v577
    %v579 = vpop.xlane.xlu0 %578
    %v580 = vsel %vm312, %v151, -inf
    %581 = vmax.xlane.f32.xlu0 %v580
    %v582 = vpop.xlane.xlu0 %581
    %v583 = vsel %vm312, %v152, -inf
    %584 = vmax.xlane.f32.xlu0 %v583
    %v585 = vpop.xlane.xlu0 %584
    %v586 = vsel %vm312, %v153, -inf
    %587 = vmax.xlane.f32.xlu0 %v586
    %v588 = vpop.xlane.xlu0 %587
    %v589 = vsel %vm312, %v154, -inf
    %590 = vmax.xlane.f32.xlu0 %v589
    %v591 = vpop.xlane.xlu0 %590
    %v592 = vsel %vm312, %v155, -inf
    %593 = vmax.xlane.f32.xlu0 %v592
    %v594 = vpop.xlane.xlu0 %593
    %v595 = vsel %vm312, %v156, -inf
    %596 = vmax.xlane.f32.xlu0 %v595
    %v597 = vpop.xlane.xlu0 %596
    %v598 = vsel %vm312, %v157, -inf
    %599 = vmax.xlane.f32.xlu0 %v598
    %v600 = vpop.xlane.xlu0 %599
    %v601 = vsel %vm312, %v158, -inf
    %602 = vmax.xlane.f32.xlu0 %v601
    %v603 = vpop.xlane.xlu0 %602
    %v604 = vsel %vm312, %v159, -inf
    %605 = vmax.xlane.f32.xlu0 %v604
    %v606 = vpop.xlane.xlu0 %605
    %v607 = vsel %vm312, %v160, -inf
    %608 = vmax.xlane.f32.xlu0 %v607
    %v609 = vpop.xlane.xlu0 %608
    %v610 = vsel %vm312, %v161, -inf
    %611 = vmax.xlane.f32.xlu0 %v610
    %v612 = vpop.xlane.xlu0 %611
    %v613 = vsel %vm312, %v162, -inf
    %614 = vmax.xlane.f32.xlu0 %v613
    %v615 = vpop.xlane.xlu0 %614
    %v616 = vsel %vm312, %v163, -inf
    %617 = vmax.xlane.f32.xlu0 %v616
    %v618 = vpop.xlane.xlu0 %617
    %v619 = vsel %vm312, %v164, -inf
    %620 = vmax.xlane.f32.xlu0 %v619
    %v621 = vpop.xlane.xlu0 %620
    %v622 = vsel %vm312, %v165, -inf
    %623 = vmax.xlane.f32.xlu0 %v622
    %v624 = vpop.xlane.xlu0 %623
    %v625 = vsel %vm312, %v166, -inf
    %626 = vmax.xlane.f32.xlu0 %v625
    %v627 = vpop.xlane.xlu0 %626
    %v628 = vsel %vm312, %v167, -inf
    %629 = vmax.xlane.f32.xlu0 %v628
    %v630 = vpop.xlane.xlu0 %629
    %v631 = vsel %vm312, %v168, -inf
    %632 = vmax.xlane.f32.xlu0 %v631
    %v633 = vpop.xlane.xlu0 %632
    %v634 = vsel %vm312, %v169, -inf
    %635 = vmax.xlane.f32.xlu0 %v634
    %v636 = vpop.xlane.xlu0 %635
    %v637 = vsel %vm312, %v170, -inf
    %638 = vmax.xlane.f32.xlu0 %v637
    %v639 = vpop.xlane.xlu0 %638
    %v640 = vsel %vm312, %v171, -inf
    %641 = vmax.xlane.f32.xlu0 %v640
    %v642 = vpop.xlane.xlu0 %641
    %v643 = vsel %vm312, %v172, -inf
    %644 = vmax.xlane.f32.xlu0 %v643
    %v645 = vpop.xlane.xlu0 %644
    %v646 = vsel %vm312, %v173, -inf
    %647 = vmax.xlane.f32.xlu0 %v646
    %v648 = vpop.xlane.xlu0 %647
    %v649 = vsel %vm312, %v174, -inf
    %650 = vmax.xlane.f32.xlu0 %v649
    %v651 = vpop.xlane.xlu0 %650
    %v652 = vsel %vm312, %v175, -inf
    %653 = vmax.xlane.f32.xlu0 %v652
    %v654 = vpop.xlane.xlu0 %653
    %v655 = vsel %vm312, %v176, -inf
    %656 = vmax.xlane.f32.xlu0 %v655
    %v657 = vpop.xlane.xlu0 %656
    %v658 = vsel %vm312, %v177, -inf
    %659 = vmax.xlane.f32.xlu0 %v658
    %v660 = vpop.xlane.xlu0 %659
    %v661 = vsel %vm312, %v178, -inf
    %662 = vmax.xlane.f32.xlu0 %v661
    %v663 = vpop.xlane.xlu0 %662
    %v664 = vsel %vm312, %v179, -inf
    %665 = vmax.xlane.f32.xlu0 %v664
    %v666 = vpop.xlane.xlu0 %665
    %v667 = vsel %vm312, %v180, -inf
    %668 = vmax.xlane.f32.xlu0 %v667
    %v669 = vpop.xlane.xlu0 %668
    %v670 = vsel %vm312, %v181, -inf
    %671 = vmax.xlane.f32.xlu0 %v670
    %v672 = vpop.xlane.xlu0 %671
    %v673 = vsel %vm312, %v182, -inf
    %674 = vmax.xlane.f32.xlu0 %v673
    %v675 = vpop.xlane.xlu0 %674
    %v676 = vsel %vm312, %v183, -inf
    %677 = vmax.xlane.f32.xlu0 %v676
    %v678 = vpop.xlane.xlu0 %677
    %v679 = vsel %vm312, %v184, -inf
    %680 = vmax.xlane.f32.xlu0 %v679
    %v681 = vpop.xlane.xlu0 %680
    %v682 = vsel %vm312, %v185, -inf
    %683 = vmax.xlane.f32.xlu0 %v682
    %v684 = vpop.xlane.xlu0 %683
    %v685 = vsel %vm312, %v186, -inf
    %686 = vmax.xlane.f32.xlu0 %v685
    %v687 = vpop.xlane.xlu0 %686
    %v688 = vsub.f32 %v62, %v315
    %v689 = vsub.f32 %v63, %v318
    %v690 = vsub.f32 %v64, %v321
    %v691 = vsub.f32 %v65, %v324
    %v692 = vsub.f32 %v66, %v327
    %v693 = vsub.f32 %v67, %v330
    %v694 = vsub.f32 %v68, %v333
    %v695 = vsub.f32 %v69, %v336
    %v696 = vsub.f32 %v70, %v339
    %v697 = vsub.f32 %v71, %v342
    %v698 = vsub.f32 %v72, %v345
    %v699 = vsub.f32 %v73, %v348
    %v700 = vsub.f32 %v74, %v351
    %v701 = vsub.f32 %v75, %v354
    %v702 = vsub.f32 %v76, %v357
    %v703 = vsub.f32 %v77, %v360
    %v704 = vsub.f32 %v78, %v363
    %v705 = vsub.f32 %v79, %v366
    %v706 = vsub.f32 %v80, %v369
    %v707 = vsub.f32 %v81, %v372
    %v708 = vsub.f32 %v82, %v375
    %v709 = vsub.f32 %v83, %v378
    %v710 = vsub.f32 %v84, %v381
    %v711 = vsub.f32 %v85, %v384
    %v712 = vsub.f32 %v86, %v387
    %v713 = vsub.f32 %v87, %v390
    %v714 = vsub.f32 %v88, %v393
    %v715 = vsub.f32 %v89, %v396
    %v716 = vsub.f32 %v90, %v399
    %v717 = vsub.f32 %v91, %v402
    %v718 = vsub.f32 %v92, %v405
    %v719 = vsub.f32 %v93, %v408
    %v720 = vsub.f32 %v94, %v411
    %v721 = vsub.f32 %v95, %v414
    %v722 = vsub.f32 %v96, %v417
    %v723 = vsub.f32 %v97, %v420
    %v724 = vsub.f32 %v98, %v423
    %v725 = vsub.f32 %v99, %v426
    %v726 = vsub.f32 %v100, %v429
    %v727 = vsub.f32 %v101, %v432
    %v728 = vsub.f32 %v102, %v435
    %v729 = vsub.f32 %v103, %v438
    %v730 = vsub.f32 %v104, %v441
    %v731 = vsub.f32 %v105, %v444
    %v732 = vsub.f32 %v106, %v447
    %v733 = vsub.f32 %v107, %v450
    %v734 = vsub.f32 %v108, %v453
    %v735 = vsub.f32 %v109, %v456
    %v736 = vsub.f32 %v110, %v459
    %v737 = vsub.f32 %v111, %v462
    %v738 = vsub.f32 %v112, %v465
    %v739 = vsub.f32 %v113, %v468
    %v740 = vsub.f32 %v114, %v471
    %v741 = vsub.f32 %v115, %v474
    %v742 = vsub.f32 %v116, %v477
    %v743 = vsub.f32 %v117, %v480
    %v744 = vsub.f32 %v118, %v483
    %v745 = vsub.f32 %v119, %v486
    %v746 = vsub.f32 %v120, %v489
    %v747 = vsub.f32 %v121, %v492
    %v748 = vsub.f32 %v122, %v495
    %v749 = vsub.f32 %v123, %v498
    %v750 = vsub.f32 %v124, %v501
    %v751 = vsub.f32 %v125, %v504
    %v752 = vsub.f32 %v126, %v507
    %v753 = vsub.f32 %v127, %v510
    %v754 = vsub.f32 %v128, %v513
    %v755 = vsub.f32 %v129, %v516
    %v756 = vsub.f32 %v130, %v519
    %v757 = vsub.f32 %v131, %v522
    %v758 = vsub.f32 %v132, %v525
    %v759 = vsub.f32 %v133, %v528
    %v760 = vsub.f32 %v134, %v531
    %v761 = vsub.f32 %v135, %v534
    %v762 = vsub.f32 %v136, %v537
    %v763 = vsub.f32 %v137, %v540
    %v764 = vsub.f32 %v138, %v543
    %v765 = vsub.f32 %v139, %v546
    %v766 = vsub.f32 %v140, %v549
    %v767 = vsub.f32 %v141, %v552
    %v768 = vsub.f32 %v142, %v555
    %v769 = vsub.f32 %v143, %v558
    %v770 = vsub.f32 %v144, %v561
    %v771 = vsub.f32 %v145, %v564
    %v772 = vsub.f32 %v146, %v567
    %v773 = vsub.f32 %v147, %v570
    %v774 = vsub.f32 %v148, %v573
    %v775 = vsub.f32 %v149, %v576
    %v776 = vsub.f32 %v150, %v579
    %v777 = vsub.f32 %v151, %v582
    %v778 = vsub.f32 %v152, %v585
    %v779 = vsub.f32 %v153, %v588
    %v780 = vsub.f32 %v154, %v591
    %v781 = vsub.f32 %v155, %v594
    %v782 = vsub.f32 %v156, %v597
    %v783 = vsub.f32 %v157, %v600
    %v784 = vsub.f32 %v158, %v603
    %v785 = vsub.f32 %v159, %v606
    %v786 = vsub.f32 %v160, %v609
    %v787 = vsub.f32 %v161, %v612
    %v788 = vsub.f32 %v162, %v615
    %v789 = vsub.f32 %v163, %v618
    %v790 = vsub.f32 %v164, %v621
    %v791 = vsub.f32 %v165, %v624
    %v792 = vsub.f32 %v166, %v627
    %v793 = vsub.f32 %v167, %v630
    %v794 = vsub.f32 %v168, %v633
    %v795 = vsub.f32 %v169, %v636
    %v796 = vsub.f32 %v170, %v639
    %v797 = vsub.f32 %v171, %v642
    %v798 = vsub.f32 %v172, %v645
    %v799 = vsub.f32 %v173, %v648
    %v800 = vsub.f32 %v174, %v651
    %v801 = vsub.f32 %v175, %v654
    %v802 = vsub.f32 %v176, %v657
    %v803 = vsub.f32 %v177, %v660
    %v804 = vsub.f32 %v178, %v663
    %v805 = vsub.f32 %v179, %v666
    %v806 = vsub.f32 %v180, %v669
    %v807 = vsub.f32 %v181, %v672
    %v808 = vsub.f32 %v182, %v675
    %v809 = vsub.f32 %v183, %v678
    %v810 = vsub.f32 %v184, %v681
    %v811 = vsub.f32 %v185, %v684
    %v812 = vsub.f32 %v186, %v687
    %v813 = vmul.f32 %v688, 1.442695
    %v814 = vpow.pop %v813
    %v815 = vmul.f32 %v689, 1.442695
    %v816 = vpow.pop %v815
    %v817 = vmul.f32 %v690, 1.442695
    %v818 = vpow.pop %v817
    %v819 = vmul.f32 %v691, 1.442695
    %v820 = vpow.pop %v819
    %v821 = vmul.f32 %v692, 1.442695
    %v822 = vpow.pop %v821
    %v823 = vmul.f32 %v693, 1.442695
    %v824 = vpow.pop %v823
    %v825 = vmul.f32 %v694, 1.442695
    %v826 = vpow.pop %v825
    %v827 = vmul.f32 %v695, 1.442695
    %v828 = vpow.pop %v827
    %v829 = vmul.f32 %v696, 1.442695
    %v830 = vpow.pop %v829
    %v831 = vmul.f32 %v697, 1.442695
    %v832 = vpow.pop %v831
    %v833 = vmul.f32 %v698, 1.442695
    %v834 = vpow.pop %v833
    %v835 = vmul.f32 %v699, 1.442695
    %v836 = vpow.pop %v835
    %v837 = vmul.f32 %v700, 1.442695
    %v838 = vpow.pop %v837
    %v839 = vmul.f32 %v701, 1.442695
    %v840 = vpow.pop %v839
    %v841 = vmul.f32 %v702, 1.442695
    %v842 = vpow.pop %v841
    %v843 = vmul.f32 %v703, 1.442695
    %v844 = vpow.pop %v843
    %v845 = vmul.f32 %v704, 1.442695
    %v846 = vpow.pop %v845
    %v847 = vmul.f32 %v705, 1.442695
    %v848 = vpow.pop %v847
    %v849 = vmul.f32 %v706, 1.442695
    %v850 = vpow.pop %v849
    %v851 = vmul.f32 %v707, 1.442695
    %v852 = vpow.pop %v851
    %v853 = vmul.f32 %v708, 1.442695
    %v854 = vpow.pop %v853
    %v855 = vmul.f32 %v709, 1.442695
    %v856 = vpow.pop %v855
    %v857 = vmul.f32 %v710, 1.442695
    %v858 = vpow.pop %v857
    %v859 = vmul.f32 %v711, 1.442695
    %v860 = vpow.pop %v859
    %v861 = vmul.f32 %v712, 1.442695
    %v862 = vpow.pop %v861
    %v863 = vmul.f32 %v713, 1.442695
    %v864 = vpow.pop %v863
    %v865 = vmul.f32 %v714, 1.442695
    %v866 = vpow.pop %v865
    %v867 = vmul.f32 %v715, 1.442695
    %v868 = vpow.pop %v867
    %v869 = vmul.f32 %v716, 1.442695
    %v870 = vpow.pop %v869
    %v871 = vmul.f32 %v717, 1.442695
    %v872 = vpow.pop %v871
    %v873 = vmul.f32 %v718, 1.442695
    %v874 = vpow.pop %v873
    %v875 = vmul.f32 %v719, 1.442695
    %v876 = vpow.pop %v875
    %v877 = vmul.f32 %v720, 1.442695
    %v878 = vpow.pop %v877
    %v879 = vmul.f32 %v721, 1.442695
    %v880 = vpow.pop %v879
    %v881 = vmul.f32 %v722, 1.442695
    %v882 = vpow.pop %v881
    %v883 = vmul.f32 %v723, 1.442695
    %v884 = vpow.pop %v883
    %v885 = vmul.f32 %v724, 1.442695
    %v886 = vpow.pop %v885
    %v887 = vmul.f32 %v725, 1.442695
    %v888 = vpow.pop %v887
    %v889 = vmul.f32 %v726, 1.442695
    %v890 = vpow.pop %v889
    %v891 = vmul.f32 %v727, 1.442695
    %v892 = vpow.pop %v891
    %v893 = vmul.f32 %v728, 1.442695
    %v894 = vpow.pop %v893
    %v895 = vmul.f32 %v729, 1.442695
    %v896 = vpow.pop %v895
    %v897 = vmul.f32 %v730, 1.442695
    %v898 = vpow.pop %v897
    %v899 = vmul.f32 %v731, 1.442695
    %v900 = vpow.pop %v899
    %v901 = vmul.f32 %v732, 1.442695
    %v902 = vpow.pop %v901
    %v903 = vmul.f32 %v733, 1.442695
    %v904 = vpow.pop %v903
    %v905 = vmul.f32 %v734, 1.442695
    %v906 = vpow.pop %v905
    %v907 = vmul.f32 %v735, 1.442695
    %v908 = vpow.pop %v907
    %v909 = vmul.f32 %v736, 1.442695
    %v910 = vpow.pop %v909
    %v911 = vmul.f32 %v737, 1.442695
    %v912 = vpow.pop %v911
    %v913 = vmul.f32 %v738, 1.442695
    %v914 = vpow.pop %v913
    %v915 = vmul.f32 %v739, 1.442695
    %v916 = vpow.pop %v915
    %v917 = vmul.f32 %v740, 1.442695
    %v918 = vpow.pop %v917
    %v919 = vmul.f32 %v741, 1.442695
    %v920 = vpow.pop %v919
    %v921 = vmul.f32 %v742, 1.442695
    %v922 = vpow.pop %v921
    %v923 = vmul.f32 %v743, 1.442695
    %v924 = vpow.pop %v923
    %v925 = vmul.f32 %v744, 1.442695
    %v926 = vpow.pop %v925
    %v927 = vmul.f32 %v745, 1.442695
    %v928 = vpow.pop %v927
    %v929 = vmul.f32 %v746, 1.442695
    %v930 = vpow.pop %v929
    %v931 = vmul.f32 %v747, 1.442695
    %v932 = vpow.pop %v931
    %v933 = vmul.f32 %v748, 1.442695
    %v934 = vpow.pop %v933
    %v935 = vmul.f32 %v749, 1.442695
    %v936 = vpow.pop %v935
    %v937 = vmul.f32 %v750, 1.442695
    %v938 = vpow.pop %v937
    %v939 = vmul.f32 %v751, 1.442695
    %v940 = vpow.pop %v939
    %v941 = vmul.f32 %v752, 1.442695
    %v942 = vpow.pop %v941
    %v943 = vmul.f32 %v753, 1.442695
    %v944 = vpow.pop %v943
    %v945 = vmul.f32 %v754, 1.442695
    %v946 = vpow.pop %v945
    %v947 = vmul.f32 %v755, 1.442695
    %v948 = vpow.pop %v947
    %v949 = vmul.f32 %v756, 1.442695
    %v950 = vpow.pop %v949
    %v951 = vmul.f32 %v757, 1.442695
    %v952 = vpow.pop %v951
    %v953 = vmul.f32 %v758, 1.442695
    %v954 = vpow.pop %v953
    %v955 = vmul.f32 %v759, 1.442695
    %v956 = vpow.pop %v955
    %v957 = vmul.f32 %v760, 1.442695
    %v958 = vpow.pop %v957
    %v959 = vmul.f32 %v761, 1.442695
    %v960 = vpow.pop %v959
    %v961 = vmul.f32 %v762, 1.442695
    %v962 = vpow.pop %v961
    %v963 = vmul.f32 %v763, 1.442695
    %v964 = vpow.pop %v963
    %v965 = vmul.f32 %v764, 1.442695
    %v966 = vpow.pop %v965
    %v967 = vmul.f32 %v765, 1.442695
    %v968 = vpow.pop %v967
    %v969 = vmul.f32 %v766, 1.442695
    %v970 = vpow.pop %v969
    %v971 = vmul.f32 %v767, 1.442695
    %v972 = vpow.pop %v971
    %v973 = vmul.f32 %v768, 1.442695
    %v974 = vpow.pop %v973
    %v975 = vmul.f32 %v769, 1.442695
    %v976 = vpow.pop %v975
    %v977 = vmul.f32 %v770, 1.442695
    %v978 = vpow.pop %v977
    %v979 = vmul.f32 %v771, 1.442695
    %v980 = vpow.pop %v979
    %v981 = vmul.f32 %v772, 1.442695
    %v982 = vpow.pop %v981
    %v983 = vmul.f32 %v773, 1.442695
    %v984 = vpow.pop %v983
    %v985 = vmul.f32 %v774, 1.442695
    %v986 = vpow.pop %v985
    %v987 = vmul.f32 %v775, 1.442695
    %v988 = vpow.pop %v987
    %v989 = vmul.f32 %v776, 1.442695
    %v990 = vpow.pop %v989
    %v991 = vmul.f32 %v777, 1.442695
    %v992 = vpow.pop %v991
    %v993 = vmul.f32 %v778, 1.442695
    %v994 = vpow.pop %v993
    %v995 = vmul.f32 %v779, 1.442695
    %v996 = vpow.pop %v995
    %v997 = vmul.f32 %v780, 1.442695
    %v998 = vpow.pop %v997
    %v999 = vmul.f32 %v781, 1.442695
    %v1000 = vpow.pop %v999
    %v1001 = vmul.f32 %v782, 1.442695
    %v1002 = vpow.pop %v1001
    %v1003 = vmul.f32 %v783, 1.442695
    %v1004 = vpow.pop %v1003
    %v1005 = vmul.f32 %v784, 1.442695
    %v1006 = vpow.pop %v1005
    %v1007 = vmul.f32 %v785, 1.442695
    %v1008 = vpow.pop %v1007
    %v1009 = vmul.f32 %v786, 1.442695
    %v1010 = vpow.pop %v1009
    %v1011 = vmul.f32 %v787, 1.442695
    %v1012 = vpow.pop %v1011
    %v1013 = vmul.f32 %v788, 1.442695
    %v1014 = vpow.pop %v1013
    %v1015 = vmul.f32 %v789, 1.442695
    %v1016 = vpow.pop %v1015
    %v1017 = vmul.f32 %v790, 1.442695
    %v1018 = vpow.pop %v1017
    %v1019 = vmul.f32 %v791, 1.442695
    %v1020 = vpow.pop %v1019
    %v1021 = vmul.f32 %v792, 1.442695
    %v1022 = vpow.pop %v1021
    %v1023 = vmul.f32 %v793, 1.442695
    %v1024 = vpow.pop %v1023
    %v1025 = vmul.f32 %v794, 1.442695
    %v1026 = vpow.pop %v1025
    %v1027 = vmul.f32 %v795, 1.442695
    %v1028 = vpow.pop %v1027
    %v1029 = vmul.f32 %v796, 1.442695
    %v1030 = vpow.pop %v1029
    %v1031 = vmul.f32 %v797, 1.442695
    %v1032 = vpow.pop %v1031
    %v1033 = vmul.f32 %v798, 1.442695
    %v1034 = vpow.pop %v1033
    %v1035 = vmul.f32 %v799, 1.442695
    %v1036 = vpow.pop %v1035
    %v1037 = vmul.f32 %v800, 1.442695
    %v1038 = vpow.pop %v1037
    %v1039 = vmul.f32 %v801, 1.442695
    %v1040 = vpow.pop %v1039
    %v1041 = vmul.f32 %v802, 1.442695
    %v1042 = vpow.pop %v1041
    %v1043 = vmul.f32 %v803, 1.442695
    %v1044 = vpow.pop %v1043
    %v1045 = vmul.f32 %v804, 1.442695
    %v1046 = vpow.pop %v1045
    %v1047 = vmul.f32 %v805, 1.442695
    %v1048 = vpow.pop %v1047
    %v1049 = vmul.f32 %v806, 1.442695
    %v1050 = vpow.pop %v1049
    %v1051 = vmul.f32 %v807, 1.442695
    %v1052 = vpow.pop %v1051
    %v1053 = vmul.f32 %v808, 1.442695
    %v1054 = vpow.pop %v1053
    %v1055 = vmul.f32 %v809, 1.442695
    %v1056 = vpow.pop %v1055
    %v1057 = vmul.f32 %v810, 1.442695
    %v1058 = vpow.pop %v1057
    %v1059 = vmul.f32 %v811, 1.442695
    %v1060 = vpow.pop %v1059
    %v1061 = vmul.f32 %v812, 1.442695
    %v1062 = vpow.pop %v1061
    %v1063 = vsel %vm312, %v814, 0.0
    %1064 = vadd.xlane.f32.xlu0 %v1063
    %v1065 = vpop.xlane.xlu0 %1064
    %v1066 = vsel %vm312, %v816, 0.0
    %1067 = vadd.xlane.f32.xlu0 %v1066
    %v1068 = vpop.xlane.xlu0 %1067
    %v1069 = vsel %vm312, %v818, 0.0
    %1070 = vadd.xlane.f32.xlu0 %v1069
    %v1071 = vpop.xlane.xlu0 %1070
    %v1072 = vsel %vm312, %v820, 0.0
    %1073 = vadd.xlane.f32.xlu0 %v1072
    %v1074 = vpop.xlane.xlu0 %1073
    %v1075 = vsel %vm312, %v822, 0.0
    %1076 = vadd.xlane.f32.xlu0 %v1075
    %v1077 = vpop.xlane.xlu0 %1076
    %v1078 = vsel %vm312, %v824, 0.0
    %1079 = vadd.xlane.f32.xlu0 %v1078
    %v1080 = vpop.xlane.xlu0 %1079
    %v1081 = vsel %vm312, %v826, 0.0
    %1082 = vadd.xlane.f32.xlu0 %v1081
    %v1083 = vpop.xlane.xlu0 %1082
    %v1084 = vsel %vm312, %v828, 0.0
    %1085 = vadd.xlane.f32.xlu0 %v1084
    %v1086 = vpop.xlane.xlu0 %1085
    %v1087 = vsel %vm312, %v830, 0.0
    %1088 = vadd.xlane.f32.xlu0 %v1087
    %v1089 = vpop.xlane.xlu0 %1088
    %v1090 = vsel %vm312, %v832, 0.0
    %1091 = vadd.xlane.f32.xlu0 %v1090
    %v1092 = vpop.xlane.xlu0 %1091
    %v1093 = vsel %vm312, %v834, 0.0
    %1094 = vadd.xlane.f32.xlu0 %v1093
    %v1095 = vpop.xlane.xlu0 %1094
    %v1096 = vsel %vm312, %v836, 0.0
    %1097 = vadd.xlane.f32.xlu0 %v1096
    %v1098 = vpop.xlane.xlu0 %1097
    %v1099 = vsel %vm312, %v838, 0.0
    %1100 = vadd.xlane.f32.xlu0 %v1099
    %v1101 = vpop.xlane.xlu0 %1100
    %v1102 = vsel %vm312, %v840, 0.0
    %1103 = vadd.xlane.f32.xlu0 %v1102
    %v1104 = vpop.xlane.xlu0 %1103
    %v1105 = vsel %vm312, %v842, 0.0
    %1106 = vadd.xlane.f32.xlu0 %v1105
    %v1107 = vpop.xlane.xlu0 %1106
    %v1108 = vsel %vm312, %v844, 0.0
    %1109 = vadd.xlane.f32.xlu0 %v1108
    %v1110 = vpop.xlane.xlu0 %1109
    %v1111 = vsel %vm312, %v846, 0.0
    %1112 = vadd.xlane.f32.xlu0 %v1111
    %v1113 = vpop.xlane.xlu0 %1112
    %v1114 = vsel %vm312, %v848, 0.0
    %1115 = vadd.xlane.f32.xlu0 %v1114
    %v1116 = vpop.xlane.xlu0 %1115
    %v1117 = vsel %vm312, %v850, 0.0
    %1118 = vadd.xlane.f32.xlu0 %v1117
    %v1119 = vpop.xlane.xlu0 %1118
    %v1120 = vsel %vm312, %v852, 0.0
    %1121 = vadd.xlane.f32.xlu0 %v1120
    %v1122 = vpop.xlane.xlu0 %1121
    %v1123 = vsel %vm312, %v854, 0.0
    %1124 = vadd.xlane.f32.xlu0 %v1123
    %v1125 = vpop.xlane.xlu0 %1124
    %v1126 = vsel %vm312, %v856, 0.0
    %1127 = vadd.xlane.f32.xlu0 %v1126
    %v1128 = vpop.xlane.xlu0 %1127
    %v1129 = vsel %vm312, %v858, 0.0
    %1130 = vadd.xlane.f32.xlu0 %v1129
    %v1131 = vpop.xlane.xlu0 %1130
    %v1132 = vsel %vm312, %v860, 0.0
    %1133 = vadd.xlane.f32.xlu0 %v1132
    %v1134 = vpop.xlane.xlu0 %1133
    %v1135 = vsel %vm312, %v862, 0.0
    %1136 = vadd.xlane.f32.xlu0 %v1135
    %v1137 = vpop.xlane.xlu0 %1136
    %v1138 = vsel %vm312, %v864, 0.0
    %1139 = vadd.xlane.f32.xlu0 %v1138
    %v1140 = vpop.xlane.xlu0 %1139
    %v1141 = vsel %vm312, %v866, 0.0
    %1142 = vadd.xlane.f32.xlu0 %v1141
    %v1143 = vpop.xlane.xlu0 %1142
    %v1144 = vsel %vm312, %v868, 0.0
    %1145 = vadd.xlane.f32.xlu0 %v1144
    %v1146 = vpop.xlane.xlu0 %1145
    %v1147 = vsel %vm312, %v870, 0.0
    %1148 = vadd.xlane.f32.xlu0 %v1147
    %v1149 = vpop.xlane.xlu0 %1148
    %v1150 = vsel %vm312, %v872, 0.0
    %1151 = vadd.xlane.f32.xlu0 %v1150
    %v1152 = vpop.xlane.xlu0 %1151
    %v1153 = vsel %vm312, %v874, 0.0
    %1154 = vadd.xlane.f32.xlu0 %v1153
    %v1155 = vpop.xlane.xlu0 %1154
    %v1156 = vsel %vm312, %v876, 0.0
    %1157 = vadd.xlane.f32.xlu0 %v1156
    %v1158 = vpop.xlane.xlu0 %1157
    %v1159 = vsel %vm312, %v878, 0.0
    %1160 = vadd.xlane.f32.xlu0 %v1159
    %v1161 = vpop.xlane.xlu0 %1160
    %v1162 = vsel %vm312, %v880, 0.0
    %1163 = vadd.xlane.f32.xlu0 %v1162
    %v1164 = vpop.xlane.xlu0 %1163
    %v1165 = vsel %vm312, %v882, 0.0
    %1166 = vadd.xlane.f32.xlu0 %v1165
    %v1167 = vpop.xlane.xlu0 %1166
    %v1168 = vsel %vm312, %v884, 0.0
    %1169 = vadd.xlane.f32.xlu0 %v1168
    %v1170 = vpop.xlane.xlu0 %1169
    %v1171 = vsel %vm312, %v886, 0.0
    %1172 = vadd.xlane.f32.xlu0 %v1171
    %v1173 = vpop.xlane.xlu0 %1172
    %v1174 = vsel %vm312, %v888, 0.0
    %1175 = vadd.xlane.f32.xlu0 %v1174
    %v1176 = vpop.xlane.xlu0 %1175
    %v1177 = vsel %vm312, %v890, 0.0
    %1178 = vadd.xlane.f32.xlu0 %v1177
    %v1179 = vpop.xlane.xlu0 %1178
    %v1180 = vsel %vm312, %v892, 0.0
    %1181 = vadd.xlane.f32.xlu0 %v1180
    %v1182 = vpop.xlane.xlu0 %1181
    %v1183 = vsel %vm312, %v894, 0.0
    %1184 = vadd.xlane.f32.xlu0 %v1183
    %v1185 = vpop.xlane.xlu0 %1184
    %v1186 = vsel %vm312, %v896, 0.0
    %1187 = vadd.xlane.f32.xlu0 %v1186
    %v1188 = vpop.xlane.xlu0 %1187
    %v1189 = vsel %vm312, %v898, 0.0
    %1190 = vadd.xlane.f32.xlu0 %v1189
    %v1191 = vpop.xlane.xlu0 %1190
    %v1192 = vsel %vm312, %v900, 0.0
    %1193 = vadd.xlane.f32.xlu0 %v1192
    %v1194 = vpop.xlane.xlu0 %1193
    %v1195 = vsel %vm312, %v902, 0.0
    %1196 = vadd.xlane.f32.xlu0 %v1195
    %v1197 = vpop.xlane.xlu0 %1196
    %v1198 = vsel %vm312, %v904, 0.0
    %1199 = vadd.xlane.f32.xlu0 %v1198
    %v1200 = vpop.xlane.xlu0 %1199
    %v1201 = vsel %vm312, %v906, 0.0
    %1202 = vadd.xlane.f32.xlu0 %v1201
    %v1203 = vpop.xlane.xlu0 %1202
    %v1204 = vsel %vm312, %v908, 0.0
    %1205 = vadd.xlane.f32.xlu0 %v1204
    %v1206 = vpop.xlane.xlu0 %1205
    %v1207 = vsel %vm312, %v910, 0.0
    %1208 = vadd.xlane.f32.xlu0 %v1207
    %v1209 = vpop.xlane.xlu0 %1208
    %v1210 = vsel %vm312, %v912, 0.0
    %1211 = vadd.xlane.f32.xlu0 %v1210
    %v1212 = vpop.xlane.xlu0 %1211
    %v1213 = vsel %vm312, %v914, 0.0
    %1214 = vadd.xlane.f32.xlu0 %v1213
    %v1215 = vpop.xlane.xlu0 %1214
    %v1216 = vsel %vm312, %v916, 0.0
    %1217 = vadd.xlane.f32.xlu0 %v1216
    %v1218 = vpop.xlane.xlu0 %1217
    %v1219 = vsel %vm312, %v918, 0.0
    %1220 = vadd.xlane.f32.xlu0 %v1219
    %v1221 = vpop.xlane.xlu0 %1220
    %v1222 = vsel %vm312, %v920, 0.0
    %1223 = vadd.xlane.f32.xlu0 %v1222
    %v1224 = vpop.xlane.xlu0 %1223
    %v1225 = vsel %vm312, %v922, 0.0
    %1226 = vadd.xlane.f32.xlu0 %v1225
    %v1227 = vpop.xlane.xlu0 %1226
    %v1228 = vsel %vm312, %v924, 0.0
    %1229 = vadd.xlane.f32.xlu0 %v1228
    %v1230 = vpop.xlane.xlu0 %1229
    %v1231 = vsel %vm312, %v926, 0.0
    %1232 = vadd.xlane.f32.xlu0 %v1231
    %v1233 = vpop.xlane.xlu0 %1232
    %v1234 = vsel %vm312, %v928, 0.0
    %1235 = vadd.xlane.f32.xlu0 %v1234
    %v1236 = vpop.xlane.xlu0 %1235
    %v1237 = vsel %vm312, %v930, 0.0
    %1238 = vadd.xlane.f32.xlu0 %v1237
    %v1239 = vpop.xlane.xlu0 %1238
    %v1240 = vsel %vm312, %v932, 0.0
    %1241 = vadd.xlane.f32.xlu0 %v1240
    %v1242 = vpop.xlane.xlu0 %1241
    %v1243 = vsel %vm312, %v934, 0.0
    %1244 = vadd.xlane.f32.xlu0 %v1243
    %v1245 = vpop.xlane.xlu0 %1244
    %v1246 = vsel %vm312, %v936, 0.0
    %1247 = vadd.xlane.f32.xlu0 %v1246
    %v1248 = vpop.xlane.xlu0 %1247
    %v1249 = vsel %vm312, %v938, 0.0
    %1250 = vadd.xlane.f32.xlu0 %v1249
    %v1251 = vpop.xlane.xlu0 %1250
    %v1252 = vsel %vm312, %v940, 0.0
    %1253 = vadd.xlane.f32.xlu0 %v1252
    %v1254 = vpop.xlane.xlu0 %1253
    %v1255 = vsel %vm312, %v942, 0.0
    %1256 = vadd.xlane.f32.xlu0 %v1255
    %v1257 = vpop.xlane.xlu0 %1256
    %v1258 = vsel %vm312, %v944, 0.0
    %1259 = vadd.xlane.f32.xlu0 %v1258
    %v1260 = vpop.xlane.xlu0 %1259
    %v1261 = vsel %vm312, %v946, 0.0
    %1262 = vadd.xlane.f32.xlu0 %v1261
    %v1263 = vpop.xlane.xlu0 %1262
    %v1264 = vsel %vm312, %v948, 0.0
    %1265 = vadd.xlane.f32.xlu0 %v1264
    %v1266 = vpop.xlane.xlu0 %1265
    %v1267 = vsel %vm312, %v950, 0.0
    %1268 = vadd.xlane.f32.xlu0 %v1267
    %v1269 = vpop.xlane.xlu0 %1268
    %v1270 = vsel %vm312, %v952, 0.0
    %1271 = vadd.xlane.f32.xlu0 %v1270
    %v1272 = vpop.xlane.xlu0 %1271
    %v1273 = vsel %vm312, %v954, 0.0
    %1274 = vadd.xlane.f32.xlu0 %v1273
    %v1275 = vpop.xlane.xlu0 %1274
    %v1276 = vsel %vm312, %v956, 0.0
    %1277 = vadd.xlane.f32.xlu0 %v1276
    %v1278 = vpop.xlane.xlu0 %1277
    %v1279 = vsel %vm312, %v958, 0.0
    %1280 = vadd.xlane.f32.xlu0 %v1279
    %v1281 = vpop.xlane.xlu0 %1280
    %v1282 = vsel %vm312, %v960, 0.0
    %1283 = vadd.xlane.f32.xlu0 %v1282
    %v1284 = vpop.xlane.xlu0 %1283
    %v1285 = vsel %vm312, %v962, 0.0
    %1286 = vadd.xlane.f32.xlu0 %v1285
    %v1287 = vpop.xlane.xlu0 %1286
    %v1288 = vsel %vm312, %v964, 0.0
    %1289 = vadd.xlane.f32.xlu0 %v1288
    %v1290 = vpop.xlane.xlu0 %1289
    %v1291 = vsel %vm312, %v966, 0.0
    %1292 = vadd.xlane.f32.xlu0 %v1291
    %v1293 = vpop.xlane.xlu0 %1292
    %v1294 = vsel %vm312, %v968, 0.0
    %1295 = vadd.xlane.f32.xlu0 %v1294
    %v1296 = vpop.xlane.xlu0 %1295
    %v1297 = vsel %vm312, %v970, 0.0
    %1298 = vadd.xlane.f32.xlu0 %v1297
    %v1299 = vpop.xlane.xlu0 %1298
    %v1300 = vsel %vm312, %v972, 0.0
    %1301 = vadd.xlane.f32.xlu0 %v1300
    %v1302 = vpop.xlane.xlu0 %1301
    %v1303 = vsel %vm312, %v974, 0.0
    %1304 = vadd.xlane.f32.xlu0 %v1303
    %v1305 = vpop.xlane.xlu0 %1304
    %v1306 = vsel %vm312, %v976, 0.0
    %1307 = vadd.xlane.f32.xlu0 %v1306
    %v1308 = vpop.xlane.xlu0 %1307
    %v1309 = vsel %vm312, %v978, 0.0
    %1310 = vadd.xlane.f32.xlu0 %v1309
    %v1311 = vpop.xlane.xlu0 %1310
    %v1312 = vsel %vm312, %v980, 0.0
    %1313 = vadd.xlane.f32.xlu0 %v1312
    %v1314 = vpop.xlane.xlu0 %1313
    %v1315 = vsel %vm312, %v982, 0.0
    %1316 = vadd.xlane.f32.xlu0 %v1315
    %v1317 = vpop.xlane.xlu0 %1316
    %v1318 = vsel %vm312, %v984, 0.0
    %1319 = vadd.xlane.f32.xlu0 %v1318
    %v1320 = vpop.xlane.xlu0 %1319
    %v1321 = vsel %vm312, %v986, 0.0
    %1322 = vadd.xlane.f32.xlu0 %v1321
    %v1323 = vpop.xlane.xlu0 %1322
    %v1324 = vsel %vm312, %v988, 0.0
    %1325 = vadd.xlane.f32.xlu0 %v1324
    %v1326 = vpop.xlane.xlu0 %1325
    %v1327 = vsel %vm312, %v990, 0.0
    %1328 = vadd.xlane.f32.xlu0 %v1327
    %v1329 = vpop.xlane.xlu0 %1328
    %v1330 = vsel %vm312, %v992, 0.0
    %1331 = vadd.xlane.f32.xlu0 %v1330
    %v1332 = vpop.xlane.xlu0 %1331
    %v1333 = vsel %vm312, %v994, 0.0
    %1334 = vadd.xlane.f32.xlu0 %v1333
    %v1335 = vpop.xlane.xlu0 %1334
    %v1336 = vsel %vm312, %v996, 0.0
    %1337 = vadd.xlane.f32.xlu0 %v1336
    %v1338 = vpop.xlane.xlu0 %1337
    %v1339 = vsel %vm312, %v998, 0.0
    %1340 = vadd.xlane.f32.xlu0 %v1339
    %v1341 = vpop.xlane.xlu0 %1340
    %v1342 = vsel %vm312, %v1000, 0.0
    %1343 = vadd.xlane.f32.xlu0 %v1342
    %v1344 = vpop.xlane.xlu0 %1343
    %v1345 = vsel %vm312, %v1002, 0.0
    %1346 = vadd.xlane.f32.xlu0 %v1345
    %v1347 = vpop.xlane.xlu0 %1346
    %v1348 = vsel %vm312, %v1004, 0.0
    %1349 = vadd.xlane.f32.xlu0 %v1348
    %v1350 = vpop.xlane.xlu0 %1349
    %v1351 = vsel %vm312, %v1006, 0.0
    %1352 = vadd.xlane.f32.xlu0 %v1351
    %v1353 = vpop.xlane.xlu0 %1352
    %v1354 = vsel %vm312, %v1008, 0.0
    %1355 = vadd.xlane.f32.xlu0 %v1354
    %v1356 = vpop.xlane.xlu0 %1355
    %v1357 = vsel %vm312, %v1010, 0.0
    %1358 = vadd.xlane.f32.xlu0 %v1357
    %v1359 = vpop.xlane.xlu0 %1358
    %v1360 = vsel %vm312, %v1012, 0.0
    %1361 = vadd.xlane.f32.xlu0 %v1360
    %v1362 = vpop.xlane.xlu0 %1361
    %v1363 = vsel %vm312, %v1014, 0.0
    %1364 = vadd.xlane.f32.xlu0 %v1363
    %v1365 = vpop.xlane.xlu0 %1364
    %v1366 = vsel %vm312, %v1016, 0.0
    %1367 = vadd.xlane.f32.xlu0 %v1366
    %v1368 = vpop.xlane.xlu0 %1367
    %v1369 = vsel %vm312, %v1018, 0.0
    %1370 = vadd.xlane.f32.xlu0 %v1369
    %v1371 = vpop.xlane.xlu0 %1370
    %v1372 = vsel %vm312, %v1020, 0.0
    %1373 = vadd.xlane.f32.xlu0 %v1372
    %v1374 = vpop.xlane.xlu0 %1373
    %v1375 = vsel %vm312, %v1022, 0.0
    %1376 = vadd.xlane.f32.xlu0 %v1375
    %v1377 = vpop.xlane.xlu0 %1376
    %v1378 = vsel %vm312, %v1024, 0.0
    %1379 = vadd.xlane.f32.xlu0 %v1378
    %v1380 = vpop.xlane.xlu0 %1379
    %v1381 = vsel %vm312, %v1026, 0.0
    %1382 = vadd.xlane.f32.xlu0 %v1381
    %v1383 = vpop.xlane.xlu0 %1382
    %v1384 = vsel %vm312, %v1028, 0.0
    %1385 = vadd.xlane.f32.xlu0 %v1384
    %v1386 = vpop.xlane.xlu0 %1385
    %v1387 = vsel %vm312, %v1030, 0.0
    %1388 = vadd.xlane.f32.xlu0 %v1387
    %v1389 = vpop.xlane.xlu0 %1388
    %v1390 = vsel %vm312, %v1032, 0.0
    %1391 = vadd.xlane.f32.xlu0 %v1390
    %v1392 = vpop.xlane.xlu0 %1391
    %v1393 = vsel %vm312, %v1034, 0.0
    %1394 = vadd.xlane.f32.xlu0 %v1393
    %v1395 = vpop.xlane.xlu0 %1394
    %v1396 = vsel %vm312, %v1036, 0.0
    %1397 = vadd.xlane.f32.xlu0 %v1396
    %v1398 = vpop.xlane.xlu0 %1397
    %v1399 = vsel %vm312, %v1038, 0.0
    %1400 = vadd.xlane.f32.xlu0 %v1399
    %v1401 = vpop.xlane.xlu0 %1400
    %v1402 = vsel %vm312, %v1040, 0.0
    %1403 = vadd.xlane.f32.xlu0 %v1402
    %v1404 = vpop.xlane.xlu0 %1403
    %v1405 = vsel %vm312, %v1042, 0.0
    %1406 = vadd.xlane.f32.xlu0 %v1405
    %v1407 = vpop.xlane.xlu0 %1406
    %v1408 = vsel %vm312, %v1044, 0.0
    %1409 = vadd.xlane.f32.xlu0 %v1408
    %v1410 = vpop.xlane.xlu0 %1409
    %v1411 = vsel %vm312, %v1046, 0.0
    %1412 = vadd.xlane.f32.xlu0 %v1411
    %v1413 = vpop.xlane.xlu0 %1412
    %v1414 = vsel %vm312, %v1048, 0.0
    %1415 = vadd.xlane.f32.xlu0 %v1414
    %v1416 = vpop.xlane.xlu0 %1415
    %v1417 = vsel %vm312, %v1050, 0.0
    %1418 = vadd.xlane.f32.xlu0 %v1417
    %v1419 = vpop.xlane.xlu0 %1418
    %v1420 = vsel %vm312, %v1052, 0.0
    %1421 = vadd.xlane.f32.xlu0 %v1420
    %v1422 = vpop.xlane.xlu0 %1421
    %v1423 = vsel %vm312, %v1054, 0.0
    %1424 = vadd.xlane.f32.xlu0 %v1423
    %v1425 = vpop.xlane.xlu0 %1424
    %v1426 = vsel %vm312, %v1056, 0.0
    %1427 = vadd.xlane.f32.xlu0 %v1426
    %v1428 = vpop.xlane.xlu0 %1427
    %v1429 = vsel %vm312, %v1058, 0.0
    %1430 = vadd.xlane.f32.xlu0 %v1429
    %v1431 = vpop.xlane.xlu0 %1430
    %v1432 = vsel %vm312, %v1060, 0.0
    %1433 = vadd.xlane.f32.xlu0 %v1432
    %v1434 = vpop.xlane.xlu0 %1433
    %v1435 = vsel %vm312, %v1062, 0.0
    %1436 = vadd.xlane.f32.xlu0 %v1435
    %v1437 = vpop.xlane.xlu0 %1436
    %v1438 = vlog2.pop %v1065
    %v1439 = vmul.f32 %v1438, 0.6931472
    %v1440 = vlog2.pop %v1068
    %v1441 = vmul.f32 %v1440, 0.6931472
    %v1442 = vlog2.pop %v1071
    %v1443 = vmul.f32 %v1442, 0.6931472
    %v1444 = vlog2.pop %v1074
    %v1445 = vmul.f32 %v1444, 0.6931472
    %v1446 = vlog2.pop %v1077
    %v1447 = vmul.f32 %v1446, 0.6931472
    %v1448 = vlog2.pop %v1080
    %v1449 = vmul.f32 %v1448, 0.6931472
    %v1450 = vlog2.pop %v1083
    %v1451 = vmul.f32 %v1450, 0.6931472
    %v1452 = vlog2.pop %v1086
    %v1453 = vmul.f32 %v1452, 0.6931472
    %v1454 = vlog2.pop %v1089
    %v1455 = vmul.f32 %v1454, 0.6931472
    %v1456 = vlog2.pop %v1092
    %v1457 = vmul.f32 %v1456, 0.6931472
    %v1458 = vlog2.pop %v1095
    %v1459 = vmul.f32 %v1458, 0.6931472
    %v1460 = vlog2.pop %v1098
    %v1461 = vmul.f32 %v1460, 0.6931472
    %v1462 = vlog2.pop %v1101
    %v1463 = vmul.f32 %v1462, 0.6931472
    %v1464 = vlog2.pop %v1104
    %v1465 = vmul.f32 %v1464, 0.6931472
    %v1466 = vlog2.pop %v1107
    %v1467 = vmul.f32 %v1466, 0.6931472
    %v1468 = vlog2.pop %v1110
    %v1469 = vmul.f32 %v1468, 0.6931472
    %v1470 = vlog2.pop %v1113
    %v1471 = vmul.f32 %v1470, 0.6931472
    %v1472 = vlog2.pop %v1116
    %v1473 = vmul.f32 %v1472, 0.6931472
    %v1474 = vlog2.pop %v1119
    %v1475 = vmul.f32 %v1474, 0.6931472
    %v1476 = vlog2.pop %v1122
    %v1477 = vmul.f32 %v1476, 0.6931472
    %v1478 = vlog2.pop %v1125
    %v1479 = vmul.f32 %v1478, 0.6931472
    %v1480 = vlog2.pop %v1128
    %v1481 = vmul.f32 %v1480, 0.6931472
    %v1482 = vlog2.pop %v1131
    %v1483 = vmul.f32 %v1482, 0.6931472
    %v1484 = vlog2.pop %v1134
    %v1485 = vmul.f32 %v1484, 0.6931472
    %v1486 = vlog2.pop %v1137
    %v1487 = vmul.f32 %v1486, 0.6931472
    %v1488 = vlog2.pop %v1140
    %v1489 = vmul.f32 %v1488, 0.6931472
    %v1490 = vlog2.pop %v1143
    %v1491 = vmul.f32 %v1490, 0.6931472
    %v1492 = vlog2.pop %v1146
    %v1493 = vmul.f32 %v1492, 0.6931472
    %v1494 = vlog2.pop %v1149
    %v1495 = vmul.f32 %v1494, 0.6931472
    %v1496 = vlog2.pop %v1152
    %v1497 = vmul.f32 %v1496, 0.6931472
    %v1498 = vlog2.pop %v1155
    %v1499 = vmul.f32 %v1498, 0.6931472
    %v1500 = vlog2.pop %v1158
    %v1501 = vmul.f32 %v1500, 0.6931472
    %v1502 = vlog2.pop %v1161
    %v1503 = vmul.f32 %v1502, 0.6931472
    %v1504 = vlog2.pop %v1164
    %v1505 = vmul.f32 %v1504, 0.6931472
    %v1506 = vlog2.pop %v1167
    %v1507 = vmul.f32 %v1506, 0.6931472
    %v1508 = vlog2.pop %v1170
    %v1509 = vmul.f32 %v1508, 0.6931472
    %v1510 = vlog2.pop %v1173
    %v1511 = vmul.f32 %v1510, 0.6931472
    %v1512 = vlog2.pop %v1176
    %v1513 = vmul.f32 %v1512, 0.6931472
    %v1514 = vlog2.pop %v1179
    %v1515 = vmul.f32 %v1514, 0.6931472
    %v1516 = vlog2.pop %v1182
    %v1517 = vmul.f32 %v1516, 0.6931472
    %v1518 = vlog2.pop %v1185
    %v1519 = vmul.f32 %v1518, 0.6931472
    %v1520 = vlog2.pop %v1188
    %v1521 = vmul.f32 %v1520, 0.6931472
    %v1522 = vlog2.pop %v1191
    %v1523 = vmul.f32 %v1522, 0.6931472
    %v1524 = vlog2.pop %v1194
    %v1525 = vmul.f32 %v1524, 0.6931472
    %v1526 = vlog2.pop %v1197
    %v1527 = vmul.f32 %v1526, 0.6931472
    %v1528 = vlog2.pop %v1200
    %v1529 = vmul.f32 %v1528, 0.6931472
    %v1530 = vlog2.pop %v1203
    %v1531 = vmul.f32 %v1530, 0.6931472
    %v1532 = vlog2.pop %v1206
    %v1533 = vmul.f32 %v1532, 0.6931472
    %v1534 = vlog2.pop %v1209
    %v1535 = vmul.f32 %v1534, 0.6931472
    %v1536 = vlog2.pop %v1212
    %v1537 = vmul.f32 %v1536, 0.6931472
    %v1538 = vlog2.pop %v1215
    %v1539 = vmul.f32 %v1538, 0.6931472
    %v1540 = vlog2.pop %v1218
    %v1541 = vmul.f32 %v1540, 0.6931472
    %v1542 = vlog2.pop %v1221
    %v1543 = vmul.f32 %v1542, 0.6931472
    %v1544 = vlog2.pop %v1224
    %v1545 = vmul.f32 %v1544, 0.6931472
    %v1546 = vlog2.pop %v1227
    %v1547 = vmul.f32 %v1546, 0.6931472
    %v1548 = vlog2.pop %v1230
    %v1549 = vmul.f32 %v1548, 0.6931472
    %v1550 = vlog2.pop %v1233
    %v1551 = vmul.f32 %v1550, 0.6931472
    %v1552 = vlog2.pop %v1236
    %v1553 = vmul.f32 %v1552, 0.6931472
    %v1554 = vlog2.pop %v1239
    %v1555 = vmul.f32 %v1554, 0.6931472
    %v1556 = vlog2.pop %v1242
    %v1557 = vmul.f32 %v1556, 0.6931472
    %v1558 = vlog2.pop %v1245
    %v1559 = vmul.f32 %v1558, 0.6931472
    %v1560 = vlog2.pop %v1248
    %v1561 = vmul.f32 %v1560, 0.6931472
    %v1562 = vlog2.pop %v1251
    %v1563 = vmul.f32 %v1562, 0.6931472
    %v1564 = vlog2.pop %v1254
    %v1565 = vmul.f32 %v1564, 0.6931472
    %v1566 = vlog2.pop %v1257
    %v1567 = vmul.f32 %v1566, 0.6931472
    %v1568 = vlog2.pop %v1260
    %v1569 = vmul.f32 %v1568, 0.6931472
    %v1570 = vlog2.pop %v1263
    %v1571 = vmul.f32 %v1570, 0.6931472
    %v1572 = vlog2.pop %v1266
    %v1573 = vmul.f32 %v1572, 0.6931472
    %v1574 = vlog2.pop %v1269
    %v1575 = vmul.f32 %v1574, 0.6931472
    %v1576 = vlog2.pop %v1272
    %v1577 = vmul.f32 %v1576, 0.6931472
    %v1578 = vlog2.pop %v1275
    %v1579 = vmul.f32 %v1578, 0.6931472
    %v1580 = vlog2.pop %v1278
    %v1581 = vmul.f32 %v1580, 0.6931472
    %v1582 = vlog2.pop %v1281
    %v1583 = vmul.f32 %v1582, 0.6931472
    %v1584 = vlog2.pop %v1284
    %v1585 = vmul.f32 %v1584, 0.6931472
    %v1586 = vlog2.pop %v1287
    %v1587 = vmul.f32 %v1586, 0.6931472
    %v1588 = vlog2.pop %v1290
    %v1589 = vmul.f32 %v1588, 0.6931472
    %v1590 = vlog2.pop %v1293
    %v1591 = vmul.f32 %v1590, 0.6931472
    %v1592 = vlog2.pop %v1296
    %v1593 = vmul.f32 %v1592, 0.6931472
    %v1594 = vlog2.pop %v1299
    %v1595 = vmul.f32 %v1594, 0.6931472
    %v1596 = vlog2.pop %v1302
    %v1597 = vmul.f32 %v1596, 0.6931472
    %v1598 = vlog2.pop %v1305
    %v1599 = vmul.f32 %v1598, 0.6931472
    %v1600 = vlog2.pop %v1308
    %v1601 = vmul.f32 %v1600, 0.6931472
    %v1602 = vlog2.pop %v1311
    %v1603 = vmul.f32 %v1602, 0.6931472
    %v1604 = vlog2.pop %v1314
    %v1605 = vmul.f32 %v1604, 0.6931472
    %v1606 = vlog2.pop %v1317
    %v1607 = vmul.f32 %v1606, 0.6931472
    %v1608 = vlog2.pop %v1320
    %v1609 = vmul.f32 %v1608, 0.6931472
    %v1610 = vlog2.pop %v1323
    %v1611 = vmul.f32 %v1610, 0.6931472
    %v1612 = vlog2.pop %v1326
    %v1613 = vmul.f32 %v1612, 0.6931472
    %v1614 = vlog2.pop %v1329
    %v1615 = vmul.f32 %v1614, 0.6931472
    %v1616 = vlog2.pop %v1332
    %v1617 = vmul.f32 %v1616, 0.6931472
    %v1618 = vlog2.pop %v1335
    %v1619 = vmul.f32 %v1618, 0.6931472
    %v1620 = vlog2.pop %v1338
    %v1621 = vmul.f32 %v1620, 0.6931472
    %v1622 = vlog2.pop %v1341
    %v1623 = vmul.f32 %v1622, 0.6931472
    %v1624 = vlog2.pop %v1344
    %v1625 = vmul.f32 %v1624, 0.6931472
    %v1626 = vlog2.pop %v1347
    %v1627 = vmul.f32 %v1626, 0.6931472
    %v1628 = vlog2.pop %v1350
    %v1629 = vmul.f32 %v1628, 0.6931472
    %v1630 = vlog2.pop %v1353
    %v1631 = vmul.f32 %v1630, 0.6931472
    %v1632 = vlog2.pop %v1356
    %v1633 = vmul.f32 %v1632, 0.6931472
    %v1634 = vlog2.pop %v1359
    %v1635 = vmul.f32 %v1634, 0.6931472
    %v1636 = vlog2.pop %v1362
    %v1637 = vmul.f32 %v1636, 0.6931472
    %v1638 = vlog2.pop %v1365
    %v1639 = vmul.f32 %v1638, 0.6931472
    %v1640 = vlog2.pop %v1368
    %v1641 = vmul.f32 %v1640, 0.6931472
    %v1642 = vlog2.pop %v1371
    %v1643 = vmul.f32 %v1642, 0.6931472
    %v1644 = vlog2.pop %v1374
    %v1645 = vmul.f32 %v1644, 0.6931472
    %v1646 = vlog2.pop %v1377
    %v1647 = vmul.f32 %v1646, 0.6931472
    %v1648 = vlog2.pop %v1380
    %v1649 = vmul.f32 %v1648, 0.6931472
    %v1650 = vlog2.pop %v1383
    %v1651 = vmul.f32 %v1650, 0.6931472
    %v1652 = vlog2.pop %v1386
    %v1653 = vmul.f32 %v1652, 0.6931472
    %v1654 = vlog2.pop %v1389
    %v1655 = vmul.f32 %v1654, 0.6931472
    %v1656 = vlog2.pop %v1392
    %v1657 = vmul.f32 %v1656, 0.6931472
    %v1658 = vlog2.pop %v1395
    %v1659 = vmul.f32 %v1658, 0.6931472
    %v1660 = vlog2.pop %v1398
    %v1661 = vmul.f32 %v1660, 0.6931472
    %v1662 = vlog2.pop %v1401
    %v1663 = vmul.f32 %v1662, 0.6931472
    %v1664 = vlog2.pop %v1404
    %v1665 = vmul.f32 %v1664, 0.6931472
    %v1666 = vlog2.pop %v1407
    %v1667 = vmul.f32 %v1666, 0.6931472
    %v1668 = vlog2.pop %v1410
    %v1669 = vmul.f32 %v1668, 0.6931472
    %v1670 = vlog2.pop %v1413
    %v1671 = vmul.f32 %v1670, 0.6931472
    %v1672 = vlog2.pop %v1416
    %v1673 = vmul.f32 %v1672, 0.6931472
    %v1674 = vlog2.pop %v1419
    %v1675 = vmul.f32 %v1674, 0.6931472
    %v1676 = vlog2.pop %v1422
    %v1677 = vmul.f32 %v1676, 0.6931472
    %v1678 = vlog2.pop %v1425
    %v1679 = vmul.f32 %v1678, 0.6931472
    %v1680 = vlog2.pop %v1428
    %v1681 = vmul.f32 %v1680, 0.6931472
    %v1682 = vlog2.pop %v1431
    %v1683 = vmul.f32 %v1682, 0.6931472
    %v1684 = vlog2.pop %v1434
    %v1685 = vmul.f32 %v1684, 0.6931472
    %v1686 = vlog2.pop %v1437
    %v1687 = vmul.f32 %v1686, 0.6931472
    %v1688 = vadd.f32 %v1439, %v315
    %v1689 = vadd.f32 %v1441, %v318
    %v1690 = vadd.f32 %v1443, %v321
    %v1691 = vadd.f32 %v1445, %v324
    %v1692 = vadd.f32 %v1447, %v327
    %v1693 = vadd.f32 %v1449, %v330
    %v1694 = vadd.f32 %v1451, %v333
    %v1695 = vadd.f32 %v1453, %v336
    %v1696 = vadd.f32 %v1455, %v339
    %v1697 = vadd.f32 %v1457, %v342
    %v1698 = vadd.f32 %v1459, %v345
    %v1699 = vadd.f32 %v1461, %v348
    %v1700 = vadd.f32 %v1463, %v351
    %v1701 = vadd.f32 %v1465, %v354
    %v1702 = vadd.f32 %v1467, %v357
    %v1703 = vadd.f32 %v1469, %v360
    %v1704 = vadd.f32 %v1471, %v363
    %v1705 = vadd.f32 %v1473, %v366
    %v1706 = vadd.f32 %v1475, %v369
    %v1707 = vadd.f32 %v1477, %v372
    %v1708 = vadd.f32 %v1479, %v375
    %v1709 = vadd.f32 %v1481, %v378
    %v1710 = vadd.f32 %v1483, %v381
    %v1711 = vadd.f32 %v1485, %v384
    %v1712 = vadd.f32 %v1487, %v387
    %v1713 = vadd.f32 %v1489, %v390
    %v1714 = vadd.f32 %v1491, %v393
    %v1715 = vadd.f32 %v1493, %v396
    %v1716 = vadd.f32 %v1495, %v399
    %v1717 = vadd.f32 %v1497, %v402
    %v1718 = vadd.f32 %v1499, %v405
    %v1719 = vadd.f32 %v1501, %v408
    %v1720 = vadd.f32 %v1503, %v411
    %v1721 = vadd.f32 %v1505, %v414
    %v1722 = vadd.f32 %v1507, %v417
    %v1723 = vadd.f32 %v1509, %v420
    %v1724 = vadd.f32 %v1511, %v423
    %v1725 = vadd.f32 %v1513, %v426
    %v1726 = vadd.f32 %v1515, %v429
    %v1727 = vadd.f32 %v1517, %v432
    %v1728 = vadd.f32 %v1519, %v435
    %v1729 = vadd.f32 %v1521, %v438
    %v1730 = vadd.f32 %v1523, %v441
    %v1731 = vadd.f32 %v1525, %v444
    %v1732 = vadd.f32 %v1527, %v447
    %v1733 = vadd.f32 %v1529, %v450
    %v1734 = vadd.f32 %v1531, %v453
    %v1735 = vadd.f32 %v1533, %v456
    %v1736 = vadd.f32 %v1535, %v459
    %v1737 = vadd.f32 %v1537, %v462
    %v1738 = vadd.f32 %v1539, %v465
    %v1739 = vadd.f32 %v1541, %v468
    %v1740 = vadd.f32 %v1543, %v471
    %v1741 = vadd.f32 %v1545, %v474
    %v1742 = vadd.f32 %v1547, %v477
    %v1743 = vadd.f32 %v1549, %v480
    %v1744 = vadd.f32 %v1551, %v483
    %v1745 = vadd.f32 %v1553, %v486
    %v1746 = vadd.f32 %v1555, %v489
    %v1747 = vadd.f32 %v1557, %v492
    %v1748 = vadd.f32 %v1559, %v495
    %v1749 = vadd.f32 %v1561, %v498
    %v1750 = vadd.f32 %v1563, %v501
    %v1751 = vadd.f32 %v1565, %v504
    %v1752 = vadd.f32 %v1567, %v507
    %v1753 = vadd.f32 %v1569, %v510
    %v1754 = vadd.f32 %v1571, %v513
    %v1755 = vadd.f32 %v1573, %v516
    %v1756 = vadd.f32 %v1575, %v519
    %v1757 = vadd.f32 %v1577, %v522
    %v1758 = vadd.f32 %v1579, %v525
    %v1759 = vadd.f32 %v1581, %v528
    %v1760 = vadd.f32 %v1583, %v531
    %v1761 = vadd.f32 %v1585, %v534
    %v1762 = vadd.f32 %v1587, %v537
    %v1763 = vadd.f32 %v1589, %v540
    %v1764 = vadd.f32 %v1591, %v543
    %v1765 = vadd.f32 %v1593, %v546
    %v1766 = vadd.f32 %v1595, %v549
    %v1767 = vadd.f32 %v1597, %v552
    %v1768 = vadd.f32 %v1599, %v555
    %v1769 = vadd.f32 %v1601, %v558
    %v1770 = vadd.f32 %v1603, %v561
    %v1771 = vadd.f32 %v1605, %v564
    %v1772 = vadd.f32 %v1607, %v567
    %v1773 = vadd.f32 %v1609, %v570
    %v1774 = vadd.f32 %v1611, %v573
    %v1775 = vadd.f32 %v1613, %v576
    %v1776 = vadd.f32 %v1615, %v579
    %v1777 = vadd.f32 %v1617, %v582
    %v1778 = vadd.f32 %v1619, %v585
    %v1779 = vadd.f32 %v1621, %v588
    %v1780 = vadd.f32 %v1623, %v591
    %v1781 = vadd.f32 %v1625, %v594
    %v1782 = vadd.f32 %v1627, %v597
    %v1783 = vadd.f32 %v1629, %v600
    %v1784 = vadd.f32 %v1631, %v603
    %v1785 = vadd.f32 %v1633, %v606
    %v1786 = vadd.f32 %v1635, %v609
    %v1787 = vadd.f32 %v1637, %v612
    %v1788 = vadd.f32 %v1639, %v615
    %v1789 = vadd.f32 %v1641, %v618
    %v1790 = vadd.f32 %v1643, %v621
    %v1791 = vadd.f32 %v1645, %v624
    %v1792 = vadd.f32 %v1647, %v627
    %v1793 = vadd.f32 %v1649, %v630
    %v1794 = vadd.f32 %v1651, %v633
    %v1795 = vadd.f32 %v1653, %v636
    %v1796 = vadd.f32 %v1655, %v639
    %v1797 = vadd.f32 %v1657, %v642
    %v1798 = vadd.f32 %v1659, %v645
    %v1799 = vadd.f32 %v1661, %v648
    %v1800 = vadd.f32 %v1663, %v651
    %v1801 = vadd.f32 %v1665, %v654
    %v1802 = vadd.f32 %v1667, %v657
    %v1803 = vadd.f32 %v1669, %v660
    %v1804 = vadd.f32 %v1671, %v663
    %v1805 = vadd.f32 %v1673, %v666
    %v1806 = vadd.f32 %v1675, %v669
    %v1807 = vadd.f32 %v1677, %v672
    %v1808 = vadd.f32 %v1679, %v675
    %v1809 = vadd.f32 %v1681, %v678
    %v1810 = vadd.f32 %v1683, %v681
    %v1811 = vadd.f32 %v1685, %v684
    %v1812 = vadd.f32 %v1687, %v687
    %v1813 = vlaneseq
    %v1814 = vand.u32 %v1813, 127
    %1815 = vset.pattern.permute.xlu0 0
    %1816 = vperm.xlu0 %1815, %v187
    %v1817 = vpop.permute.xlu0 %1816
    %1818 = vset.pattern.permute.xlu0 0
    %1819 = vperm.xlu0 %1818, %v188
    %v1820 = vpop.permute.xlu0 %1819
    %1821 = vset.pattern.permute.xlu0 0
    %1822 = vperm.xlu0 %1821, %v189
    %v1823 = vpop.permute.xlu0 %1822
    %1824 = vset.pattern.permute.xlu0 0
    %1825 = vperm.xlu0 %1824, %v190
    %v1826 = vpop.permute.xlu0 %1825
    %1827 = vset.pattern.permute.xlu0 0
    %1828 = vperm.xlu0 %1827, %v191
    %v1829 = vpop.permute.xlu0 %1828
    %1830 = vset.pattern.permute.xlu0 0
    %1831 = vperm.xlu0 %1830, %v192
    %v1832 = vpop.permute.xlu0 %1831
    %1833 = vset.pattern.permute.xlu0 0
    %1834 = vperm.xlu0 %1833, %v193
    %v1835 = vpop.permute.xlu0 %1834
    %1836 = vset.pattern.permute.xlu0 0
    %1837 = vperm.xlu0 %1836, %v194
    %v1838 = vpop.permute.xlu0 %1837
    %1839 = vset.pattern.permute.xlu0 0
    %1840 = vperm.xlu0 %1839, %v195
    %v1841 = vpop.permute.xlu0 %1840
    %1842 = vset.pattern.permute.xlu0 0
    %1843 = vperm.xlu0 %1842, %v196
    %v1844 = vpop.permute.xlu0 %1843
    %1845 = vset.pattern.permute.xlu0 0
    %1846 = vperm.xlu0 %1845, %v197
    %v1847 = vpop.permute.xlu0 %1846
    %1848 = vset.pattern.permute.xlu0 0
    %1849 = vperm.xlu0 %1848, %v198
    %v1850 = vpop.permute.xlu0 %1849
    %1851 = vset.pattern.permute.xlu0 0
    %1852 = vperm.xlu0 %1851, %v199
    %v1853 = vpop.permute.xlu0 %1852
    %1854 = vset.pattern.permute.xlu0 0
    %1855 = vperm.xlu0 %1854, %v200
    %v1856 = vpop.permute.xlu0 %1855
    %1857 = vset.pattern.permute.xlu0 0
    %1858 = vperm.xlu0 %1857, %v201
    %v1859 = vpop.permute.xlu0 %1858
    %1860 = vset.pattern.permute.xlu0 0
    %1861 = vperm.xlu0 %1860, %v202
    %v1862 = vpop.permute.xlu0 %1861
    %1863 = vset.pattern.permute.xlu0 0
    %1864 = vperm.xlu0 %1863, %v203
    %v1865 = vpop.permute.xlu0 %1864
    %1866 = vset.pattern.permute.xlu0 0
    %1867 = vperm.xlu0 %1866, %v204
    %v1868 = vpop.permute.xlu0 %1867
    %1869 = vset.pattern.permute.xlu0 0
    %1870 = vperm.xlu0 %1869, %v205
    %v1871 = vpop.permute.xlu0 %1870
    %1872 = vset.pattern.permute.xlu0 0
    %1873 = vperm.xlu0 %1872, %v206
    %v1874 = vpop.permute.xlu0 %1873
    %1875 = vset.pattern.permute.xlu0 0
    %1876 = vperm.xlu0 %1875, %v207
    %v1877 = vpop.permute.xlu0 %1876
    %1878 = vset.pattern.permute.xlu0 0
    %1879 = vperm.xlu0 %1878, %v208
    %v1880 = vpop.permute.xlu0 %1879
    %1881 = vset.pattern.permute.xlu0 0
    %1882 = vperm.xlu0 %1881, %v209
    %v1883 = vpop.permute.xlu0 %1882
    %1884 = vset.pattern.permute.xlu0 0
    %1885 = vperm.xlu0 %1884, %v210
    %v1886 = vpop.permute.xlu0 %1885
    %1887 = vset.pattern.permute.xlu0 0
    %1888 = vperm.xlu0 %1887, %v211
    %v1889 = vpop.permute.xlu0 %1888
    %1890 = vset.pattern.permute.xlu0 0
    %1891 = vperm.xlu0 %1890, %v212
    %v1892 = vpop.permute.xlu0 %1891
    %1893 = vset.pattern.permute.xlu0 0
    %1894 = vperm.xlu0 %1893, %v213
    %v1895 = vpop.permute.xlu0 %1894
    %1896 = vset.pattern.permute.xlu0 0
    %1897 = vperm.xlu0 %1896, %v214
    %v1898 = vpop.permute.xlu0 %1897
    %1899 = vset.pattern.permute.xlu0 0
    %1900 = vperm.xlu0 %1899, %v215
    %v1901 = vpop.permute.xlu0 %1900
    %1902 = vset.pattern.permute.xlu0 0
    %1903 = vperm.xlu0 %1902, %v216
    %v1904 = vpop.permute.xlu0 %1903
    %1905 = vset.pattern.permute.xlu0 0
    %1906 = vperm.xlu0 %1905, %v217
    %v1907 = vpop.permute.xlu0 %1906
    %1908 = vset.pattern.permute.xlu0 0
    %1909 = vperm.xlu0 %1908, %v218
    %v1910 = vpop.permute.xlu0 %1909
    %1911 = vset.pattern.permute.xlu0 0
    %1912 = vperm.xlu0 %1911, %v219
    %v1913 = vpop.permute.xlu0 %1912
    %1914 = vset.pattern.permute.xlu0 0
    %1915 = vperm.xlu0 %1914, %v220
    %v1916 = vpop.permute.xlu0 %1915
    %1917 = vset.pattern.permute.xlu0 0
    %1918 = vperm.xlu0 %1917, %v221
    %v1919 = vpop.permute.xlu0 %1918
    %1920 = vset.pattern.permute.xlu0 0
    %1921 = vperm.xlu0 %1920, %v222
    %v1922 = vpop.permute.xlu0 %1921
    %1923 = vset.pattern.permute.xlu0 0
    %1924 = vperm.xlu0 %1923, %v223
    %v1925 = vpop.permute.xlu0 %1924
    %1926 = vset.pattern.permute.xlu0 0
    %1927 = vperm.xlu0 %1926, %v224
    %v1928 = vpop.permute.xlu0 %1927
    %1929 = vset.pattern.permute.xlu0 0
    %1930 = vperm.xlu0 %1929, %v225
    %v1931 = vpop.permute.xlu0 %1930
    %1932 = vset.pattern.permute.xlu0 0
    %1933 = vperm.xlu0 %1932, %v226
    %v1934 = vpop.permute.xlu0 %1933
    %1935 = vset.pattern.permute.xlu0 0
    %1936 = vperm.xlu0 %1935, %v227
    %v1937 = vpop.permute.xlu0 %1936
    %1938 = vset.pattern.permute.xlu0 0
    %1939 = vperm.xlu0 %1938, %v228
    %v1940 = vpop.permute.xlu0 %1939
    %1941 = vset.pattern.permute.xlu0 0
    %1942 = vperm.xlu0 %1941, %v229
    %v1943 = vpop.permute.xlu0 %1942
    %1944 = vset.pattern.permute.xlu0 0
    %1945 = vperm.xlu0 %1944, %v230
    %v1946 = vpop.permute.xlu0 %1945
    %1947 = vset.pattern.permute.xlu0 0
    %1948 = vperm.xlu0 %1947, %v231
    %v1949 = vpop.permute.xlu0 %1948
    %1950 = vset.pattern.permute.xlu0 0
    %1951 = vperm.xlu0 %1950, %v232
    %v1952 = vpop.permute.xlu0 %1951
    %1953 = vset.pattern.permute.xlu0 0
    %1954 = vperm.xlu0 %1953, %v233
    %v1955 = vpop.permute.xlu0 %1954
    %1956 = vset.pattern.permute.xlu0 0
    %1957 = vperm.xlu0 %1956, %v234
    %v1958 = vpop.permute.xlu0 %1957
    %1959 = vset.pattern.permute.xlu0 0
    %1960 = vperm.xlu0 %1959, %v235
    %v1961 = vpop.permute.xlu0 %1960
    %1962 = vset.pattern.permute.xlu0 0
    %1963 = vperm.xlu0 %1962, %v236
    %v1964 = vpop.permute.xlu0 %1963
    %1965 = vset.pattern.permute.xlu0 0
    %1966 = vperm.xlu0 %1965, %v237
    %v1967 = vpop.permute.xlu0 %1966
    %1968 = vset.pattern.permute.xlu0 0
    %1969 = vperm.xlu0 %1968, %v238
    %v1970 = vpop.permute.xlu0 %1969
    %1971 = vset.pattern.permute.xlu0 0
    %1972 = vperm.xlu0 %1971, %v239
    %v1973 = vpop.permute.xlu0 %1972
    %1974 = vset.pattern.permute.xlu0 0
    %1975 = vperm.xlu0 %1974, %v240
    %v1976 = vpop.permute.xlu0 %1975
    %1977 = vset.pattern.permute.xlu0 0
    %1978 = vperm.xlu0 %1977, %v241
    %v1979 = vpop.permute.xlu0 %1978
    %1980 = vset.pattern.permute.xlu0 0
    %1981 = vperm.xlu0 %1980, %v242
    %v1982 = vpop.permute.xlu0 %1981
    %1983 = vset.pattern.permute.xlu0 0
    %1984 = vperm.xlu0 %1983, %v243
    %v1985 = vpop.permute.xlu0 %1984
    %1986 = vset.pattern.permute.xlu0 0
    %1987 = vperm.xlu0 %1986, %v244
    %v1988 = vpop.permute.xlu0 %1987
    %1989 = vset.pattern.permute.xlu0 0
    %1990 = vperm.xlu0 %1989, %v245
    %v1991 = vpop.permute.xlu0 %1990
    %1992 = vset.pattern.permute.xlu0 0
    %1993 = vperm.xlu0 %1992, %v246
    %v1994 = vpop.permute.xlu0 %1993
    %1995 = vset.pattern.permute.xlu0 0
    %1996 = vperm.xlu0 %1995, %v247
    %v1997 = vpop.permute.xlu0 %1996
    %1998 = vset.pattern.permute.xlu0 0
    %1999 = vperm.xlu0 %1998, %v248
    %v2000 = vpop.permute.xlu0 %1999
    %2001 = vset.pattern.permute.xlu0 0
    %2002 = vperm.xlu0 %2001, %v249
    %v2003 = vpop.permute.xlu0 %2002
    %2004 = vset.pattern.permute.xlu0 0
    %2005 = vperm.xlu0 %2004, %v250
    %v2006 = vpop.permute.xlu0 %2005
    %2007 = vset.pattern.permute.xlu0 0
    %2008 = vperm.xlu0 %2007, %v251
    %v2009 = vpop.permute.xlu0 %2008
    %2010 = vset.pattern.permute.xlu0 0
    %2011 = vperm.xlu0 %2010, %v252
    %v2012 = vpop.permute.xlu0 %2011
    %2013 = vset.pattern.permute.xlu0 0
    %2014 = vperm.xlu0 %2013, %v253
    %v2015 = vpop.permute.xlu0 %2014
    %2016 = vset.pattern.permute.xlu0 0
    %2017 = vperm.xlu0 %2016, %v254
    %v2018 = vpop.permute.xlu0 %2017
    %2019 = vset.pattern.permute.xlu0 0
    %2020 = vperm.xlu0 %2019, %v255
    %v2021 = vpop.permute.xlu0 %2020
    %2022 = vset.pattern.permute.xlu0 0
    %2023 = vperm.xlu0 %2022, %v256
    %v2024 = vpop.permute.xlu0 %2023
    %2025 = vset.pattern.permute.xlu0 0
    %2026 = vperm.xlu0 %2025, %v257
    %v2027 = vpop.permute.xlu0 %2026
    %2028 = vset.pattern.permute.xlu0 0
    %2029 = vperm.xlu0 %2028, %v258
    %v2030 = vpop.permute.xlu0 %2029
    %2031 = vset.pattern.permute.xlu0 0
    %2032 = vperm.xlu0 %2031, %v259
    %v2033 = vpop.permute.xlu0 %2032
    %2034 = vset.pattern.permute.xlu0 0
    %2035 = vperm.xlu0 %2034, %v260
    %v2036 = vpop.permute.xlu0 %2035
    %2037 = vset.pattern.permute.xlu0 0
    %2038 = vperm.xlu0 %2037, %v261
    %v2039 = vpop.permute.xlu0 %2038
    %2040 = vset.pattern.permute.xlu0 0
    %2041 = vperm.xlu0 %2040, %v262
    %v2042 = vpop.permute.xlu0 %2041
    %2043 = vset.pattern.permute.xlu0 0
    %2044 = vperm.xlu0 %2043, %v263
    %v2045 = vpop.permute.xlu0 %2044
    %2046 = vset.pattern.permute.xlu0 0
    %2047 = vperm.xlu0 %2046, %v264
    %v2048 = vpop.permute.xlu0 %2047
    %2049 = vset.pattern.permute.xlu0 0
    %2050 = vperm.xlu0 %2049, %v265
    %v2051 = vpop.permute.xlu0 %2050
    %2052 = vset.pattern.permute.xlu0 0
    %2053 = vperm.xlu0 %2052, %v266
    %v2054 = vpop.permute.xlu0 %2053
    %2055 = vset.pattern.permute.xlu0 0
    %2056 = vperm.xlu0 %2055, %v267
    %v2057 = vpop.permute.xlu0 %2056
    %2058 = vset.pattern.permute.xlu0 0
    %2059 = vperm.xlu0 %2058, %v268
    %v2060 = vpop.permute.xlu0 %2059
    %2061 = vset.pattern.permute.xlu0 0
    %2062 = vperm.xlu0 %2061, %v269
    %v2063 = vpop.permute.xlu0 %2062
    %2064 = vset.pattern.permute.xlu0 0
    %2065 = vperm.xlu0 %2064, %v270
    %v2066 = vpop.permute.xlu0 %2065
    %2067 = vset.pattern.permute.xlu0 0
    %2068 = vperm.xlu0 %2067, %v271
    %v2069 = vpop.permute.xlu0 %2068
    %2070 = vset.pattern.permute.xlu0 0
    %2071 = vperm.xlu0 %2070, %v272
    %v2072 = vpop.permute.xlu0 %2071
    %2073 = vset.pattern.permute.xlu0 0
    %2074 = vperm.xlu0 %2073, %v273
    %v2075 = vpop.permute.xlu0 %2074
    %2076 = vset.pattern.permute.xlu0 0
    %2077 = vperm.xlu0 %2076, %v274
    %v2078 = vpop.permute.xlu0 %2077
    %2079 = vset.pattern.permute.xlu0 0
    %2080 = vperm.xlu0 %2079, %v275
    %v2081 = vpop.permute.xlu0 %2080
    %2082 = vset.pattern.permute.xlu0 0
    %2083 = vperm.xlu0 %2082, %v276
    %v2084 = vpop.permute.xlu0 %2083
    %2085 = vset.pattern.permute.xlu0 0
    %2086 = vperm.xlu0 %2085, %v277
    %v2087 = vpop.permute.xlu0 %2086
    %2088 = vset.pattern.permute.xlu0 0
    %2089 = vperm.xlu0 %2088, %v278
    %v2090 = vpop.permute.xlu0 %2089
    %2091 = vset.pattern.permute.xlu0 0
    %2092 = vperm.xlu0 %2091, %v279
    %v2093 = vpop.permute.xlu0 %2092
    %2094 = vset.pattern.permute.xlu0 0
    %2095 = vperm.xlu0 %2094, %v280
    %v2096 = vpop.permute.xlu0 %2095
    %2097 = vset.pattern.permute.xlu0 0
    %2098 = vperm.xlu0 %2097, %v281
    %v2099 = vpop.permute.xlu0 %2098
    %2100 = vset.pattern.permute.xlu0 0
    %2101 = vperm.xlu0 %2100, %v282
    %v2102 = vpop.permute.xlu0 %2101
    %2103 = vset.pattern.permute.xlu0 0
    %2104 = vperm.xlu0 %2103, %v283
    %v2105 = vpop.permute.xlu0 %2104
    %2106 = vset.pattern.permute.xlu0 0
    %2107 = vperm.xlu0 %2106, %v284
    %v2108 = vpop.permute.xlu0 %2107
    %2109 = vset.pattern.permute.xlu0 0
    %2110 = vperm.xlu0 %2109, %v285
    %v2111 = vpop.permute.xlu0 %2110
    %2112 = vset.pattern.permute.xlu0 0
    %2113 = vperm.xlu0 %2112, %v286
    %v2114 = vpop.permute.xlu0 %2113
    %2115 = vset.pattern.permute.xlu0 0
    %2116 = vperm.xlu0 %2115, %v287
    %v2117 = vpop.permute.xlu0 %2116
    %2118 = vset.pattern.permute.xlu0 0
    %2119 = vperm.xlu0 %2118, %v288
    %v2120 = vpop.permute.xlu0 %2119
    %2121 = vset.pattern.permute.xlu0 0
    %2122 = vperm.xlu0 %2121, %v289
    %v2123 = vpop.permute.xlu0 %2122
    %2124 = vset.pattern.permute.xlu0 0
    %2125 = vperm.xlu0 %2124, %v290
    %v2126 = vpop.permute.xlu0 %2125
    %2127 = vset.pattern.permute.xlu0 0
    %2128 = vperm.xlu0 %2127, %v291
    %v2129 = vpop.permute.xlu0 %2128
    %2130 = vset.pattern.permute.xlu0 0
    %2131 = vperm.xlu0 %2130, %v292
    %v2132 = vpop.permute.xlu0 %2131
    %2133 = vset.pattern.permute.xlu0 0
    %2134 = vperm.xlu0 %2133, %v293
    %v2135 = vpop.permute.xlu0 %2134
    %2136 = vset.pattern.permute.xlu0 0
    %2137 = vperm.xlu0 %2136, %v294
    %v2138 = vpop.permute.xlu0 %2137
    %2139 = vset.pattern.permute.xlu0 0
    %2140 = vperm.xlu0 %2139, %v295
    %v2141 = vpop.permute.xlu0 %2140
    %2142 = vset.pattern.permute.xlu0 0
    %2143 = vperm.xlu0 %2142, %v296
    %v2144 = vpop.permute.xlu0 %2143
    %2145 = vset.pattern.permute.xlu0 0
    %2146 = vperm.xlu0 %2145, %v297
    %v2147 = vpop.permute.xlu0 %2146
    %2148 = vset.pattern.permute.xlu0 0
    %2149 = vperm.xlu0 %2148, %v298
    %v2150 = vpop.permute.xlu0 %2149
    %2151 = vset.pattern.permute.xlu0 0
    %2152 = vperm.xlu0 %2151, %v299
    %v2153 = vpop.permute.xlu0 %2152
    %2154 = vset.pattern.permute.xlu0 0
    %2155 = vperm.xlu0 %2154, %v300
    %v2156 = vpop.permute.xlu0 %2155
    %2157 = vset.pattern.permute.xlu0 0
    %2158 = vperm.xlu0 %2157, %v301
    %v2159 = vpop.permute.xlu0 %2158
    %2160 = vset.pattern.permute.xlu0 0
    %2161 = vperm.xlu0 %2160, %v302
    %v2162 = vpop.permute.xlu0 %2161
    %2163 = vset.pattern.permute.xlu0 0
    %2164 = vperm.xlu0 %2163, %v303
    %v2165 = vpop.permute.xlu0 %2164
    %2166 = vset.pattern.permute.xlu0 0
    %2167 = vperm.xlu0 %2166, %v304
    %v2168 = vpop.permute.xlu0 %2167
    %2169 = vset.pattern.permute.xlu0 0
    %2170 = vperm.xlu0 %2169, %v305
    %v2171 = vpop.permute.xlu0 %2170
    %2172 = vset.pattern.permute.xlu0 0
    %2173 = vperm.xlu0 %2172, %v306
    %v2174 = vpop.permute.xlu0 %2173
    %2175 = vset.pattern.permute.xlu0 0
    %2176 = vperm.xlu0 %2175, %v307
    %v2177 = vpop.permute.xlu0 %2176
    %2178 = vset.pattern.permute.xlu0 0
    %2179 = vperm.xlu0 %2178, %v308
    %v2180 = vpop.permute.xlu0 %2179
    %2181 = vset.pattern.permute.xlu0 0
    %2182 = vperm.xlu0 %2181, %v309
    %v2183 = vpop.permute.xlu0 %2182
    %2184 = vset.pattern.permute.xlu0 0
    %2185 = vperm.xlu0 %2184, %v310
    %v2186 = vpop.permute.xlu0 %2185
    %2187 = vset.pattern.permute.xlu0 0
    %2188 = vperm.xlu0 %2187, %v311
    %v2189 = vpop.permute.xlu0 %2188
    %vm2190 = vcmp.eq.s32.totalorder %v1814, %v1817
    %vm2191 = vcmp.eq.s32.totalorder %v1814, %v1820
    %vm2192 = vcmp.eq.s32.totalorder %v1814, %v1823
    %vm2193 = vcmp.eq.s32.totalorder %v1814, %v1826
    %vm2194 = vcmp.eq.s32.totalorder %v1814, %v1829
    %vm2195 = vcmp.eq.s32.totalorder %v1814, %v1832
    %vm2196 = vcmp.eq.s32.totalorder %v1814, %v1835
    %vm2197 = vcmp.eq.s32.totalorder %v1814, %v1838
    %vm2198 = vcmp.eq.s32.totalorder %v1814, %v1841
    %vm2199 = vcmp.eq.s32.totalorder %v1814, %v1844
    %vm2200 = vcmp.eq.s32.totalorder %v1814, %v1847
    %vm2201 = vcmp.eq.s32.totalorder %v1814, %v1850
    %vm2202 = vcmp.eq.s32.totalorder %v1814, %v1853
    %vm2203 = vcmp.eq.s32.totalorder %v1814, %v1856
    %vm2204 = vcmp.eq.s32.totalorder %v1814, %v1859
    %vm2205 = vcmp.eq.s32.totalorder %v1814, %v1862
    %vm2206 = vcmp.eq.s32.totalorder %v1814, %v1865
    %vm2207 = vcmp.eq.s32.totalorder %v1814, %v1868
    %vm2208 = vcmp.eq.s32.totalorder %v1814, %v1871
    %vm2209 = vcmp.eq.s32.totalorder %v1814, %v1874
    %vm2210 = vcmp.eq.s32.totalorder %v1814, %v1877
    %vm2211 = vcmp.eq.s32.totalorder %v1814, %v1880
    %vm2212 = vcmp.eq.s32.totalorder %v1814, %v1883
    %vm2213 = vcmp.eq.s32.totalorder %v1814, %v1886
    %vm2214 = vcmp.eq.s32.totalorder %v1814, %v1889
    %vm2215 = vcmp.eq.s32.totalorder %v1814, %v1892
    %vm2216 = vcmp.eq.s32.totalorder %v1814, %v1895
    %vm2217 = vcmp.eq.s32.totalorder %v1814, %v1898
    %vm2218 = vcmp.eq.s32.totalorder %v1814, %v1901
    %vm2219 = vcmp.eq.s32.totalorder %v1814, %v1904
    %vm2220 = vcmp.eq.s32.totalorder %v1814, %v1907
    %vm2221 = vcmp.eq.s32.totalorder %v1814, %v1910
    %vm2222 = vcmp.eq.s32.totalorder %v1814, %v1913
    %vm2223 = vcmp.eq.s32.totalorder %v1814, %v1916
    %vm2224 = vcmp.eq.s32.totalorder %v1814, %v1919
    %vm2225 = vcmp.eq.s32.totalorder %v1814, %v1922
    %vm2226 = vcmp.eq.s32.totalorder %v1814, %v1925
    %vm2227 = vcmp.eq.s32.totalorder %v1814, %v1928
    %vm2228 = vcmp.eq.s32.totalorder %v1814, %v1931
    %vm2229 = vcmp.eq.s32.totalorder %v1814, %v1934
    %vm2230 = vcmp.eq.s32.totalorder %v1814, %v1937
    %vm2231 = vcmp.eq.s32.totalorder %v1814, %v1940
    %vm2232 = vcmp.eq.s32.totalorder %v1814, %v1943
    %vm2233 = vcmp.eq.s32.totalorder %v1814, %v1946
    %vm2234 = vcmp.eq.s32.totalorder %v1814, %v1949
    %vm2235 = vcmp.eq.s32.totalorder %v1814, %v1952
    %vm2236 = vcmp.eq.s32.totalorder %v1814, %v1955
    %vm2237 = vcmp.eq.s32.totalorder %v1814, %v1958
    %vm2238 = vcmp.eq.s32.totalorder %v1814, %v1961
    %vm2239 = vcmp.eq.s32.totalorder %v1814, %v1964
    %vm2240 = vcmp.eq.s32.totalorder %v1814, %v1967
    %vm2241 = vcmp.eq.s32.totalorder %v1814, %v1970
    %vm2242 = vcmp.eq.s32.totalorder %v1814, %v1973
    %vm2243 = vcmp.eq.s32.totalorder %v1814, %v1976
    %vm2244 = vcmp.eq.s32.totalorder %v1814, %v1979
    %vm2245 = vcmp.eq.s32.totalorder %v1814, %v1982
    %vm2246 = vcmp.eq.s32.totalorder %v1814, %v1985
    %vm2247 = vcmp.eq.s32.totalorder %v1814, %v1988
    %vm2248 = vcmp.eq.s32.totalorder %v1814, %v1991
    %vm2249 = vcmp.eq.s32.totalorder %v1814, %v1994
    %vm2250 = vcmp.eq.s32.totalorder %v1814, %v1997
    %vm2251 = vcmp.eq.s32.totalorder %v1814, %v2000
    %vm2252 = vcmp.eq.s32.totalorder %v1814, %v2003
    %vm2253 = vcmp.eq.s32.totalorder %v1814, %v2006
    %vm2254 = vcmp.eq.s32.totalorder %v1814, %v2009
    %vm2255 = vcmp.eq.s32.totalorder %v1814, %v2012
    %vm2256 = vcmp.eq.s32.totalorder %v1814, %v2015
    %vm2257 = vcmp.eq.s32.totalorder %v1814, %v2018
    %vm2258 = vcmp.eq.s32.totalorder %v1814, %v2021
    %vm2259 = vcmp.eq.s32.totalorder %v1814, %v2024
    %vm2260 = vcmp.eq.s32.totalorder %v1814, %v2027
    %vm2261 = vcmp.eq.s32.totalorder %v1814, %v2030
    %vm2262 = vcmp.eq.s32.totalorder %v1814, %v2033
    %vm2263 = vcmp.eq.s32.totalorder %v1814, %v2036
    %vm2264 = vcmp.eq.s32.totalorder %v1814, %v2039
    %vm2265 = vcmp.eq.s32.totalorder %v1814, %v2042
    %vm2266 = vcmp.eq.s32.totalorder %v1814, %v2045
    %vm2267 = vcmp.eq.s32.totalorder %v1814, %v2048
    %vm2268 = vcmp.eq.s32.totalorder %v1814, %v2051
    %vm2269 = vcmp.eq.s32.totalorder %v1814, %v2054
    %vm2270 = vcmp.eq.s32.totalorder %v1814, %v2057
    %vm2271 = vcmp.eq.s32.totalorder %v1814, %v2060
    %vm2272 = vcmp.eq.s32.totalorder %v1814, %v2063
    %vm2273 = vcmp.eq.s32.totalorder %v1814, %v2066
    %vm2274 = vcmp.eq.s32.totalorder %v1814, %v2069
    %vm2275 = vcmp.eq.s32.totalorder %v1814, %v2072
    %vm2276 = vcmp.eq.s32.totalorder %v1814, %v2075
    %vm2277 = vcmp.eq.s32.totalorder %v1814, %v2078
    %vm2278 = vcmp.eq.s32.totalorder %v1814, %v2081
    %vm2279 = vcmp.eq.s32.totalorder %v1814, %v2084
    %vm2280 = vcmp.eq.s32.totalorder %v1814, %v2087
    %vm2281 = vcmp.eq.s32.totalorder %v1814, %v2090
    %vm2282 = vcmp.eq.s32.totalorder %v1814, %v2093
    %vm2283 = vcmp.eq.s32.totalorder %v1814, %v2096
    %vm2284 = vcmp.eq.s32.totalorder %v1814, %v2099
    %vm2285 = vcmp.eq.s32.totalorder %v1814, %v2102
    %vm2286 = vcmp.eq.s32.totalorder %v1814, %v2105
    %vm2287 = vcmp.eq.s32.totalorder %v1814, %v2108
    %vm2288 = vcmp.eq.s32.totalorder %v1814, %v2111
    %vm2289 = vcmp.eq.s32.totalorder %v1814, %v2114
    %vm2290 = vcmp.eq.s32.totalorder %v1814, %v2117
    %vm2291 = vcmp.eq.s32.totalorder %v1814, %v2120
    %vm2292 = vcmp.eq.s32.totalorder %v1814, %v2123
    %vm2293 = vcmp.eq.s32.totalorder %v1814, %v2126
    %vm2294 = vcmp.eq.s32.totalorder %v1814, %v2129
    %vm2295 = vcmp.eq.s32.totalorder %v1814, %v2132
    %vm2296 = vcmp.eq.s32.totalorder %v1814, %v2135
    %vm2297 = vcmp.eq.s32.totalorder %v1814, %v2138
    %vm2298 = vcmp.eq.s32.totalorder %v1814, %v2141
    %vm2299 = vcmp.eq.s32.totalorder %v1814, %v2144
    %vm2300 = vcmp.eq.s32.totalorder %v1814, %v2147
    %vm2301 = vcmp.eq.s32.totalorder %v1814, %v2150
    %vm2302 = vcmp.eq.s32.totalorder %v1814, %v2153
    %vm2303 = vcmp.eq.s32.totalorder %v1814, %v2156
    %vm2304 = vcmp.eq.s32.totalorder %v1814, %v2159
    %vm2305 = vcmp.eq.s32.totalorder %v1814, %v2162
    %vm2306 = vcmp.eq.s32.totalorder %v1814, %v2165
    %vm2307 = vcmp.eq.s32.totalorder %v1814, %v2168
    %vm2308 = vcmp.eq.s32.totalorder %v1814, %v2171
    %vm2309 = vcmp.eq.s32.totalorder %v1814, %v2174
    %vm2310 = vcmp.eq.s32.totalorder %v1814, %v2177
    %vm2311 = vcmp.eq.s32.totalorder %v1814, %v2180
    %vm2312 = vcmp.eq.s32.totalorder %v1814, %v2183
    %vm2313 = vcmp.eq.s32.totalorder %v1814, %v2186
    %vm2314 = vcmp.eq.s32.totalorder %v1814, %v2189
    %v2315 = vsel %vm2190, %v62, 0.0
    %v2316 = vsel %vm2191, %v63, 0.0
    %v2317 = vsel %vm2192, %v64, 0.0
    %v2318 = vsel %vm2193, %v65, 0.0
    %v2319 = vsel %vm2194, %v66, 0.0
    %v2320 = vsel %vm2195, %v67, 0.0
    %v2321 = vsel %vm2196, %v68, 0.0
    %v2322 = vsel %vm2197, %v69, 0.0
    %v2323 = vsel %vm2198, %v70, 0.0
    %v2324 = vsel %vm2199, %v71, 0.0
    %v2325 = vsel %vm2200, %v72, 0.0
    %v2326 = vsel %vm2201, %v73, 0.0
    %v2327 = vsel %vm2202, %v74, 0.0
    %v2328 = vsel %vm2203, %v75, 0.0
    %v2329 = vsel %vm2204, %v76, 0.0
    %v2330 = vsel %vm2205, %v77, 0.0
    %v2331 = vsel %vm2206, %v78, 0.0
    %v2332 = vsel %vm2207, %v79, 0.0
    %v2333 = vsel %vm2208, %v80, 0.0
    %v2334 = vsel %vm2209, %v81, 0.0
    %v2335 = vsel %vm2210, %v82, 0.0
    %v2336 = vsel %vm2211, %v83, 0.0
    %v2337 = vsel %vm2212, %v84, 0.0
    %v2338 = vsel %vm2213, %v85, 0.0
    %v2339 = vsel %vm2214, %v86, 0.0
    %v2340 = vsel %vm2215, %v87, 0.0
    %v2341 = vsel %vm2216, %v88, 0.0
    %v2342 = vsel %vm2217, %v89, 0.0
    %v2343 = vsel %vm2218, %v90, 0.0
    %v2344 = vsel %vm2219, %v91, 0.0
    %v2345 = vsel %vm2220, %v92, 0.0
    %v2346 = vsel %vm2221, %v93, 0.0
    %v2347 = vsel %vm2222, %v94, 0.0
    %v2348 = vsel %vm2223, %v95, 0.0
    %v2349 = vsel %vm2224, %v96, 0.0
    %v2350 = vsel %vm2225, %v97, 0.0
    %v2351 = vsel %vm2226, %v98, 0.0
    %v2352 = vsel %vm2227, %v99, 0.0
    %v2353 = vsel %vm2228, %v100, 0.0
    %v2354 = vsel %vm2229, %v101, 0.0
    %v2355 = vsel %vm2230, %v102, 0.0
    %v2356 = vsel %vm2231, %v103, 0.0
    %v2357 = vsel %vm2232, %v104, 0.0
    %v2358 = vsel %vm2233, %v105, 0.0
    %v2359 = vsel %vm2234, %v106, 0.0
    %v2360 = vsel %vm2235, %v107, 0.0
    %v2361 = vsel %vm2236, %v108, 0.0
    %v2362 = vsel %vm2237, %v109, 0.0
    %v2363 = vsel %vm2238, %v110, 0.0
    %v2364 = vsel %vm2239, %v111, 0.0
    %v2365 = vsel %vm2240, %v112, 0.0
    %v2366 = vsel %vm2241, %v113, 0.0
    %v2367 = vsel %vm2242, %v114, 0.0
    %v2368 = vsel %vm2243, %v115, 0.0
    %v2369 = vsel %vm2244, %v116, 0.0
    %v2370 = vsel %vm2245, %v117, 0.0
    %v2371 = vsel %vm2246, %v118, 0.0
    %v2372 = vsel %vm2247, %v119, 0.0
    %v2373 = vsel %vm2248, %v120, 0.0
    %v2374 = vsel %vm2249, %v121, 0.0
    %v2375 = vsel %vm2250, %v122, 0.0
    %v2376 = vsel %vm2251, %v123, 0.0
    %v2377 = vsel %vm2252, %v124, 0.0
    %v2378 = vsel %vm2253, %v125, 0.0
    %v2379 = vsel %vm2254, %v126, 0.0
    %v2380 = vsel %vm2255, %v127, 0.0
    %v2381 = vsel %vm2256, %v128, 0.0
    %v2382 = vsel %vm2257, %v129, 0.0
    %v2383 = vsel %vm2258, %v130, 0.0
    %v2384 = vsel %vm2259, %v131, 0.0
    %v2385 = vsel %vm2260, %v132, 0.0
    %v2386 = vsel %vm2261, %v133, 0.0
    %v2387 = vsel %vm2262, %v134, 0.0
    %v2388 = vsel %vm2263, %v135, 0.0
    %v2389 = vsel %vm2264, %v136, 0.0
    %v2390 = vsel %vm2265, %v137, 0.0
    %v2391 = vsel %vm2266, %v138, 0.0
    %v2392 = vsel %vm2267, %v139, 0.0
    %v2393 = vsel %vm2268, %v140, 0.0
    %v2394 = vsel %vm2269, %v141, 0.0
    %v2395 = vsel %vm2270, %v142, 0.0
    %v2396 = vsel %vm2271, %v143, 0.0
    %v2397 = vsel %vm2272, %v144, 0.0
    %v2398 = vsel %vm2273, %v145, 0.0
    %v2399 = vsel %vm2274, %v146, 0.0
    %v2400 = vsel %vm2275, %v147, 0.0
    %v2401 = vsel %vm2276, %v148, 0.0
    %v2402 = vsel %vm2277, %v149, 0.0
    %v2403 = vsel %vm2278, %v150, 0.0
    %v2404 = vsel %vm2279, %v151, 0.0
    %v2405 = vsel %vm2280, %v152, 0.0
    %v2406 = vsel %vm2281, %v153, 0.0
    %v2407 = vsel %vm2282, %v154, 0.0
    %v2408 = vsel %vm2283, %v155, 0.0
    %v2409 = vsel %vm2284, %v156, 0.0
    %v2410 = vsel %vm2285, %v157, 0.0
    %v2411 = vsel %vm2286, %v158, 0.0
    %v2412 = vsel %vm2287, %v159, 0.0
    %v2413 = vsel %vm2288, %v160, 0.0
    %v2414 = vsel %vm2289, %v161, 0.0
    %v2415 = vsel %vm2290, %v162, 0.0
    %v2416 = vsel %vm2291, %v163, 0.0
    %v2417 = vsel %vm2292, %v164, 0.0
    %v2418 = vsel %vm2293, %v165, 0.0
    %v2419 = vsel %vm2294, %v166, 0.0
    %v2420 = vsel %vm2295, %v167, 0.0
    %v2421 = vsel %vm2296, %v168, 0.0
    %v2422 = vsel %vm2297, %v169, 0.0
    %v2423 = vsel %vm2298, %v170, 0.0
    %v2424 = vsel %vm2299, %v171, 0.0
    %v2425 = vsel %vm2300, %v172, 0.0
    %v2426 = vsel %vm2301, %v173, 0.0
    %v2427 = vsel %vm2302, %v174, 0.0
    %v2428 = vsel %vm2303, %v175, 0.0
    %v2429 = vsel %vm2304, %v176, 0.0
    %v2430 = vsel %vm2305, %v177, 0.0
    %v2431 = vsel %vm2306, %v178, 0.0
    %v2432 = vsel %vm2307, %v179, 0.0
    %v2433 = vsel %vm2308, %v180, 0.0
    %v2434 = vsel %vm2309, %v181, 0.0
    %v2435 = vsel %vm2310, %v182, 0.0
    %v2436 = vsel %vm2311, %v183, 0.0
    %v2437 = vsel %vm2312, %v184, 0.0
    %v2438 = vsel %vm2313, %v185, 0.0
    %v2439 = vsel %vm2314, %v186, 0.0
    %v2440 = vsel %vm312, %v2315, 0.0
    %2441 = vadd.xlane.f32.xlu0 %v2440
    %v2442 = vpop.xlane.xlu0 %2441
    %v2443 = vsel %vm312, %v2316, 0.0
    %2444 = vadd.xlane.f32.xlu0 %v2443
    %v2445 = vpop.xlane.xlu0 %2444
    %v2446 = vsel %vm312, %v2317, 0.0
    %2447 = vadd.xlane.f32.xlu0 %v2446
    %v2448 = vpop.xlane.xlu0 %2447
    %v2449 = vsel %vm312, %v2318, 0.0
    %2450 = vadd.xlane.f32.xlu0 %v2449
    %v2451 = vpop.xlane.xlu0 %2450
    %v2452 = vsel %vm312, %v2319, 0.0
    %2453 = vadd.xlane.f32.xlu0 %v2452
    %v2454 = vpop.xlane.xlu0 %2453
    %v2455 = vsel %vm312, %v2320, 0.0
    %2456 = vadd.xlane.f32.xlu0 %v2455
    %v2457 = vpop.xlane.xlu0 %2456
    %v2458 = vsel %vm312, %v2321, 0.0
    %2459 = vadd.xlane.f32.xlu0 %v2458
    %v2460 = vpop.xlane.xlu0 %2459
    %v2461 = vsel %vm312, %v2322, 0.0
    %2462 = vadd.xlane.f32.xlu0 %v2461
    %v2463 = vpop.xlane.xlu0 %2462
    %v2464 = vsel %vm312, %v2323, 0.0
    %2465 = vadd.xlane.f32.xlu0 %v2464
    %v2466 = vpop.xlane.xlu0 %2465
    %v2467 = vsel %vm312, %v2324, 0.0
    %2468 = vadd.xlane.f32.xlu0 %v2467
    %v2469 = vpop.xlane.xlu0 %2468
    %v2470 = vsel %vm312, %v2325, 0.0
    %2471 = vadd.xlane.f32.xlu0 %v2470
    %v2472 = vpop.xlane.xlu0 %2471
    %v2473 = vsel %vm312, %v2326, 0.0
    %2474 = vadd.xlane.f32.xlu0 %v2473
    %v2475 = vpop.xlane.xlu0 %2474
    %v2476 = vsel %vm312, %v2327, 0.0
    %2477 = vadd.xlane.f32.xlu0 %v2476
    %v2478 = vpop.xlane.xlu0 %2477
    %v2479 = vsel %vm312, %v2328, 0.0
    %2480 = vadd.xlane.f32.xlu0 %v2479
    %v2481 = vpop.xlane.xlu0 %2480
    %v2482 = vsel %vm312, %v2329, 0.0
    %2483 = vadd.xlane.f32.xlu0 %v2482
    %v2484 = vpop.xlane.xlu0 %2483
    %v2485 = vsel %vm312, %v2330, 0.0
    %2486 = vadd.xlane.f32.xlu0 %v2485
    %v2487 = vpop.xlane.xlu0 %2486
    %v2488 = vsel %vm312, %v2331, 0.0
    %2489 = vadd.xlane.f32.xlu0 %v2488
    %v2490 = vpop.xlane.xlu0 %2489
    %v2491 = vsel %vm312, %v2332, 0.0
    %2492 = vadd.xlane.f32.xlu0 %v2491
    %v2493 = vpop.xlane.xlu0 %2492
    %v2494 = vsel %vm312, %v2333, 0.0
    %2495 = vadd.xlane.f32.xlu0 %v2494
    %v2496 = vpop.xlane.xlu0 %2495
    %v2497 = vsel %vm312, %v2334, 0.0
    %2498 = vadd.xlane.f32.xlu0 %v2497
    %v2499 = vpop.xlane.xlu0 %2498
    %v2500 = vsel %vm312, %v2335, 0.0
    %2501 = vadd.xlane.f32.xlu0 %v2500
    %v2502 = vpop.xlane.xlu0 %2501
    %v2503 = vsel %vm312, %v2336, 0.0
    %2504 = vadd.xlane.f32.xlu0 %v2503
    %v2505 = vpop.xlane.xlu0 %2504
    %v2506 = vsel %vm312, %v2337, 0.0
    %2507 = vadd.xlane.f32.xlu0 %v2506
    %v2508 = vpop.xlane.xlu0 %2507
    %v2509 = vsel %vm312, %v2338, 0.0
    %2510 = vadd.xlane.f32.xlu0 %v2509
    %v2511 = vpop.xlane.xlu0 %2510
    %v2512 = vsel %vm312, %v2339, 0.0
    %2513 = vadd.xlane.f32.xlu0 %v2512
    %v2514 = vpop.xlane.xlu0 %2513
    %v2515 = vsel %vm312, %v2340, 0.0
    %2516 = vadd.xlane.f32.xlu0 %v2515
    %v2517 = vpop.xlane.xlu0 %2516
    %v2518 = vsel %vm312, %v2341, 0.0
    %2519 = vadd.xlane.f32.xlu0 %v2518
    %v2520 = vpop.xlane.xlu0 %2519
    %v2521 = vsel %vm312, %v2342, 0.0
    %2522 = vadd.xlane.f32.xlu0 %v2521
    %v2523 = vpop.xlane.xlu0 %2522
    %v2524 = vsel %vm312, %v2343, 0.0
    %2525 = vadd.xlane.f32.xlu0 %v2524
    %v2526 = vpop.xlane.xlu0 %2525
    %v2527 = vsel %vm312, %v2344, 0.0
    %2528 = vadd.xlane.f32.xlu0 %v2527
    %v2529 = vpop.xlane.xlu0 %2528
    %v2530 = vsel %vm312, %v2345, 0.0
    %2531 = vadd.xlane.f32.xlu0 %v2530
    %v2532 = vpop.xlane.xlu0 %2531
    %v2533 = vsel %vm312, %v2346, 0.0
    %2534 = vadd.xlane.f32.xlu0 %v2533
    %v2535 = vpop.xlane.xlu0 %2534
    %v2536 = vsel %vm312, %v2347, 0.0
    %2537 = vadd.xlane.f32.xlu0 %v2536
    %v2538 = vpop.xlane.xlu0 %2537
    %v2539 = vsel %vm312, %v2348, 0.0
    %2540 = vadd.xlane.f32.xlu0 %v2539
    %v2541 = vpop.xlane.xlu0 %2540
    %v2542 = vsel %vm312, %v2349, 0.0
    %2543 = vadd.xlane.f32.xlu0 %v2542
    %v2544 = vpop.xlane.xlu0 %2543
    %v2545 = vsel %vm312, %v2350, 0.0
    %2546 = vadd.xlane.f32.xlu0 %v2545
    %v2547 = vpop.xlane.xlu0 %2546
    %v2548 = vsel %vm312, %v2351, 0.0
    %2549 = vadd.xlane.f32.xlu0 %v2548
    %v2550 = vpop.xlane.xlu0 %2549
    %v2551 = vsel %vm312, %v2352, 0.0
    %2552 = vadd.xlane.f32.xlu0 %v2551
    %v2553 = vpop.xlane.xlu0 %2552
    %v2554 = vsel %vm312, %v2353, 0.0
    %2555 = vadd.xlane.f32.xlu0 %v2554
    %v2556 = vpop.xlane.xlu0 %2555
    %v2557 = vsel %vm312, %v2354, 0.0
    %2558 = vadd.xlane.f32.xlu0 %v2557
    %v2559 = vpop.xlane.xlu0 %2558
    %v2560 = vsel %vm312, %v2355, 0.0
    %2561 = vadd.xlane.f32.xlu0 %v2560
    %v2562 = vpop.xlane.xlu0 %2561
    %v2563 = vsel %vm312, %v2356, 0.0
    %2564 = vadd.xlane.f32.xlu0 %v2563
    %v2565 = vpop.xlane.xlu0 %2564
    %v2566 = vsel %vm312, %v2357, 0.0
    %2567 = vadd.xlane.f32.xlu0 %v2566
    %v2568 = vpop.xlane.xlu0 %2567
    %v2569 = vsel %vm312, %v2358, 0.0
    %2570 = vadd.xlane.f32.xlu0 %v2569
    %v2571 = vpop.xlane.xlu0 %2570
    %v2572 = vsel %vm312, %v2359, 0.0
    %2573 = vadd.xlane.f32.xlu0 %v2572
    %v2574 = vpop.xlane.xlu0 %2573
    %v2575 = vsel %vm312, %v2360, 0.0
    %2576 = vadd.xlane.f32.xlu0 %v2575
    %v2577 = vpop.xlane.xlu0 %2576
    %v2578 = vsel %vm312, %v2361, 0.0
    %2579 = vadd.xlane.f32.xlu0 %v2578
    %v2580 = vpop.xlane.xlu0 %2579
    %v2581 = vsel %vm312, %v2362, 0.0
    %2582 = vadd.xlane.f32.xlu0 %v2581
    %v2583 = vpop.xlane.xlu0 %2582
    %v2584 = vsel %vm312, %v2363, 0.0
    %2585 = vadd.xlane.f32.xlu0 %v2584
    %v2586 = vpop.xlane.xlu0 %2585
    %v2587 = vsel %vm312, %v2364, 0.0
    %2588 = vadd.xlane.f32.xlu0 %v2587
    %v2589 = vpop.xlane.xlu0 %2588
    %v2590 = vsel %vm312, %v2365, 0.0
    %2591 = vadd.xlane.f32.xlu0 %v2590
    %v2592 = vpop.xlane.xlu0 %2591
    %v2593 = vsel %vm312, %v2366, 0.0
    %2594 = vadd.xlane.f32.xlu0 %v2593
    %v2595 = vpop.xlane.xlu0 %2594
    %v2596 = vsel %vm312, %v2367, 0.0
    %2597 = vadd.xlane.f32.xlu0 %v2596
    %v2598 = vpop.xlane.xlu0 %2597
    %v2599 = vsel %vm312, %v2368, 0.0
    %2600 = vadd.xlane.f32.xlu0 %v2599
    %v2601 = vpop.xlane.xlu0 %2600
    %v2602 = vsel %vm312, %v2369, 0.0
    %2603 = vadd.xlane.f32.xlu0 %v2602
    %v2604 = vpop.xlane.xlu0 %2603
    %v2605 = vsel %vm312, %v2370, 0.0
    %2606 = vadd.xlane.f32.xlu0 %v2605
    %v2607 = vpop.xlane.xlu0 %2606
    %v2608 = vsel %vm312, %v2371, 0.0
    %2609 = vadd.xlane.f32.xlu0 %v2608
    %v2610 = vpop.xlane.xlu0 %2609
    %v2611 = vsel %vm312, %v2372, 0.0
    %2612 = vadd.xlane.f32.xlu0 %v2611
    %v2613 = vpop.xlane.xlu0 %2612
    %v2614 = vsel %vm312, %v2373, 0.0
    %2615 = vadd.xlane.f32.xlu0 %v2614
    %v2616 = vpop.xlane.xlu0 %2615
    %v2617 = vsel %vm312, %v2374, 0.0
    %2618 = vadd.xlane.f32.xlu0 %v2617
    %v2619 = vpop.xlane.xlu0 %2618
    %v2620 = vsel %vm312, %v2375, 0.0
    %2621 = vadd.xlane.f32.xlu0 %v2620
    %v2622 = vpop.xlane.xlu0 %2621
    %v2623 = vsel %vm312, %v2376, 0.0
    %2624 = vadd.xlane.f32.xlu0 %v2623
    %v2625 = vpop.xlane.xlu0 %2624
    %v2626 = vsel %vm312, %v2377, 0.0
    %2627 = vadd.xlane.f32.xlu0 %v2626
    %v2628 = vpop.xlane.xlu0 %2627
    %v2629 = vsel %vm312, %v2378, 0.0
    %2630 = vadd.xlane.f32.xlu0 %v2629
    %v2631 = vpop.xlane.xlu0 %2630
    %v2632 = vsel %vm312, %v2379, 0.0
    %2633 = vadd.xlane.f32.xlu0 %v2632
    %v2634 = vpop.xlane.xlu0 %2633
    %v2635 = vsel %vm312, %v2380, 0.0
    %2636 = vadd.xlane.f32.xlu0 %v2635
    %v2637 = vpop.xlane.xlu0 %2636
    %v2638 = vsel %vm312, %v2381, 0.0
    %2639 = vadd.xlane.f32.xlu0 %v2638
    %v2640 = vpop.xlane.xlu0 %2639
    %v2641 = vsel %vm312, %v2382, 0.0
    %2642 = vadd.xlane.f32.xlu0 %v2641
    %v2643 = vpop.xlane.xlu0 %2642
    %v2644 = vsel %vm312, %v2383, 0.0
    %2645 = vadd.xlane.f32.xlu0 %v2644
    %v2646 = vpop.xlane.xlu0 %2645
    %v2647 = vsel %vm312, %v2384, 0.0
    %2648 = vadd.xlane.f32.xlu0 %v2647
    %v2649 = vpop.xlane.xlu0 %2648
    %v2650 = vsel %vm312, %v2385, 0.0
    %2651 = vadd.xlane.f32.xlu0 %v2650
    %v2652 = vpop.xlane.xlu0 %2651
    %v2653 = vsel %vm312, %v2386, 0.0
    %2654 = vadd.xlane.f32.xlu0 %v2653
    %v2655 = vpop.xlane.xlu0 %2654
    %v2656 = vsel %vm312, %v2387, 0.0
    %2657 = vadd.xlane.f32.xlu0 %v2656
    %v2658 = vpop.xlane.xlu0 %2657
    %v2659 = vsel %vm312, %v2388, 0.0
    %2660 = vadd.xlane.f32.xlu0 %v2659
    %v2661 = vpop.xlane.xlu0 %2660
    %v2662 = vsel %vm312, %v2389, 0.0
    %2663 = vadd.xlane.f32.xlu0 %v2662
    %v2664 = vpop.xlane.xlu0 %2663
    %v2665 = vsel %vm312, %v2390, 0.0
    %2666 = vadd.xlane.f32.xlu0 %v2665
    %v2667 = vpop.xlane.xlu0 %2666
    %v2668 = vsel %vm312, %v2391, 0.0
    %2669 = vadd.xlane.f32.xlu0 %v2668
    %v2670 = vpop.xlane.xlu0 %2669
    %v2671 = vsel %vm312, %v2392, 0.0
    %2672 = vadd.xlane.f32.xlu0 %v2671
    %v2673 = vpop.xlane.xlu0 %2672
    %v2674 = vsel %vm312, %v2393, 0.0
    %2675 = vadd.xlane.f32.xlu0 %v2674
    %v2676 = vpop.xlane.xlu0 %2675
    %v2677 = vsel %vm312, %v2394, 0.0
    %2678 = vadd.xlane.f32.xlu0 %v2677
    %v2679 = vpop.xlane.xlu0 %2678
    %v2680 = vsel %vm312, %v2395, 0.0
    %2681 = vadd.xlane.f32.xlu0 %v2680
    %v2682 = vpop.xlane.xlu0 %2681
    %v2683 = vsel %vm312, %v2396, 0.0
    %2684 = vadd.xlane.f32.xlu0 %v2683
    %v2685 = vpop.xlane.xlu0 %2684
    %v2686 = vsel %vm312, %v2397, 0.0
    %2687 = vadd.xlane.f32.xlu0 %v2686
    %v2688 = vpop.xlane.xlu0 %2687
    %v2689 = vsel %vm312, %v2398, 0.0
    %2690 = vadd.xlane.f32.xlu0 %v2689
    %v2691 = vpop.xlane.xlu0 %2690
    %v2692 = vsel %vm312, %v2399, 0.0
    %2693 = vadd.xlane.f32.xlu0 %v2692
    %v2694 = vpop.xlane.xlu0 %2693
    %v2695 = vsel %vm312, %v2400, 0.0
    %2696 = vadd.xlane.f32.xlu0 %v2695
    %v2697 = vpop.xlane.xlu0 %2696
    %v2698 = vsel %vm312, %v2401, 0.0
    %2699 = vadd.xlane.f32.xlu0 %v2698
    %v2700 = vpop.xlane.xlu0 %2699
    %v2701 = vsel %vm312, %v2402, 0.0
    %2702 = vadd.xlane.f32.xlu0 %v2701
    %v2703 = vpop.xlane.xlu0 %2702
    %v2704 = vsel %vm312, %v2403, 0.0
    %2705 = vadd.xlane.f32.xlu0 %v2704
    %v2706 = vpop.xlane.xlu0 %2705
    %v2707 = vsel %vm312, %v2404, 0.0
    %2708 = vadd.xlane.f32.xlu0 %v2707
    %v2709 = vpop.xlane.xlu0 %2708
    %v2710 = vsel %vm312, %v2405, 0.0
    %2711 = vadd.xlane.f32.xlu0 %v2710
    %v2712 = vpop.xlane.xlu0 %2711
    %v2713 = vsel %vm312, %v2406, 0.0
    %2714 = vadd.xlane.f32.xlu0 %v2713
    %v2715 = vpop.xlane.xlu0 %2714
    %v2716 = vsel %vm312, %v2407, 0.0
    %2717 = vadd.xlane.f32.xlu0 %v2716
    %v2718 = vpop.xlane.xlu0 %2717
    %v2719 = vsel %vm312, %v2408, 0.0
    %2720 = vadd.xlane.f32.xlu0 %v2719
    %v2721 = vpop.xlane.xlu0 %2720
    %v2722 = vsel %vm312, %v2409, 0.0
    %2723 = vadd.xlane.f32.xlu0 %v2722
    %v2724 = vpop.xlane.xlu0 %2723
    %v2725 = vsel %vm312, %v2410, 0.0
    %2726 = vadd.xlane.f32.xlu0 %v2725
    %v2727 = vpop.xlane.xlu0 %2726
    %v2728 = vsel %vm312, %v2411, 0.0
    %2729 = vadd.xlane.f32.xlu0 %v2728
    %v2730 = vpop.xlane.xlu0 %2729
    %v2731 = vsel %vm312, %v2412, 0.0
    %2732 = vadd.xlane.f32.xlu0 %v2731
    %v2733 = vpop.xlane.xlu0 %2732
    %v2734 = vsel %vm312, %v2413, 0.0
    %2735 = vadd.xlane.f32.xlu0 %v2734
    %v2736 = vpop.xlane.xlu0 %2735
    %v2737 = vsel %vm312, %v2414, 0.0
    %2738 = vadd.xlane.f32.xlu0 %v2737
    %v2739 = vpop.xlane.xlu0 %2738
    %v2740 = vsel %vm312, %v2415, 0.0
    %2741 = vadd.xlane.f32.xlu0 %v2740
    %v2742 = vpop.xlane.xlu0 %2741
    %v2743 = vsel %vm312, %v2416, 0.0
    %2744 = vadd.xlane.f32.xlu0 %v2743
    %v2745 = vpop.xlane.xlu0 %2744
    %v2746 = vsel %vm312, %v2417, 0.0
    %2747 = vadd.xlane.f32.xlu0 %v2746
    %v2748 = vpop.xlane.xlu0 %2747
    %v2749 = vsel %vm312, %v2418, 0.0
    %2750 = vadd.xlane.f32.xlu0 %v2749
    %v2751 = vpop.xlane.xlu0 %2750
    %v2752 = vsel %vm312, %v2419, 0.0
    %2753 = vadd.xlane.f32.xlu0 %v2752
    %v2754 = vpop.xlane.xlu0 %2753
    %v2755 = vsel %vm312, %v2420, 0.0
    %2756 = vadd.xlane.f32.xlu0 %v2755
    %v2757 = vpop.xlane.xlu0 %2756
    %v2758 = vsel %vm312, %v2421, 0.0
    %2759 = vadd.xlane.f32.xlu0 %v2758
    %v2760 = vpop.xlane.xlu0 %2759
    %v2761 = vsel %vm312, %v2422, 0.0
    %2762 = vadd.xlane.f32.xlu0 %v2761
    %v2763 = vpop.xlane.xlu0 %2762
    %v2764 = vsel %vm312, %v2423, 0.0
    %2765 = vadd.xlane.f32.xlu0 %v2764
    %v2766 = vpop.xlane.xlu0 %2765
    %v2767 = vsel %vm312, %v2424, 0.0
    %2768 = vadd.xlane.f32.xlu0 %v2767
    %v2769 = vpop.xlane.xlu0 %2768
    %v2770 = vsel %vm312, %v2425, 0.0
    %2771 = vadd.xlane.f32.xlu0 %v2770
    %v2772 = vpop.xlane.xlu0 %2771
    %v2773 = vsel %vm312, %v2426, 0.0
    %2774 = vadd.xlane.f32.xlu0 %v2773
    %v2775 = vpop.xlane.xlu0 %2774
    %v2776 = vsel %vm312, %v2427, 0.0
    %2777 = vadd.xlane.f32.xlu0 %v2776
    %v2778 = vpop.xlane.xlu0 %2777
    %v2779 = vsel %vm312, %v2428, 0.0
    %2780 = vadd.xlane.f32.xlu0 %v2779
    %v2781 = vpop.xlane.xlu0 %2780
    %v2782 = vsel %vm312, %v2429, 0.0
    %2783 = vadd.xlane.f32.xlu0 %v2782
    %v2784 = vpop.xlane.xlu0 %2783
    %v2785 = vsel %vm312, %v2430, 0.0
    %2786 = vadd.xlane.f32.xlu0 %v2785
    %v2787 = vpop.xlane.xlu0 %2786
    %v2788 = vsel %vm312, %v2431, 0.0
    %2789 = vadd.xlane.f32.xlu0 %v2788
    %v2790 = vpop.xlane.xlu0 %2789
    %v2791 = vsel %vm312, %v2432, 0.0
    %2792 = vadd.xlane.f32.xlu0 %v2791
    %v2793 = vpop.xlane.xlu0 %2792
    %v2794 = vsel %vm312, %v2433, 0.0
    %2795 = vadd.xlane.f32.xlu0 %v2794
    %v2796 = vpop.xlane.xlu0 %2795
    %v2797 = vsel %vm312, %v2434, 0.0
    %2798 = vadd.xlane.f32.xlu0 %v2797
    %v2799 = vpop.xlane.xlu0 %2798
    %v2800 = vsel %vm312, %v2435, 0.0
    %2801 = vadd.xlane.f32.xlu0 %v2800
    %v2802 = vpop.xlane.xlu0 %2801
    %v2803 = vsel %vm312, %v2436, 0.0
    %2804 = vadd.xlane.f32.xlu0 %v2803
    %v2805 = vpop.xlane.xlu0 %2804
    %v2806 = vsel %vm312, %v2437, 0.0
    %2807 = vadd.xlane.f32.xlu0 %v2806
    %v2808 = vpop.xlane.xlu0 %2807
    %v2809 = vsel %vm312, %v2438, 0.0
    %2810 = vadd.xlane.f32.xlu0 %v2809
    %v2811 = vpop.xlane.xlu0 %2810
    %v2812 = vsel %vm312, %v2439, 0.0
    %2813 = vadd.xlane.f32.xlu0 %v2812
    %v2814 = vpop.xlane.xlu0 %2813
    %s2815 = sadd.s32 0, 0
    %s2816 = smul.u32 %s2815, 1000
    %v2817 = vlaneseq
    %v2818 = vshrl.u32 %v2817, 7
    %v2819 = vadd.s32 %v2818, 8
    %v2820 = vadd.s32 %v2818, 16
    %v2821 = vadd.s32 %v2818, 24
    %v2822 = vadd.s32 %v2818, 32
    %v2823 = vadd.s32 %v2818, 40
    %v2824 = vadd.s32 %v2818, 48
    %v2825 = vadd.s32 %v2818, 56
    %v2826 = vadd.s32 %v2818, 64
    %v2827 = vadd.s32 %v2818, 72
    %v2828 = vadd.s32 %v2818, 80
    %v2829 = vadd.s32 %v2818, 88
    %v2830 = vadd.s32 %v2818, 96
    %v2831 = vadd.s32 %v2818, 104
    %v2832 = vadd.s32 %v2818, 112
    %v2833 = vadd.s32 %v2818, 120
    %v2834 = vadd.s32 %v2818, 128
    %v2835 = vadd.s32 %v2818, 136
    %v2836 = vadd.s32 %v2818, 144
    %v2837 = vadd.s32 %v2818, 152
    %v2838 = vadd.s32 %v2818, 160
    %v2839 = vadd.s32 %v2818, 168
    %v2840 = vadd.s32 %v2818, 176
    %v2841 = vadd.s32 %v2818, 184
    %v2842 = vadd.s32 %v2818, 192
    %v2843 = vadd.s32 %v2818, 200
    %v2844 = vadd.s32 %v2818, 208
    %v2845 = vadd.s32 %v2818, 216
    %v2846 = vadd.s32 %v2818, 224
    %v2847 = vadd.s32 %v2818, 232
    %v2848 = vadd.s32 %v2818, 240
    %v2849 = vadd.s32 %v2818, 248
    %v2850 = vadd.s32 %v2818, 256
    %v2851 = vadd.s32 %v2818, 264
    %v2852 = vadd.s32 %v2818, 272
    %v2853 = vadd.s32 %v2818, 280
    %v2854 = vadd.s32 %v2818, 288
    %v2855 = vadd.s32 %v2818, 296
    %v2856 = vadd.s32 %v2818, 304
    %v2857 = vadd.s32 %v2818, 312
    %v2858 = vadd.s32 %v2818, 320
    %v2859 = vadd.s32 %v2818, 328
    %v2860 = vadd.s32 %v2818, 336
    %v2861 = vadd.s32 %v2818, 344
    %v2862 = vadd.s32 %v2818, 352
    %v2863 = vadd.s32 %v2818, 360
    %v2864 = vadd.s32 %v2818, 368
    %v2865 = vadd.s32 %v2818, 376
    %v2866 = vadd.s32 %v2818, 384
    %v2867 = vadd.s32 %v2818, 392
    %v2868 = vadd.s32 %v2818, 400
    %v2869 = vadd.s32 %v2818, 408
    %v2870 = vadd.s32 %v2818, 416
    %v2871 = vadd.s32 %v2818, 424
    %v2872 = vadd.s32 %v2818, 432
    %v2873 = vadd.s32 %v2818, 440
    %v2874 = vadd.s32 %v2818, 448
    %v2875 = vadd.s32 %v2818, 456
    %v2876 = vadd.s32 %v2818, 464
    %v2877 = vadd.s32 %v2818, 472
    %v2878 = vadd.s32 %v2818, 480
    %v2879 = vadd.s32 %v2818, 488
    %v2880 = vadd.s32 %v2818, 496
    %v2881 = vadd.s32 %v2818, 504
    %v2882 = vadd.s32 %v2818, 512
    %v2883 = vadd.s32 %v2818, 520
    %v2884 = vadd.s32 %v2818, 528
    %v2885 = vadd.s32 %v2818, 536
    %v2886 = vadd.s32 %v2818, 544
    %v2887 = vadd.s32 %v2818, 552
    %v2888 = vadd.s32 %v2818, 560
    %v2889 = vadd.s32 %v2818, 568
    %v2890 = vadd.s32 %v2818, 576
    %v2891 = vadd.s32 %v2818, 584
    %v2892 = vadd.s32 %v2818, 592
    %v2893 = vadd.s32 %v2818, 600
    %v2894 = vadd.s32 %v2818, 608
    %v2895 = vadd.s32 %v2818, 616
    %v2896 = vadd.s32 %v2818, 624
    %v2897 = vadd.s32 %v2818, 632
    %v2898 = vadd.s32 %v2818, 640
    %v2899 = vadd.s32 %v2818, 648
    %v2900 = vadd.s32 %v2818, 656
    %v2901 = vadd.s32 %v2818, 664
    %v2902 = vadd.s32 %v2818, 672
    %v2903 = vadd.s32 %v2818, 680
    %v2904 = vadd.s32 %v2818, 688
    %v2905 = vadd.s32 %v2818, 696
    %v2906 = vadd.s32 %v2818, 704
    %v2907 = vadd.s32 %v2818, 712
    %v2908 = vadd.s32 %v2818, 720
    %v2909 = vadd.s32 %v2818, 728
    %v2910 = vadd.s32 %v2818, 736
    %v2911 = vadd.s32 %v2818, 744
    %v2912 = vadd.s32 %v2818, 752
    %v2913 = vadd.s32 %v2818, 760
    %v2914 = vadd.s32 %v2818, 768
    %v2915 = vadd.s32 %v2818, 776
    %v2916 = vadd.s32 %v2818, 784
    %v2917 = vadd.s32 %v2818, 792
    %v2918 = vadd.s32 %v2818, 800
    %v2919 = vadd.s32 %v2818, 808
    %v2920 = vadd.s32 %v2818, 816
    %v2921 = vadd.s32 %v2818, 824
    %v2922 = vadd.s32 %v2818, 832
    %v2923 = vadd.s32 %v2818, 840
    %v2924 = vadd.s32 %v2818, 848
    %v2925 = vadd.s32 %v2818, 856
    %v2926 = vadd.s32 %v2818, 864
    %v2927 = vadd.s32 %v2818, 872
    %v2928 = vadd.s32 %v2818, 880
    %v2929 = vadd.s32 %v2818, 888
    %v2930 = vadd.s32 %v2818, 896
    %v2931 = vadd.s32 %v2818, 904
    %v2932 = vadd.s32 %v2818, 912
    %v2933 = vadd.s32 %v2818, 920
    %v2934 = vadd.s32 %v2818, 928
    %v2935 = vadd.s32 %v2818, 936
    %v2936 = vadd.s32 %v2818, 944
    %v2937 = vadd.s32 %v2818, 952
    %v2938 = vadd.s32 %v2818, 960
    %v2939 = vadd.s32 %v2818, 968
    %v2940 = vadd.s32 %v2818, 976
    %v2941 = vadd.s32 %v2818, 984
    %v2942 = vadd.s32 %v2818, 992
    %v2943 = vstv %s2816
    %v2944 = vadd.s32 %v2943, %v2818
    %v2945 = vadd.s32 %v2943, %v2819
    %v2946 = vadd.s32 %v2943, %v2820
    %v2947 = vadd.s32 %v2943, %v2821
    %v2948 = vadd.s32 %v2943, %v2822
    %v2949 = vadd.s32 %v2943, %v2823
    %v2950 = vadd.s32 %v2943, %v2824
    %v2951 = vadd.s32 %v2943, %v2825
    %v2952 = vadd.s32 %v2943, %v2826
    %v2953 = vadd.s32 %v2943, %v2827
    %v2954 = vadd.s32 %v2943, %v2828
    %v2955 = vadd.s32 %v2943, %v2829
    %v2956 = vadd.s32 %v2943, %v2830
    %v2957 = vadd.s32 %v2943, %v2831
    %v2958 = vadd.s32 %v2943, %v2832
    %v2959 = vadd.s32 %v2943, %v2833
    %v2960 = vadd.s32 %v2943, %v2834
    %v2961 = vadd.s32 %v2943, %v2835
    %v2962 = vadd.s32 %v2943, %v2836
    %v2963 = vadd.s32 %v2943, %v2837
    %v2964 = vadd.s32 %v2943, %v2838
    %v2965 = vadd.s32 %v2943, %v2839
    %v2966 = vadd.s32 %v2943, %v2840
    %v2967 = vadd.s32 %v2943, %v2841
    %v2968 = vadd.s32 %v2943, %v2842
    %v2969 = vadd.s32 %v2943, %v2843
    %v2970 = vadd.s32 %v2943, %v2844
    %v2971 = vadd.s32 %v2943, %v2845
    %v2972 = vadd.s32 %v2943, %v2846
    %v2973 = vadd.s32 %v2943, %v2847
    %v2974 = vadd.s32 %v2943, %v2848
    %v2975 = vadd.s32 %v2943, %v2849
    %v2976 = vadd.s32 %v2943, %v2850
    %v2977 = vadd.s32 %v2943, %v2851
    %v2978 = vadd.s32 %v2943, %v2852
    %v2979 = vadd.s32 %v2943, %v2853
    %v2980 = vadd.s32 %v2943, %v2854
    %v2981 = vadd.s32 %v2943, %v2855
    %v2982 = vadd.s32 %v2943, %v2856
    %v2983 = vadd.s32 %v2943, %v2857
    %v2984 = vadd.s32 %v2943, %v2858
    %v2985 = vadd.s32 %v2943, %v2859
    %v2986 = vadd.s32 %v2943, %v2860
    %v2987 = vadd.s32 %v2943, %v2861
    %v2988 = vadd.s32 %v2943, %v2862
    %v2989 = vadd.s32 %v2943, %v2863
    %v2990 = vadd.s32 %v2943, %v2864
    %v2991 = vadd.s32 %v2943, %v2865
    %v2992 = vadd.s32 %v2943, %v2866
    %v2993 = vadd.s32 %v2943, %v2867
    %v2994 = vadd.s32 %v2943, %v2868
    %v2995 = vadd.s32 %v2943, %v2869
    %v2996 = vadd.s32 %v2943, %v2870
    %v2997 = vadd.s32 %v2943, %v2871
    %v2998 = vadd.s32 %v2943, %v2872
    %v2999 = vadd.s32 %v2943, %v2873
    %v3000 = vadd.s32 %v2943, %v2874
    %v3001 = vadd.s32 %v2943, %v2875
    %v3002 = vadd.s32 %v2943, %v2876
    %v3003 = vadd.s32 %v2943, %v2877
    %v3004 = vadd.s32 %v2943, %v2878
    %v3005 = vadd.s32 %v2943, %v2879
    %v3006 = vadd.s32 %v2943, %v2880
    %v3007 = vadd.s32 %v2943, %v2881
    %v3008 = vadd.s32 %v2943, %v2882
    %v3009 = vadd.s32 %v2943, %v2883
    %v3010 = vadd.s32 %v2943, %v2884
    %v3011 = vadd.s32 %v2943, %v2885
    %v3012 = vadd.s32 %v2943, %v2886
    %v3013 = vadd.s32 %v2943, %v2887
    %v3014 = vadd.s32 %v2943, %v2888
    %v3015 = vadd.s32 %v2943, %v2889
    %v3016 = vadd.s32 %v2943, %v2890
    %v3017 = vadd.s32 %v2943, %v2891
    %v3018 = vadd.s32 %v2943, %v2892
    %v3019 = vadd.s32 %v2943, %v2893
    %v3020 = vadd.s32 %v2943, %v2894
    %v3021 = vadd.s32 %v2943, %v2895
    %v3022 = vadd.s32 %v2943, %v2896
    %v3023 = vadd.s32 %v2943, %v2897
    %v3024 = vadd.s32 %v2943, %v2898
    %v3025 = vadd.s32 %v2943, %v2899
    %v3026 = vadd.s32 %v2943, %v2900
    %v3027 = vadd.s32 %v2943, %v2901
    %v3028 = vadd.s32 %v2943, %v2902
    %v3029 = vadd.s32 %v2943, %v2903
    %v3030 = vadd.s32 %v2943, %v2904
    %v3031 = vadd.s32 %v2943, %v2905
    %v3032 = vadd.s32 %v2943, %v2906
    %v3033 = vadd.s32 %v2943, %v2907
    %v3034 = vadd.s32 %v2943, %v2908
    %v3035 = vadd.s32 %v2943, %v2909
    %v3036 = vadd.s32 %v2943, %v2910
    %v3037 = vadd.s32 %v2943, %v2911
    %v3038 = vadd.s32 %v2943, %v2912
    %v3039 = vadd.s32 %v2943, %v2913
    %v3040 = vadd.s32 %v2943, %v2914
    %v3041 = vadd.s32 %v2943, %v2915
    %v3042 = vadd.s32 %v2943, %v2916
    %v3043 = vadd.s32 %v2943, %v2917
    %v3044 = vadd.s32 %v2943, %v2918
    %v3045 = vadd.s32 %v2943, %v2919
    %v3046 = vadd.s32 %v2943, %v2920
    %v3047 = vadd.s32 %v2943, %v2921
    %v3048 = vadd.s32 %v2943, %v2922
    %v3049 = vadd.s32 %v2943, %v2923
    %v3050 = vadd.s32 %v2943, %v2924
    %v3051 = vadd.s32 %v2943, %v2925
    %v3052 = vadd.s32 %v2943, %v2926
    %v3053 = vadd.s32 %v2943, %v2927
    %v3054 = vadd.s32 %v2943, %v2928
    %v3055 = vadd.s32 %v2943, %v2929
    %v3056 = vadd.s32 %v2943, %v2930
    %v3057 = vadd.s32 %v2943, %v2931
    %v3058 = vadd.s32 %v2943, %v2932
    %v3059 = vadd.s32 %v2943, %v2933
    %v3060 = vadd.s32 %v2943, %v2934
    %v3061 = vadd.s32 %v2943, %v2935
    %v3062 = vadd.s32 %v2943, %v2936
    %v3063 = vadd.s32 %v2943, %v2937
    %v3064 = vadd.s32 %v2943, %v2938
    %v3065 = vadd.s32 %v2943, %v2939
    %v3066 = vadd.s32 %v2943, %v2940
    %v3067 = vadd.s32 %v2943, %v2941
    %v3068 = vadd.s32 %v2943, %v2942
    %vm3069 = vcmp.lt.s32.totalorder %v2944, 1000
    %vm3070 = vcmp.lt.s32.totalorder %v2945, 1000
    %vm3071 = vcmp.lt.s32.totalorder %v2946, 1000
    %vm3072 = vcmp.lt.s32.totalorder %v2947, 1000
    %vm3073 = vcmp.lt.s32.totalorder %v2948, 1000
    %vm3074 = vcmp.lt.s32.totalorder %v2949, 1000
    %vm3075 = vcmp.lt.s32.totalorder %v2950, 1000
    %vm3076 = vcmp.lt.s32.totalorder %v2951, 1000
    %vm3077 = vcmp.lt.s32.totalorder %v2952, 1000
    %vm3078 = vcmp.lt.s32.totalorder %v2953, 1000
    %vm3079 = vcmp.lt.s32.totalorder %v2954, 1000
    %vm3080 = vcmp.lt.s32.totalorder %v2955, 1000
    %vm3081 = vcmp.lt.s32.totalorder %v2956, 1000
    %vm3082 = vcmp.lt.s32.totalorder %v2957, 1000
    %vm3083 = vcmp.lt.s32.totalorder %v2958, 1000
    %vm3084 = vcmp.lt.s32.totalorder %v2959, 1000
    %vm3085 = vcmp.lt.s32.totalorder %v2960, 1000
    %vm3086 = vcmp.lt.s32.totalorder %v2961, 1000
    %vm3087 = vcmp.lt.s32.totalorder %v2962, 1000
    %vm3088 = vcmp.lt.s32.totalorder %v2963, 1000
    %vm3089 = vcmp.lt.s32.totalorder %v2964, 1000
    %vm3090 = vcmp.lt.s32.totalorder %v2965, 1000
    %vm3091 = vcmp.lt.s32.totalorder %v2966, 1000
    %vm3092 = vcmp.lt.s32.totalorder %v2967, 1000
    %vm3093 = vcmp.lt.s32.totalorder %v2968, 1000
    %vm3094 = vcmp.lt.s32.totalorder %v2969, 1000
    %vm3095 = vcmp.lt.s32.totalorder %v2970, 1000
    %vm3096 = vcmp.lt.s32.totalorder %v2971, 1000
    %vm3097 = vcmp.lt.s32.totalorder %v2972, 1000
    %vm3098 = vcmp.lt.s32.totalorder %v2973, 1000
    %vm3099 = vcmp.lt.s32.totalorder %v2974, 1000
    %vm3100 = vcmp.lt.s32.totalorder %v2975, 1000
    %vm3101 = vcmp.lt.s32.totalorder %v2976, 1000
    %vm3102 = vcmp.lt.s32.totalorder %v2977, 1000
    %vm3103 = vcmp.lt.s32.totalorder %v2978, 1000
    %vm3104 = vcmp.lt.s32.totalorder %v2979, 1000
    %vm3105 = vcmp.lt.s32.totalorder %v2980, 1000
    %vm3106 = vcmp.lt.s32.totalorder %v2981, 1000
    %vm3107 = vcmp.lt.s32.totalorder %v2982, 1000
    %vm3108 = vcmp.lt.s32.totalorder %v2983, 1000
    %vm3109 = vcmp.lt.s32.totalorder %v2984, 1000
    %vm3110 = vcmp.lt.s32.totalorder %v2985, 1000
    %vm3111 = vcmp.lt.s32.totalorder %v2986, 1000
    %vm3112 = vcmp.lt.s32.totalorder %v2987, 1000
    %vm3113 = vcmp.lt.s32.totalorder %v2988, 1000
    %vm3114 = vcmp.lt.s32.totalorder %v2989, 1000
    %vm3115 = vcmp.lt.s32.totalorder %v2990, 1000
    %vm3116 = vcmp.lt.s32.totalorder %v2991, 1000
    %vm3117 = vcmp.lt.s32.totalorder %v2992, 1000
    %vm3118 = vcmp.lt.s32.totalorder %v2993, 1000
    %vm3119 = vcmp.lt.s32.totalorder %v2994, 1000
    %vm3120 = vcmp.lt.s32.totalorder %v2995, 1000
    %vm3121 = vcmp.lt.s32.totalorder %v2996, 1000
    %vm3122 = vcmp.lt.s32.totalorder %v2997, 1000
    %vm3123 = vcmp.lt.s32.totalorder %v2998, 1000
    %vm3124 = vcmp.lt.s32.totalorder %v2999, 1000
    %vm3125 = vcmp.lt.s32.totalorder %v3000, 1000
    %vm3126 = vcmp.lt.s32.totalorder %v3001, 1000
    %vm3127 = vcmp.lt.s32.totalorder %v3002, 1000
    %vm3128 = vcmp.lt.s32.totalorder %v3003, 1000
    %vm3129 = vcmp.lt.s32.totalorder %v3004, 1000
    %vm3130 = vcmp.lt.s32.totalorder %v3005, 1000
    %vm3131 = vcmp.lt.s32.totalorder %v3006, 1000
    %vm3132 = vcmp.lt.s32.totalorder %v3007, 1000
    %vm3133 = vcmp.lt.s32.totalorder %v3008, 1000
    %vm3134 = vcmp.lt.s32.totalorder %v3009, 1000
    %vm3135 = vcmp.lt.s32.totalorder %v3010, 1000
    %vm3136 = vcmp.lt.s32.totalorder %v3011, 1000
    %vm3137 = vcmp.lt.s32.totalorder %v3012, 1000
    %vm3138 = vcmp.lt.s32.totalorder %v3013, 1000
    %vm3139 = vcmp.lt.s32.totalorder %v3014, 1000
    %vm3140 = vcmp.lt.s32.totalorder %v3015, 1000
    %vm3141 = vcmp.lt.s32.totalorder %v3016, 1000
    %vm3142 = vcmp.lt.s32.totalorder %v3017, 1000
    %vm3143 = vcmp.lt.s32.totalorder %v3018, 1000
    %vm3144 = vcmp.lt.s32.totalorder %v3019, 1000
    %vm3145 = vcmp.lt.s32.totalorder %v3020, 1000
    %vm3146 = vcmp.lt.s32.totalorder %v3021, 1000
    %vm3147 = vcmp.lt.s32.totalorder %v3022, 1000
    %vm3148 = vcmp.lt.s32.totalorder %v3023, 1000
    %vm3149 = vcmp.lt.s32.totalorder %v3024, 1000
    %vm3150 = vcmp.lt.s32.totalorder %v3025, 1000
    %vm3151 = vcmp.lt.s32.totalorder %v3026, 1000
    %vm3152 = vcmp.lt.s32.totalorder %v3027, 1000
    %vm3153 = vcmp.lt.s32.totalorder %v3028, 1000
    %vm3154 = vcmp.lt.s32.totalorder %v3029, 1000
    %vm3155 = vcmp.lt.s32.totalorder %v3030, 1000
    %vm3156 = vcmp.lt.s32.totalorder %v3031, 1000
    %vm3157 = vcmp.lt.s32.totalorder %v3032, 1000
    %vm3158 = vcmp.lt.s32.totalorder %v3033, 1000
    %vm3159 = vcmp.lt.s32.totalorder %v3034, 1000
    %vm3160 = vcmp.lt.s32.totalorder %v3035, 1000
    %vm3161 = vcmp.lt.s32.totalorder %v3036, 1000
    %vm3162 = vcmp.lt.s32.totalorder %v3037, 1000
    %vm3163 = vcmp.lt.s32.totalorder %v3038, 1000
    %vm3164 = vcmp.lt.s32.totalorder %v3039, 1000
    %vm3165 = vcmp.lt.s32.totalorder %v3040, 1000
    %vm3166 = vcmp.lt.s32.totalorder %v3041, 1000
    %vm3167 = vcmp.lt.s32.totalorder %v3042, 1000
    %vm3168 = vcmp.lt.s32.totalorder %v3043, 1000
    %vm3169 = vcmp.lt.s32.totalorder %v3044, 1000
    %vm3170 = vcmp.lt.s32.totalorder %v3045, 1000
    %vm3171 = vcmp.lt.s32.totalorder %v3046, 1000
    %vm3172 = vcmp.lt.s32.totalorder %v3047, 1000
    %vm3173 = vcmp.lt.s32.totalorder %v3048, 1000
    %vm3174 = vcmp.lt.s32.totalorder %v3049, 1000
    %vm3175 = vcmp.lt.s32.totalorder %v3050, 1000
    %vm3176 = vcmp.lt.s32.totalorder %v3051, 1000
    %vm3177 = vcmp.lt.s32.totalorder %v3052, 1000
    %vm3178 = vcmp.lt.s32.totalorder %v3053, 1000
    %vm3179 = vcmp.lt.s32.totalorder %v3054, 1000
    %vm3180 = vcmp.lt.s32.totalorder %v3055, 1000
    %vm3181 = vcmp.lt.s32.totalorder %v3056, 1000
    %vm3182 = vcmp.lt.s32.totalorder %v3057, 1000
    %vm3183 = vcmp.lt.s32.totalorder %v3058, 1000
    %vm3184 = vcmp.lt.s32.totalorder %v3059, 1000
    %vm3185 = vcmp.lt.s32.totalorder %v3060, 1000
    %vm3186 = vcmp.lt.s32.totalorder %v3061, 1000
    %vm3187 = vcmp.lt.s32.totalorder %v3062, 1000
    %vm3188 = vcmp.lt.s32.totalorder %v3063, 1000
    %vm3189 = vcmp.lt.s32.totalorder %v3064, 1000
    %vm3190 = vcmp.lt.s32.totalorder %v3065, 1000
    %vm3191 = vcmp.lt.s32.totalorder %v3066, 1000
    %vm3192 = vcmp.lt.s32.totalorder %v3067, 1000
    %vm3193 = vcmp.lt.s32.totalorder %v3068, 1000
    %v3194 = vsub.f32 %v1688, %v2442
    %v3195 = vsub.f32 %v1689, %v2445
    %v3196 = vsub.f32 %v1690, %v2448
    %v3197 = vsub.f32 %v1691, %v2451
    %v3198 = vsub.f32 %v1692, %v2454
    %v3199 = vsub.f32 %v1693, %v2457
    %v3200 = vsub.f32 %v1694, %v2460
    %v3201 = vsub.f32 %v1695, %v2463
    %v3202 = vsub.f32 %v1696, %v2466
    %v3203 = vsub.f32 %v1697, %v2469
    %v3204 = vsub.f32 %v1698, %v2472
    %v3205 = vsub.f32 %v1699, %v2475
    %v3206 = vsub.f32 %v1700, %v2478
    %v3207 = vsub.f32 %v1701, %v2481
    %v3208 = vsub.f32 %v1702, %v2484
    %v3209 = vsub.f32 %v1703, %v2487
    %v3210 = vsub.f32 %v1704, %v2490
    %v3211 = vsub.f32 %v1705, %v2493
    %v3212 = vsub.f32 %v1706, %v2496
    %v3213 = vsub.f32 %v1707, %v2499
    %v3214 = vsub.f32 %v1708, %v2502
    %v3215 = vsub.f32 %v1709, %v2505
    %v3216 = vsub.f32 %v1710, %v2508
    %v3217 = vsub.f32 %v1711, %v2511
    %v3218 = vsub.f32 %v1712, %v2514
    %v3219 = vsub.f32 %v1713, %v2517
    %v3220 = vsub.f32 %v1714, %v2520
    %v3221 = vsub.f32 %v1715, %v2523
    %v3222 = vsub.f32 %v1716, %v2526
    %v3223 = vsub.f32 %v1717, %v2529
    %v3224 = vsub.f32 %v1718, %v2532
    %v3225 = vsub.f32 %v1719, %v2535
    %v3226 = vsub.f32 %v1720, %v2538
    %v3227 = vsub.f32 %v1721, %v2541
    %v3228 = vsub.f32 %v1722, %v2544
    %v3229 = vsub.f32 %v1723, %v2547
    %v3230 = vsub.f32 %v1724, %v2550
    %v3231 = vsub.f32 %v1725, %v2553
    %v3232 = vsub.f32 %v1726, %v2556
    %v3233 = vsub.f32 %v1727, %v2559
    %v3234 = vsub.f32 %v1728, %v2562
    %v3235 = vsub.f32 %v1729, %v2565
    %v3236 = vsub.f32 %v1730, %v2568
    %v3237 = vsub.f32 %v1731, %v2571
    %v3238 = vsub.f32 %v1732, %v2574
    %v3239 = vsub.f32 %v1733, %v2577
    %v3240 = vsub.f32 %v1734, %v2580
    %v3241 = vsub.f32 %v1735, %v2583
    %v3242 = vsub.f32 %v1736, %v2586
    %v3243 = vsub.f32 %v1737, %v2589
    %v3244 = vsub.f32 %v1738, %v2592
    %v3245 = vsub.f32 %v1739, %v2595
    %v3246 = vsub.f32 %v1740, %v2598
    %v3247 = vsub.f32 %v1741, %v2601
    %v3248 = vsub.f32 %v1742, %v2604
    %v3249 = vsub.f32 %v1743, %v2607
    %v3250 = vsub.f32 %v1744, %v2610
    %v3251 = vsub.f32 %v1745, %v2613
    %v3252 = vsub.f32 %v1746, %v2616
    %v3253 = vsub.f32 %v1747, %v2619
    %v3254 = vsub.f32 %v1748, %v2622
    %v3255 = vsub.f32 %v1749, %v2625
    %v3256 = vsub.f32 %v1750, %v2628
    %v3257 = vsub.f32 %v1751, %v2631
    %v3258 = vsub.f32 %v1752, %v2634
    %v3259 = vsub.f32 %v1753, %v2637
    %v3260 = vsub.f32 %v1754, %v2640
    %v3261 = vsub.f32 %v1755, %v2643
    %v3262 = vsub.f32 %v1756, %v2646
    %v3263 = vsub.f32 %v1757, %v2649
    %v3264 = vsub.f32 %v1758, %v2652
    %v3265 = vsub.f32 %v1759, %v2655
    %v3266 = vsub.f32 %v1760, %v2658
    %v3267 = vsub.f32 %v1761, %v2661
    %v3268 = vsub.f32 %v1762, %v2664
    %v3269 = vsub.f32 %v1763, %v2667
    %v3270 = vsub.f32 %v1764, %v2670
    %v3271 = vsub.f32 %v1765, %v2673
    %v3272 = vsub.f32 %v1766, %v2676
    %v3273 = vsub.f32 %v1767, %v2679
    %v3274 = vsub.f32 %v1768, %v2682
    %v3275 = vsub.f32 %v1769, %v2685
    %v3276 = vsub.f32 %v1770, %v2688
    %v3277 = vsub.f32 %v1771, %v2691
    %v3278 = vsub.f32 %v1772, %v2694
    %v3279 = vsub.f32 %v1773, %v2697
    %v3280 = vsub.f32 %v1774, %v2700
    %v3281 = vsub.f32 %v1775, %v2703
    %v3282 = vsub.f32 %v1776, %v2706
    %v3283 = vsub.f32 %v1777, %v2709
    %v3284 = vsub.f32 %v1778, %v2712
    %v3285 = vsub.f32 %v1779, %v2715
    %v3286 = vsub.f32 %v1780, %v2718
    %v3287 = vsub.f32 %v1781, %v2721
    %v3288 = vsub.f32 %v1782, %v2724
    %v3289 = vsub.f32 %v1783, %v2727
    %v3290 = vsub.f32 %v1784, %v2730
    %v3291 = vsub.f32 %v1785, %v2733
    %v3292 = vsub.f32 %v1786, %v2736
    %v3293 = vsub.f32 %v1787, %v2739
    %v3294 = vsub.f32 %v1788, %v2742
    %v3295 = vsub.f32 %v1789, %v2745
    %v3296 = vsub.f32 %v1790, %v2748
    %v3297 = vsub.f32 %v1791, %v2751
    %v3298 = vsub.f32 %v1792, %v2754
    %v3299 = vsub.f32 %v1793, %v2757
    %v3300 = vsub.f32 %v1794, %v2760
    %v3301 = vsub.f32 %v1795, %v2763
    %v3302 = vsub.f32 %v1796, %v2766
    %v3303 = vsub.f32 %v1797, %v2769
    %v3304 = vsub.f32 %v1798, %v2772
    %v3305 = vsub.f32 %v1799, %v2775
    %v3306 = vsub.f32 %v1800, %v2778
    %v3307 = vsub.f32 %v1801, %v2781
    %v3308 = vsub.f32 %v1802, %v2784
    %v3309 = vsub.f32 %v1803, %v2787
    %v3310 = vsub.f32 %v1804, %v2790
    %v3311 = vsub.f32 %v1805, %v2793
    %v3312 = vsub.f32 %v1806, %v2796
    %v3313 = vsub.f32 %v1807, %v2799
    %v3314 = vsub.f32 %v1808, %v2802
    %v3315 = vsub.f32 %v1809, %v2805
    %v3316 = vsub.f32 %v1810, %v2808
    %v3317 = vsub.f32 %v1811, %v2811
    %v3318 = vsub.f32 %v1812, %v2814
    %v3319 = vsel %vm3069, %v3194, 0.0
    %v3320 = vsel %vm3070, %v3195, 0.0
    %v3321 = vsel %vm3071, %v3196, 0.0
    %v3322 = vsel %vm3072, %v3197, 0.0
    %v3323 = vsel %vm3073, %v3198, 0.0
    %v3324 = vsel %vm3074, %v3199, 0.0
    %v3325 = vsel %vm3075, %v3200, 0.0
    %v3326 = vsel %vm3076, %v3201, 0.0
    %v3327 = vsel %vm3077, %v3202, 0.0
    %v3328 = vsel %vm3078, %v3203, 0.0
    %v3329 = vsel %vm3079, %v3204, 0.0
    %v3330 = vsel %vm3080, %v3205, 0.0
    %v3331 = vsel %vm3081, %v3206, 0.0
    %v3332 = vsel %vm3082, %v3207, 0.0
    %v3333 = vsel %vm3083, %v3208, 0.0
    %v3334 = vsel %vm3084, %v3209, 0.0
    %v3335 = vsel %vm3085, %v3210, 0.0
    %v3336 = vsel %vm3086, %v3211, 0.0
    %v3337 = vsel %vm3087, %v3212, 0.0
    %v3338 = vsel %vm3088, %v3213, 0.0
    %v3339 = vsel %vm3089, %v3214, 0.0
    %v3340 = vsel %vm3090, %v3215, 0.0
    %v3341 = vsel %vm3091, %v3216, 0.0
    %v3342 = vsel %vm3092, %v3217, 0.0
    %v3343 = vsel %vm3093, %v3218, 0.0
    %v3344 = vsel %vm3094, %v3219, 0.0
    %v3345 = vsel %vm3095, %v3220, 0.0
    %v3346 = vsel %vm3096, %v3221, 0.0
    %v3347 = vsel %vm3097, %v3222, 0.0
    %v3348 = vsel %vm3098, %v3223, 0.0
    %v3349 = vsel %vm3099, %v3224, 0.0
    %v3350 = vsel %vm3100, %v3225, 0.0
    %v3351 = vsel %vm3101, %v3226, 0.0
    %v3352 = vsel %vm3102, %v3227, 0.0
    %v3353 = vsel %vm3103, %v3228, 0.0
    %v3354 = vsel %vm3104, %v3229, 0.0
    %v3355 = vsel %vm3105, %v3230, 0.0
    %v3356 = vsel %vm3106, %v3231, 0.0
    %v3357 = vsel %vm3107, %v3232, 0.0
    %v3358 = vsel %vm3108, %v3233, 0.0
    %v3359 = vsel %vm3109, %v3234, 0.0
    %v3360 = vsel %vm3110, %v3235, 0.0
    %v3361 = vsel %vm3111, %v3236, 0.0
    %v3362 = vsel %vm3112, %v3237, 0.0
    %v3363 = vsel %vm3113, %v3238, 0.0
    %v3364 = vsel %vm3114, %v3239, 0.0
    %v3365 = vsel %vm3115, %v3240, 0.0
    %v3366 = vsel %vm3116, %v3241, 0.0
    %v3367 = vsel %vm3117, %v3242, 0.0
    %v3368 = vsel %vm3118, %v3243, 0.0
    %v3369 = vsel %vm3119, %v3244, 0.0
    %v3370 = vsel %vm3120, %v3245, 0.0
    %v3371 = vsel %vm3121, %v3246, 0.0
    %v3372 = vsel %vm3122, %v3247, 0.0
    %v3373 = vsel %vm3123, %v3248, 0.0
    %v3374 = vsel %vm3124, %v3249, 0.0
    %v3375 = vsel %vm3125, %v3250, 0.0
    %v3376 = vsel %vm3126, %v3251, 0.0
    %v3377 = vsel %vm3127, %v3252, 0.0
    %v3378 = vsel %vm3128, %v3253, 0.0
    %v3379 = vsel %vm3129, %v3254, 0.0
    %v3380 = vsel %vm3130, %v3255, 0.0
    %v3381 = vsel %vm3131, %v3256, 0.0
    %v3382 = vsel %vm3132, %v3257, 0.0
    %v3383 = vsel %vm3133, %v3258, 0.0
    %v3384 = vsel %vm3134, %v3259, 0.0
    %v3385 = vsel %vm3135, %v3260, 0.0
    %v3386 = vsel %vm3136, %v3261, 0.0
    %v3387 = vsel %vm3137, %v3262, 0.0
    %v3388 = vsel %vm3138, %v3263, 0.0
    %v3389 = vsel %vm3139, %v3264, 0.0
    %v3390 = vsel %vm3140, %v3265, 0.0
    %v3391 = vsel %vm3141, %v3266, 0.0
    %v3392 = vsel %vm3142, %v3267, 0.0
    %v3393 = vsel %vm3143, %v3268, 0.0
    %v3394 = vsel %vm3144, %v3269, 0.0
    %v3395 = vsel %vm3145, %v3270, 0.0
    %v3396 = vsel %vm3146, %v3271, 0.0
    %v3397 = vsel %vm3147, %v3272, 0.0
    %v3398 = vsel %vm3148, %v3273, 0.0
    %v3399 = vsel %vm3149, %v3274, 0.0
    %v3400 = vsel %vm3150, %v3275, 0.0
    %v3401 = vsel %vm3151, %v3276, 0.0
    %v3402 = vsel %vm3152, %v3277, 0.0
    %v3403 = vsel %vm3153, %v3278, 0.0
    %v3404 = vsel %vm3154, %v3279, 0.0
    %v3405 = vsel %vm3155, %v3280, 0.0
    %v3406 = vsel %vm3156, %v3281, 0.0
    %v3407 = vsel %vm3157, %v3282, 0.0
    %v3408 = vsel %vm3158, %v3283, 0.0
    %v3409 = vsel %vm3159, %v3284, 0.0
    %v3410 = vsel %vm3160, %v3285, 0.0
    %v3411 = vsel %vm3161, %v3286, 0.0
    %v3412 = vsel %vm3162, %v3287, 0.0
    %v3413 = vsel %vm3163, %v3288, 0.0
    %v3414 = vsel %vm3164, %v3289, 0.0
    %v3415 = vsel %vm3165, %v3290, 0.0
    %v3416 = vsel %vm3166, %v3291, 0.0
    %v3417 = vsel %vm3167, %v3292, 0.0
    %v3418 = vsel %vm3168, %v3293, 0.0
    %v3419 = vsel %vm3169, %v3294, 0.0
    %v3420 = vsel %vm3170, %v3295, 0.0
    %v3421 = vsel %vm3171, %v3296, 0.0
    %v3422 = vsel %vm3172, %v3297, 0.0
    %v3423 = vsel %vm3173, %v3298, 0.0
    %v3424 = vsel %vm3174, %v3299, 0.0
    %v3425 = vsel %vm3175, %v3300, 0.0
    %v3426 = vsel %vm3176, %v3301, 0.0
    %v3427 = vsel %vm3177, %v3302, 0.0
    %v3428 = vsel %vm3178, %v3303, 0.0
    %v3429 = vsel %vm3179, %v3304, 0.0
    %v3430 = vsel %vm3180, %v3305, 0.0
    %v3431 = vsel %vm3181, %v3306, 0.0
    %v3432 = vsel %vm3182, %v3307, 0.0
    %v3433 = vsel %vm3183, %v3308, 0.0
    %v3434 = vsel %vm3184, %v3309, 0.0
    %v3435 = vsel %vm3185, %v3310, 0.0
    %v3436 = vsel %vm3186, %v3311, 0.0
    %v3437 = vsel %vm3187, %v3312, 0.0
    %v3438 = vsel %vm3188, %v3313, 0.0
    %v3439 = vsel %vm3189, %v3314, 0.0
    %v3440 = vsel %vm3190, %v3315, 0.0
    %v3441 = vsel %vm3191, %v3316, 0.0
    %v3442 = vsel %vm3192, %v3317, 0.0
    %v3443 = vsel %vm3193, %v3318, 0.0
    %v3444 = vld [vmem:[#allocation2] sm:$0x1]
    %v3445 = vadd.f32 %v3319, %v3320
    %v3446 = vadd.f32 %v3445, %v3321
    %v3447 = vadd.f32 %v3446, %v3322
    %v3448 = vadd.f32 %v3447, %v3323
    %v3449 = vadd.f32 %v3448, %v3324
    %v3450 = vadd.f32 %v3449, %v3325
    %v3451 = vadd.f32 %v3450, %v3326
    %v3452 = vadd.f32 %v3451, %v3327
    %v3453 = vadd.f32 %v3452, %v3328
    %v3454 = vadd.f32 %v3453, %v3329
    %v3455 = vadd.f32 %v3454, %v3330
    %v3456 = vadd.f32 %v3455, %v3331
    %v3457 = vadd.f32 %v3456, %v3332
    %v3458 = vadd.f32 %v3457, %v3333
    %v3459 = vadd.f32 %v3458, %v3334
    %v3460 = vadd.f32 %v3459, %v3335
    %v3461 = vadd.f32 %v3460, %v3336
    %v3462 = vadd.f32 %v3461, %v3337
    %v3463 = vadd.f32 %v3462, %v3338
    %v3464 = vadd.f32 %v3463, %v3339
    %v3465 = vadd.f32 %v3464, %v3340
    %v3466 = vadd.f32 %v3465, %v3341
    %v3467 = vadd.f32 %v3466, %v3342
    %v3468 = vadd.f32 %v3467, %v3343
    %v3469 = vadd.f32 %v3468, %v3344
    %v3470 = vadd.f32 %v3469, %v3345
    %v3471 = vadd.f32 %v3470, %v3346
    %v3472 = vadd.f32 %v3471, %v3347
    %v3473 = vadd.f32 %v3472, %v3348
    %v3474 = vadd.f32 %v3473, %v3349
    %v3475 = vadd.f32 %v3474, %v3350
    %v3476 = vadd.f32 %v3475, %v3351
    %v3477 = vadd.f32 %v3476, %v3352
    %v3478 = vadd.f32 %v3477, %v3353
    %v3479 = vadd.f32 %v3478, %v3354
    %v3480 = vadd.f32 %v3479, %v3355
    %v3481 = vadd.f32 %v3480, %v3356
    %v3482 = vadd.f32 %v3481, %v3357
    %v3483 = vadd.f32 %v3482, %v3358
    %v3484 = vadd.f32 %v3483, %v3359
    %v3485 = vadd.f32 %v3484, %v3360
    %v3486 = vadd.f32 %v3485, %v3361
    %v3487 = vadd.f32 %v3486, %v3362
    %v3488 = vadd.f32 %v3487, %v3363
    %v3489 = vadd.f32 %v3488, %v3364
    %v3490 = vadd.f32 %v3489, %v3365
    %v3491 = vadd.f32 %v3490, %v3366
    %v3492 = vadd.f32 %v3491, %v3367
    %v3493 = vadd.f32 %v3492, %v3368
    %v3494 = vadd.f32 %v3493, %v3369
    %v3495 = vadd.f32 %v3494, %v3370
    %v3496 = vadd.f32 %v3495, %v3371
    %v3497 = vadd.f32 %v3496, %v3372
    %v3498 = vadd.f32 %v3497, %v3373
    %v3499 = vadd.f32 %v3498, %v3374
    %v3500 = vadd.f32 %v3499, %v3375
    %v3501 = vadd.f32 %v3500, %v3376
    %v3502 = vadd.f32 %v3501, %v3377
    %v3503 = vadd.f32 %v3502, %v3378
    %v3504 = vadd.f32 %v3503, %v3379
    %v3505 = vadd.f32 %v3504, %v3380
    %v3506 = vadd.f32 %v3505, %v3381
    %v3507 = vadd.f32 %v3506, %v3382
    %v3508 = vadd.f32 %v3507, %v3383
    %v3509 = vadd.f32 %v3508, %v3384
    %v3510 = vadd.f32 %v3509, %v3385
    %v3511 = vadd.f32 %v3510, %v3386
    %v3512 = vadd.f32 %v3511, %v3387
    %v3513 = vadd.f32 %v3512, %v3388
    %v3514 = vadd.f32 %v3513, %v3389
    %v3515 = vadd.f32 %v3514, %v3390
    %v3516 = vadd.f32 %v3515, %v3391
    %v3517 = vadd.f32 %v3516, %v3392
    %v3518 = vadd.f32 %v3517, %v3393
    %v3519 = vadd.f32 %v3518, %v3394
    %v3520 = vadd.f32 %v3519, %v3395
    %v3521 = vadd.f32 %v3520, %v3396
    %v3522 = vadd.f32 %v3521, %v3397
    %v3523 = vadd.f32 %v3522, %v3398
    %v3524 = vadd.f32 %v3523, %v3399
    %v3525 = vadd.f32 %v3524, %v3400
    %v3526 = vadd.f32 %v3525, %v3401
    %v3527 = vadd.f32 %v3526, %v3402
    %v3528 = vadd.f32 %v3527, %v3403
    %v3529 = vadd.f32 %v3528, %v3404
    %v3530 = vadd.f32 %v3529, %v3405
    %v3531 = vadd.f32 %v3530, %v3406
    %v3532 = vadd.f32 %v3531, %v3407
    %v3533 = vadd.f32 %v3532, %v3408
    %v3534 = vadd.f32 %v3533, %v3409
    %v3535 = vadd.f32 %v3534, %v3410
    %v3536 = vadd.f32 %v3535, %v3411
    %v3537 = vadd.f32 %v3536, %v3412
    %v3538 = vadd.f32 %v3537, %v3413
    %v3539 = vadd.f32 %v3538, %v3414
    %v3540 = vadd.f32 %v3539, %v3415
    %v3541 = vadd.f32 %v3540, %v3416
    %v3542 = vadd.f32 %v3541, %v3417
    %v3543 = vadd.f32 %v3542, %v3418
    %v3544 = vadd.f32 %v3543, %v3419
    %v3545 = vadd.f32 %v3544, %v3420
    %v3546 = vadd.f32 %v3545, %v3421
    %v3547 = vadd.f32 %v3546, %v3422
    %v3548 = vadd.f32 %v3547, %v3423
    %v3549 = vadd.f32 %v3548, %v3424
    %v3550 = vadd.f32 %v3549, %v3425
    %v3551 = vadd.f32 %v3550, %v3426
    %v3552 = vadd.f32 %v3551, %v3427
    %v3553 = vadd.f32 %v3552, %v3428
    %v3554 = vadd.f32 %v3553, %v3429
    %v3555 = vadd.f32 %v3554, %v3430
    %v3556 = vadd.f32 %v3555, %v3431
    %v3557 = vadd.f32 %v3556, %v3432
    %v3558 = vadd.f32 %v3557, %v3433
    %v3559 = vadd.f32 %v3558, %v3434
    %v3560 = vadd.f32 %v3559, %v3435
    %v3561 = vadd.f32 %v3560, %v3436
    %v3562 = vadd.f32 %v3561, %v3437
    %v3563 = vadd.f32 %v3562, %v3438
    %v3564 = vadd.f32 %v3563, %v3439
    %v3565 = vadd.f32 %v3564, %v3440
    %v3566 = vadd.f32 %v3565, %v3441
    %v3567 = vadd.f32 %v3566, %v3442
    %v3568 = vadd.f32 %v3567, %v3443
    %v3569 = vrot.slane %v3568, 4
    %v3570 = vadd.f32 %v3568, %v3569
    %v3571 = vrot.slane %v3570, 2
    %v3572 = vadd.f32 %v3570, %v3571
    %v3573 = vrot.slane %v3572, 1
    %v3574 = vadd.f32 %v3572, %v3573
    %v3575 = vadd.f32 %v3444, %v3574
    %vm3576 = vcmask 0
    %3577 = vst.msk [vmem:[#allocation2] sm:$0x1] %vm3576, %v3575
    // Predicated region
    $region14: #{tpu_custom_call.1} parent=1 // pred_check
      _
    $region15: #{tpu_custom_call.1} parent=1 // pred_check_branch
      %3579 = sbr.rel (0) target = $region17
    $region16: #{tpu_custom_call.1} parent=1 // pred_region
      %s3581 = ssub.s32 16, 16
      %3582 = vsyncadd [#allocation3], %s3581
      %s3584 = sshll.u32 [#allocation2], 4
      %s3585 = int_to_ptr.vmem [resolvable:$true] %s3584
      %3587 = dma.vmem_to_hbm [thread:$0]  %s3585, 16, %s2, [#allocation3]
    $region17: #{tpu_custom_call.1} parent=1 // pred_fallthru
      _
    // Predicated region
    $region18: #{tpu_custom_call.1} parent=1 // pred_check
      _
    $region19: #{tpu_custom_call.1} parent=1 // pred_check_branch
      %3589 = sbr.rel (0) target = $region21
    $region20: #{tpu_custom_call.1} parent=1 // pred_region
      %3590 = dma.done [#allocation3], 16
    $region21: #{tpu_custom_call.1} parent=1 // pred_fallthru
      _
    %3591 = vsyncpa [#allocation3], 1

</llo_original>
